<compile_context>
chip_gen: v7x
topology: tpu7x:2x2x1
jax: 0.10.0
libtpu: 0.0.40
codegen_flags: <defaults>
</compile_context>

<pallas_src>
import jax
import jax.numpy as jnp
from jax.experimental import pallas as pl
from jax.experimental.pallas import tpu as pltpu

LANE = 128                      # feature blocks padded to a full vreg lane width
MXU_DTYPE = jnp.bfloat16        # MXU operand / embedding-buffer dtype
VMEM_LIMIT = 32 * 1024 * 1024   # scoped VMEM: >= all defaults, safe on v5e/v6e/v7x


def _cparams(dims):
    return pltpu.CompilerParams(dimension_semantics=dims,
                                vmem_limit_bytes=VMEM_LIMIT)


def _round_up(x, m):
    return (x + m - 1) // m * m


def _pick_tiles(n):
    """Return (row tile tm, source/K tile tk, padded node count Np)."""
    if n < 256:
        t = 128
        return t, t, _round_up(n, t)
    np_ = _round_up(n, 256)
    tk = 256                                # MXU-native width on v6e/v7x
    tm = 512 if np_ % 512 == 0 else 256     # bigger row tile -> fewer feature re-streams
    return tm, tk, np_


# -----------------------------------------------------------------------------
# Kernels
# -----------------------------------------------------------------------------
def _pre_mp_kernel(x_ref, w_ref, b_ref, o_ref):
    # Writes the full [(tm), (L+1)*128] row slab of the embedding buffer:
    # column block 0 = x @ W + b (bf16), remaining blocks zero (overwritten by
    # the conv layers before they are ever read).
    hp = w_ref.shape[1]
    tm, d_total = o_ref.shape
    y = (jnp.dot(x_ref[...], w_ref[...], preferred_element_type=jnp.float32)
         + b_ref[...])
    o_ref[:, :hp] = y.astype(o_ref.dtype)
    if d_total > hp:
        o_ref[:, hp:] = jnp.zeros((tm, d_total - hp), o_ref.dtype)


def pre_mp(x_pad, w_pad, b_pad, d_total, tm):
    np_, fp = x_pad.shape
    hp = w_pad.shape[1]
    return pl.pallas_call(
        _pre_mp_kernel,
        out_shape=jax.ShapeDtypeStruct((np_, d_total), MXU_DTYPE),
        grid=(np_ // tm,),
        in_specs=[
            pl.BlockSpec((tm, fp), lambda i: (i, 0)),
            pl.BlockSpec((fp, hp), lambda i: (0, 0)),
            pl.BlockSpec((1, hp), lambda i: (0, 0)),
        ],
        out_specs=pl.BlockSpec((tm, d_total), lambda i: (i, 0)),
        compiler_params=_cparams(("parallel",)),
    )(x_pad, w_pad, b_pad)


def _gin_conv_kernel(emb_ref, adj_ref, w1_ref, b1_ref, w2_ref, b2_ref,
                     out_ref, acc_ref):
    # acc[tm, d] += A_hat[tm, tk] @ emb[tk, d]     (bf16 MXU inputs, f32 acc)
    # at last K tile:  out = relu( relu(acc @ W1_gated + b1) @ W2 + b2 )
    k = pl.program_id(1)

    @pl.when(k == 0)
    def _():
        acc_ref[...] = jnp.zeros_like(acc_ref)

    acc_ref[...] += jnp.dot(adj_ref[...], emb_ref[...],
                            preferred_element_type=jnp.float32)

    @pl.when(k == pl.num_programs(1) - 1)
    def _():
        agg = acc_ref[...]
        h = jnp.dot(agg.astype(MXU_DTYPE), w1_ref[...],
                    preferred_element_type=jnp.float32) + b1_ref[...]
        h = jnp.maximum(h, 0.0)                       # GIN-MLP inner ReLU (f32)
        y = jnp.dot(h.astype(MXU_DTYPE), w2_ref[...],
                    preferred_element_type=jnp.float32) + b2_ref[...]
        out_ref[...] = jnp.maximum(y, 0.0).astype(out_ref.dtype)   # outer F.relu


def gin_conv_layer(emb_buf, adj_hat, w1_eff, b1_pad, w2_pad, b2_pad,
                   layer, hp, tm, tk):
    np_, d_total = emb_buf.shape
    d_active = (layer + 1) * hp          # columns of emb_buf actually read
    out_col_block = layer + 1            # column block this layer writes

    return pl.pallas_call(
        _gin_conv_kernel,
        out_shape=jax.ShapeDtypeStruct((np_, d_total), emb_buf.dtype),
        grid=(np_ // tm, np_ // tk),                 # (row tiles, K tiles)
        in_specs=[
            pl.BlockSpec((tk, d_active), lambda i, k: (k, 0)),   # features (K)
            pl.BlockSpec((tm, tk), lambda i, k: (i, k)),         # A_hat tile
            pl.BlockSpec((d_active, hp), lambda i, k: (0, 0)),   # gated W1
            pl.BlockSpec((1, hp), lambda i, k: (0, 0)),
            pl.BlockSpec((hp, hp), lambda i, k: (0, 0)),
            pl.BlockSpec((1, hp), lambda i, k: (0, 0)),
        ],
        out_specs=pl.BlockSpec((tm, hp), lambda i, k: (i, out_col_block)),
        scratch_shapes=[pltpu.VMEM((tm, d_active), jnp.float32)],
        input_output_aliases={0: 0},     # write this layer's block in place
        compiler_params=_cparams(("parallel", "arbitrary")),
    )(emb_buf, adj_hat, w1_eff, b1_pad, w2_pad, b2_pad)


def _pool_post_kernel(p_ref, e_ref, w1_ref, b1_ref, w2_ref, b2_ref,
                      w3_ref, b3_ref, w4_ref, b4_ref, o_ref, acc_ref):
    # Fused global_add_pool (K-tiled P @ emb reduction) + full post_mp chain.
    k = pl.program_id(0)

    @pl.when(k == 0)
    def _():
        acc_ref[...] = jnp.zeros_like(acc_ref)

    acc_ref[...] += jnp.dot(p_ref[...], e_ref[...],
                            preferred_element_type=jnp.float32)

    @pl.when(k == pl.num_programs(0) - 1)
    def _():
        pooled = acc_ref[...]
        y = jnp.dot(pooled.astype(MXU_DTYPE), w1_ref[...],
                    preferred_element_type=jnp.float32) + b1_ref[...]
        # TODO(synk): nn.Dropout is eval-mode identity here.
        y = jnp.where(y > 0.0, y, 0.1 * y)            # LeakyReLU(0.1)
        y = jnp.dot(y.astype(MXU_DTYPE), w2_ref[...],
                    preferred_element_type=jnp.float32) + b2_ref[...]
        y = jnp.maximum(y, 0.0)
        y = jnp.dot(y.astype(MXU_DTYPE), w3_ref[...],
                    preferred_element_type=jnp.float32) + b3_ref[...]
        y = jnp.maximum(y, 0.0)
        y = jnp.dot(y.astype(MXU_DTYPE), w4_ref[...],
                    preferred_element_type=jnp.float32) + b4_ref[...]
        o_ref[...] = y


def pool_and_post_mp(pool_pad, emb_buf, w1, b1, w2, b2, w3, b3, w4, b4, tm):
    bp, np_ = pool_pad.shape
    d_emb = emb_buf.shape[1]
    hp = w1.shape[1]
    op = w2.shape[1]
    return pl.pallas_call(
        _pool_post_kernel,
        out_shape=jax.ShapeDtypeStruct((bp, op), jnp.float32),
        grid=(np_ // tm,),
        in_specs=[
            pl.BlockSpec((bp, tm), lambda k: (0, k)),
            pl.BlockSpec((tm, d_emb), lambda k: (k, 0)),
            pl.BlockSpec((d_emb, hp), lambda k: (0, 0)),
            pl.BlockSpec((1, hp), lambda k: (0, 0)),
            pl.BlockSpec((hp, op), lambda k: (0, 0)),
            pl.BlockSpec((1, op), lambda k: (0, 0)),
            pl.BlockSpec((op, 256), lambda k: (0, 0)),
            pl.BlockSpec((1, 256), lambda k: (0, 0)),
            pl.BlockSpec((256, op), lambda k: (0, 0)),
            pl.BlockSpec((1, op), lambda k: (0, 0)),
        ],
        out_specs=pl.BlockSpec((bp, op), lambda k: (0, 0)),
        scratch_shapes=[pltpu.VMEM((bp, d_emb), jnp.float32)],
        compiler_params=_cparams(("arbitrary",)),
    )(pool_pad, emb_buf, w1, b1, w2, b2, w3, b3, w4, b4)


# -----------------------------------------------------------------------------
# Parameter init (deterministic, synthetic) and zero-padding helpers
# -----------------------------------------------------------------------------
def init_linear_params(key, din, dout):
    k1, k2 = jax.random.split(key)
    w = jax.random.normal(k1, (din, dout), jnp.float32) * (1.0 / jnp.sqrt(din))
    b = jax.random.normal(k2, (dout,), jnp.float32) * 0.01
    return w, b


def init_gnn_params(key, input_dim, hidden_dim, output_dim, n_layers):
    keys = jax.random.split(key, 2 * n_layers + 5)
    params = {}
    params["pre_w"], params["pre_b"] = init_linear_params(keys[0], input_dim, hidden_dim)
    params["learnable_skip"] = jnp.ones((n_layers, n_layers), jnp.float32)
    convs = []
    for l in range(n_layers):
        w1, b1 = init_linear_params(keys[1 + 2 * l], hidden_dim * (l + 1), hidden_dim)
        w2, b2 = init_linear_params(keys[2 + 2 * l], hidden_dim, hidden_dim)
        convs.append((w1, b1, w2, b2))
    params["convs"] = convs
    post_in = hidden_dim * (n_layers + 1)
    params["post1_w"], params["post1_b"] = init_linear_params(keys[-4], post_in, hidden_dim)
    params["post2_w"], params["post2_b"] = init_linear_params(keys[-3], hidden_dim, output_dim)
    params["post3_w"], params["post3_b"] = init_linear_params(keys[-2], output_dim, 256)
    params["post4_w"], params["post4_b"] = init_linear_params(keys[-1], 256, output_dim)
    return params


def _pad_matrix(w, rows, cols):
    return jnp.zeros((rows, cols), jnp.float32).at[: w.shape[0], : w.shape[1]].set(w)


def _pad_row(b, cols):
    return jnp.zeros((1, cols), jnp.float32).at[0, : b.shape[0]].set(b)


def _pad_block_rows(w, n_blocks, h, hp, cols):
    # [n_blocks*h, c] -> [n_blocks*hp, cols]; each h-row group goes to the head
    # of its hp-row group (matches the 128-lane-padded feature layout).
    out = jnp.zeros((n_blocks * hp, cols), jnp.float32)
    for j in range(n_blocks):
        out = out.at[j * hp: j * hp + h, : w.shape[1]].set(w[j * h: (j + 1) * h, :])
    return out


# -----------------------------------------------------------------------------
# Forward pass (glue / padding in plain JAX, heavy compute in Pallas kernels)
# -----------------------------------------------------------------------------
def gnn_encoder_forward(params, node_feature, adj, batch, num_graphs,
                        hidden_dim, output_dim, n_layers):
    n, f = node_feature.shape
    hp = LANE                          # padded hidden block width
    op = LANE                          # padded output block width
    fp = LANE                          # padded input-feature width (lane-dense)
    tm, tk, np_ = _pick_tiles(n)       # row tile, source/K tile, padded nodes
    bp = _round_up(num_graphs, 8)      # sublane-pad the graph axis
    d_total = (n_layers + 1) * hp

    # ---- padded inputs (built directly in bf16, no f32 N^2 temporaries) -----
    x_pad = jnp.zeros((np_, fp), MXU_DTYPE).at[:n, :f].set(
        node_feature.astype(MXU_DTYPE))

    # GIN self term (eps = 0) folded into the adjacency: A_hat = A + I.
    # Small-integer entries: exact in bf16.
    adj_hat = jnp.zeros((np_, np_), MXU_DTYPE).at[:n, :n].set(
        (adj + jnp.eye(n, dtype=adj.dtype)).astype(MXU_DTYPE))

    pool_pad = jnp.zeros((bp, np_), MXU_DTYPE).at[:num_graphs, :n].set(
        (batch[None, :] == jnp.arange(num_graphs)[:, None]).astype(MXU_DTYPE))

    # ---- pre_mp: Linear(5, H) writes the whole persistent embedding buffer --
    pre_w = _pad_matrix(params["pre_w"], fp, hp).astype(MXU_DTYPE)
    pre_b = _pad_row(params["pre_b"], hp)
    emb_buf = pre_mp(x_pad, pre_w, pre_b, d_total, tm)       # [Np, d_total] bf16

    # ---- GIN layers: write their 128-wide block of emb_buf in place ---------
    for layer in range(n_layers):
        w1, b1, w2, b2 = params["convs"][layer]
        # learnable-skip gate is a per-column scale of the concatenated input;
        # fold it into W1 (exact):  (X * s) @ W1 == X @ (diag(s) @ W1).
        gate = jax.nn.sigmoid(params["learnable_skip"][layer, : layer + 1])
        row_scale = jnp.repeat(gate, hp)                      # [(l+1)*hp]
        w1_pad = _pad_block_rows(w1, layer + 1, hidden_dim, hp, hp)
        w1_eff = (row_scale[:, None] * w1_pad).astype(MXU_DTYPE)
        b1_pad = _pad_row(b1, hp)
        w2_pad = _pad_matrix(w2, hp, hp).astype(MXU_DTYPE)
        b2_pad = _pad_row(b2, hp)
        # TODO(synk): F.dropout after each conv is eval-mode identity here.
        emb_buf = gin_conv_layer(emb_buf, adj_hat, w1_eff, b1_pad,
                                 w2_pad, b2_pad, layer, hp, tm, tk)

    # ---- fused global_add_pool + post_mp -------------------------------------
    p1w = _pad_block_rows(params["post1_w"], n_layers + 1, hidden_dim, hp, hp
                          ).astype(MXU_DTYPE)
    p1b = _pad_row(params["post1_b"], hp)
    p2w = _pad_matrix(params["post2_w"], hp, op).astype(MXU_DTYPE)
    p2b = _pad_row(params["post2_b"], op)
    p3w = _pad_matrix(params["post3_w"], op, 256).astype(MXU_DTYPE)
    p3b = _pad_row(params["post3_b"], 256)
    p4w = _pad_matrix(params["post4_w"], 256, op).astype(MXU_DTYPE)
    p4b = _pad_row(params["post4_b"], op)

    y = pool_and_post_mp(pool_pad, emb_buf, p1w, p1b, p2w, p2b,
                         p3w, p3b, p4w, p4b, tm)              # [Bp, 128] f32
    return y[:num_graphs, :output_dim]


# -----------------------------------------------------------------------------
# Main
# -----------------------------------------------------------------------------
if __name__ == "__main__":
    # input_dim = 5 (node features), hidden_dim = 32, output_dim = 16,
    # n_layers = 2; 4 graphs x 64 nodes each (N = 256 -> tm = tk = 256).
    input_dim, hidden_dim, output_dim, n_layers = 5, 32, 16, 2
    num_graphs, nodes_per_graph = 4, 64
    num_nodes = num_graphs * nodes_per_graph

    key = jax.random.PRNGKey(0)
    k_param, k_feat = jax.random.split(key)
    params = init_gnn_params(k_param, input_dim, hidden_dim, output_dim, n_layers)

    node_feature = jax.random.normal(k_feat, (num_nodes, input_dim), jnp.float32)

    # edge_index: bidirectional ring inside each graph (deterministic, sparse).
    base = jnp.arange(nodes_per_graph, dtype=jnp.int32)
    offs = (jnp.arange(num_graphs, dtype=jnp.int32) * nodes_per_graph)[:, None]
    ring_src = (offs + base).reshape(-1)
    ring_dst = (offs + (base + 1) % nodes_per_graph).reshape(-1)
    src = jnp.concatenate([ring_src, ring_dst])
    dst = jnp.concatenate([ring_dst, ring_src])
    # Dense adjacency for sum-aggregation: A[dst, src] += 1
    adj = jnp.zeros((num_nodes, num_nodes), jnp.float32).at[dst, src].add(1.0)

    batch = jnp.repeat(jnp.arange(num_graphs, dtype=jnp.int32), nodes_per_graph)

    fwd = jax.jit(gnn_encoder_forward,
                  static_argnames=("num_graphs", "hidden_dim",
                                   "output_dim", "n_layers"))
    out = fwd(params, node_feature, adj, batch, num_graphs=num_graphs,
              hidden_dim=hidden_dim, output_dim=output_dim, n_layers=n_layers)
    out = jax.block_until_ready(out)

    assert out.shape == (num_graphs, output_dim), out.shape
    assert bool(jnp.all(jnp.isfinite(out))), "non-finite output"
    print("KERNEL_OK")
</pallas_src>

<mosaic_0001>
module attributes {stable_mosaic.version = 11 : i64} {
  func.func @_pre_mp_kernel(%arg0: i32, %arg1: memref<256x128xbf16, #tpu.memory_space<vmem>>, %arg2: memref<128x128xbf16, #tpu.memory_space<vmem>>, %arg3: memref<1x128xf32, #tpu.memory_space<vmem>>, %arg4: memref<256x384xbf16, #tpu.memory_space<vmem>>) attributes {dimension_semantics = [#tpu.dimension_semantics<parallel>], iteration_bounds = array<i64: 1>, scalar_prefetch = 0 : i64, scratch_operands = 0 : i64, tpu.core_type = #tpu.core_type<tc>, window_params = [{transform_indices = @transform_0, window_bounds = array<i64: 256, 128>}, {pipeline_mode = #tpu.pipeline_mode<synchronous>, transform_indices = @transform_1, window_bounds = array<i64: 128, 128>}, {pipeline_mode = #tpu.pipeline_mode<synchronous>, transform_indices = @transform_2, window_bounds = array<i64: 1, 128>}, {transform_indices = @transform_3, window_bounds = array<i64: 256, 384>}]} {
    %c0 = arith.constant 0 : index
    %c0_0 = arith.constant 0 : index
    %0 = vector.load %arg1[%c0, %c0_0] : memref<256x128xbf16, #tpu.memory_space<vmem>>, vector<256x128xbf16>
    %c0_1 = arith.constant 0 : index
    %c0_2 = arith.constant 0 : index
    %1 = vector.load %arg2[%c0_1, %c0_2] : memref<128x128xbf16, #tpu.memory_space<vmem>>, vector<128x128xbf16>
    %cst = arith.constant dense<0.000000e+00> : vector<256x128xf32>
    %2 = tpu.matmul %0, %1, %cst {dimension_numbers = #tpu.dot_dimension_numbers<[1], [0], [0], [1], [0, 0, 1, 1], [], []>} : vector<256x128xbf16>, vector<128x128xbf16>, vector<256x128xf32> -> vector<256x128xf32>
    %c0_3 = arith.constant 0 : index
    %c0_4 = arith.constant 0 : index
    %3 = vector.load %arg3[%c0_3, %c0_4] : memref<1x128xf32, #tpu.memory_space<vmem>>, vector<1x128xf32>
    %4 = vector.broadcast %3 : vector<1x128xf32> to vector<256x128xf32>
    %5 = arith.addf %2, %4 : vector<256x128xf32>
    %6 = arith.truncf %5 : vector<256x128xf32> to vector<256x128xbf16>
    %c0_5 = arith.constant 0 : index
    %c0_6 = arith.constant 0 : index
    %7 = vector.load %arg4[%c0_5, %c0_6] : memref<256x384xbf16, #tpu.memory_space<vmem>>, vector<256x128xbf16>
    tpu.vector_store %arg4[%c0_5, %c0_6], %6 {strides = array<i32>} : memref<256x384xbf16, #tpu.memory_space<vmem>>, vector<256x128xbf16>,
    %cst_7 = arith.constant 0.000000e+00 : bf16
    %8 = vector.broadcast %cst_7 : bf16 to vector<256x256xbf16>
    %c0_8 = arith.constant 0 : index
    %c128 = arith.constant 128 : index
    %9 = vector.load %arg4[%c0_8, %c128] : memref<256x384xbf16, #tpu.memory_space<vmem>>, vector<256x256xbf16>
    tpu.vector_store %arg4[%c0_8, %c128], %8 {strides = array<i32>} : memref<256x384xbf16, #tpu.memory_space<vmem>>, vector<256x256xbf16>,
    return
  }
  func.func @transform_0(%arg0: i32) -> (i32, i32) {
    %c0_i32 = arith.constant 0 : i32
    %c0_i32_0 = arith.constant 0 : i32
    return %arg0, %c0_i32 : i32, i32
  }
  func.func @transform_1(%arg0: i32) -> (i32, i32) {
    %c0_i32 = arith.constant 0 : i32
    %c0_i32_0 = arith.constant 0 : i32
    %c0_i32_1 = arith.constant 0 : i32
    return %c0_i32, %c0_i32_0 : i32, i32
  }
  func.func @transform_2(%arg0: i32) -> (i32, i32) {
    %c0_i32 = arith.constant 0 : i32
    %c0_i32_0 = arith.constant 0 : i32
    %c0_i32_1 = arith.constant 0 : i32
    return %c0_i32, %c0_i32_0 : i32, i32
  }
  func.func @transform_3(%arg0: i32) -> (i32, i32) {
    %c0_i32 = arith.constant 0 : i32
    %c0_i32_0 = arith.constant 0 : i32
    return %arg0, %c0_i32 : i32, i32
  }
}

module attributes {stable_mosaic.version = 11 : i64} {
  func.func @_gin_conv_kernel(%arg0: i32, %arg1: i32, %arg2: memref<256x128xbf16, #tpu.memory_space<vmem>>, %arg3: memref<256x256xbf16, #tpu.memory_space<vmem>>, %arg4: memref<128x128xbf16, #tpu.memory_space<vmem>>, %arg5: memref<1x128xf32, #tpu.memory_space<vmem>>, %arg6: memref<128x128xbf16, #tpu.memory_space<vmem>>, %arg7: memref<1x128xf32, #tpu.memory_space<vmem>>, %arg8: memref<256x128xbf16, #tpu.memory_space<vmem>>, %arg9: memref<256x128xf32, #tpu.memory_space<vmem>>) attributes {dimension_semantics = [#tpu.dimension_semantics<parallel>, #tpu.dimension_semantics<arbitrary>], iteration_bounds = array<i64: 1, 1>, scalar_prefetch = 0 : i64, scratch_operands = 1 : i64, tpu.core_type = #tpu.core_type<tc>, window_params = [{transform_indices = @transform_0, window_bounds = array<i64: 256, 128>}, {transform_indices = @transform_1, window_bounds = array<i64: 256, 256>}, {pipeline_mode = #tpu.pipeline_mode<synchronous>, transform_indices = @transform_2, window_bounds = array<i64: 128, 128>}, {pipeline_mode = #tpu.pipeline_mode<synchronous>, transform_indices = @transform_3, window_bounds = array<i64: 1, 128>}, {pipeline_mode = #tpu.pipeline_mode<synchronous>, transform_indices = @transform_4, window_bounds = array<i64: 128, 128>}, {pipeline_mode = #tpu.pipeline_mode<synchronous>, transform_indices = @transform_5, window_bounds = array<i64: 1, 128>}, {transform_indices = @transform_6, window_bounds = array<i64: 256, 128>}]} {
    %c0_i32 = arith.constant 0 : i32
    %0 = arith.cmpi eq, %arg1, %c0_i32 : i32
    %1 = arith.extui %0 : i1 to i32
    %c0_i32_0 = arith.constant 0 : i32
    %2 = arith.cmpi ne, %1, %c0_i32_0 : i32
    scf.if %2 {
      %cst_10 = arith.constant 0.000000e+00 : f32
      %12 = vector.broadcast %cst_10 : f32 to vector<256x128xf32>
      %c0_11 = arith.constant 0 : index
      %c0_12 = arith.constant 0 : index
      %13 = vector.load %arg9[%c0_11, %c0_12] : memref<256x128xf32, #tpu.memory_space<vmem>>, vector<256x128xf32>
      tpu.vector_store %arg9[%c0_11, %c0_12], %12 {strides = array<i32>} : memref<256x128xf32, #tpu.memory_space<vmem>>, vector<256x128xf32>,
    } else {
    }
    %c0 = arith.constant 0 : index
    %c0_1 = arith.constant 0 : index
    %3 = vector.load %arg9[%c0, %c0_1] : memref<256x128xf32, #tpu.memory_space<vmem>>, vector<256x128xf32>
    %c0_2 = arith.constant 0 : index
    %c0_3 = arith.constant 0 : index
    %4 = vector.load %arg3[%c0_2, %c0_3] : memref<256x256xbf16, #tpu.memory_space<vmem>>, vector<256x256xbf16>
    %c0_4 = arith.constant 0 : index
    %c0_5 = arith.constant 0 : index
    %5 = vector.load %arg2[%c0_4, %c0_5] : memref<256x128xbf16, #tpu.memory_space<vmem>>, vector<256x128xbf16>
    %cst = arith.constant dense<0.000000e+00> : vector<256x128xf32>
    %6 = tpu.matmul %4, %5, %cst {dimension_numbers = #tpu.dot_dimension_numbers<[1], [0], [0], [1], [0, 0, 1, 1], [], []>} : vector<256x256xbf16>, vector<256x128xbf16>, vector<256x128xf32> -> vector<256x128xf32>
    %7 = arith.addf %3, %6 : vector<256x128xf32>
    %c0_6 = arith.constant 0 : index
    %c0_7 = arith.constant 0 : index
    %8 = vector.load %arg9[%c0_6, %c0_7] : memref<256x128xf32, #tpu.memory_space<vmem>>, vector<256x128xf32>
    tpu.vector_store %arg9[%c0_6, %c0_7], %7 {strides = array<i32>} : memref<256x128xf32, #tpu.memory_space<vmem>>, vector<256x128xf32>,
    %c0_i32_8 = arith.constant 0 : i32
    %9 = arith.cmpi eq, %arg1, %c0_i32_8 : i32
    %10 = arith.extui %9 : i1 to i32
    %c0_i32_9 = arith.constant 0 : i32
    %11 = arith.cmpi ne, %10, %c0_i32_9 : i32
    scf.if %11 {
      %c0_10 = arith.constant 0 : index
      %c0_11 = arith.constant 0 : index
      %12 = vector.load %arg9[%c0_10, %c0_11] : memref<256x128xf32, #tpu.memory_space<vmem>>, vector<256x128xf32>
      %13 = arith.truncf %12 : vector<256x128xf32> to vector<256x128xbf16>
      %c0_12 = arith.constant 0 : index
      %c0_13 = arith.constant 0 : index
      %14 = vector.load %arg4[%c0_12, %c0_13] : memref<128x128xbf16, #tpu.memory_space<vmem>>, vector<128x128xbf16>
      %cst_14 = arith.constant dense<0.000000e+00> : vector<256x128xf32>
      %15 = tpu.matmul %13, %14, %cst_14 {dimension_numbers = #tpu.dot_dimension_numbers<[1], [0], [0], [1], [0, 0, 1, 1], [], []>} : vector<256x128xbf16>, vector<128x128xbf16>, vector<256x128xf32> -> vector<256x128xf32>
      %c0_15 = arith.constant 0 : index
      %c0_16 = arith.constant 0 : index
      %16 = vector.load %arg5[%c0_15, %c0_16] : memref<1x128xf32, #tpu.memory_space<vmem>>, vector<1x128xf32>
      %17 = vector.broadcast %16 : vector<1x128xf32> to vector<256x128xf32>
      %18 = arith.addf %15, %17 : vector<256x128xf32>
      %cst_17 = arith.constant 0.000000e+00 : f32
      %19 = vector.broadcast %cst_17 : f32 to vector<256x128xf32>
      %20 = arith.maximumf %18, %19 : vector<256x128xf32>
      %21 = arith.truncf %20 : vector<256x128xf32> to vector<256x128xbf16>
      %c0_18 = arith.constant 0 : index
      %c0_19 = arith.constant 0 : index
      %22 = vector.load %arg6[%c0_18, %c0_19] : memref<128x128xbf16, #tpu.memory_space<vmem>>, vector<128x128xbf16>
      %cst_20 = arith.constant dense<0.000000e+00> : vector<256x128xf32>
      %23 = tpu.matmul %21, %22, %cst_20 {dimension_numbers = #tpu.dot_dimension_numbers<[1], [0], [0], [1], [0, 0, 1, 1], [], []>} : vector<256x128xbf16>, vector<128x128xbf16>, vector<256x128xf32> -> vector<256x128xf32>
      %c0_21 = arith.constant 0 : index
      %c0_22 = arith.constant 0 : index
      %24 = vector.load %arg7[%c0_21, %c0_22] : memref<1x128xf32, #tpu.memory_space<vmem>>, vector<1x128xf32>
      %25 = vector.broadcast %24 : vector<1x128xf32> to vector<256x128xf32>
      %26 = arith.addf %23, %25 : vector<256x128xf32>
      %cst_23 = arith.constant 0.000000e+00 : f32
      %27 = vector.broadcast %cst_23 : f32 to vector<256x128xf32>
      %28 = arith.maximumf %26, %27 : vector<256x128xf32>
      %29 = arith.truncf %28 : vector<256x128xf32> to vector<256x128xbf16>
      %c0_24 = arith.constant 0 : index
      %c0_25 = arith.constant 0 : index
      %30 = vector.load %arg8[%c0_24, %c0_25] : memref<256x128xbf16, #tpu.memory_space<vmem>>, vector<256x128xbf16>
      tpu.vector_store %arg8[%c0_24, %c0_25], %29 {strides = array<i32>} : memref<256x128xbf16, #tpu.memory_space<vmem>>, vector<256x128xbf16>,
    } else {
    }
    return
  }
  func.func @transform_0(%arg0: i32, %arg1: i32) -> (i32, i32) {
    %c0_i32 = arith.constant 0 : i32
    %c0_i32_0 = arith.constant 0 : i32
    return %arg1, %c0_i32 : i32, i32
  }
  func.func @transform_1(%arg0: i32, %arg1: i32) -> (i32, i32) {
    %c0_i32 = arith.constant 0 : i32
    return %arg0, %arg1 : i32, i32
  }
  func.func @transform_2(%arg0: i32, %arg1: i32) -> (i32, i32) {
    %c0_i32 = arith.constant 0 : i32
    %c0_i32_0 = arith.constant 0 : i32
    %c0_i32_1 = arith.constant 0 : i32
    return %c0_i32, %c0_i32_0 : i32, i32
  }
  func.func @transform_3(%arg0: i32, %arg1: i32) -> (i32, i32) {
    %c0_i32 = arith.constant 0 : i32
    %c0_i32_0 = arith.constant 0 : i32
    %c0_i32_1 = arith.constant 0 : i32
    return %c0_i32, %c0_i32_0 : i32, i32
  }
  func.func @transform_4(%arg0: i32, %arg1: i32) -> (i32, i32) {
    %c0_i32 = arith.constant 0 : i32
    %c0_i32_0 = arith.constant 0 : i32
    %c0_i32_1 = arith.constant 0 : i32
    return %c0_i32, %c0_i32_0 : i32, i32
  }
  func.func @transform_5(%arg0: i32, %arg1: i32) -> (i32, i32) {
    %c0_i32 = arith.constant 0 : i32
    %c0_i32_0 = arith.constant 0 : i32
    %c0_i32_1 = arith.constant 0 : i32
    return %c0_i32, %c0_i32_0 : i32, i32
  }
  func.func @transform_6(%arg0: i32, %arg1: i32) -> (i32, i32) {
    %c1_i32 = arith.constant 1 : i32
    %c0_i32 = arith.constant 0 : i32
    return %arg0, %c1_i32 : i32, i32
  }
}

module attributes {stable_mosaic.version = 11 : i64} {
  func.func @_gin_conv_kernel(%arg0: i32, %arg1: i32, %arg2: memref<256x256xbf16, #tpu.memory_space<vmem>>, %arg3: memref<256x256xbf16, #tpu.memory_space<vmem>>, %arg4: memref<256x128xbf16, #tpu.memory_space<vmem>>, %arg5: memref<1x128xf32, #tpu.memory_space<vmem>>, %arg6: memref<128x128xbf16, #tpu.memory_space<vmem>>, %arg7: memref<1x128xf32, #tpu.memory_space<vmem>>, %arg8: memref<256x128xbf16, #tpu.memory_space<vmem>>, %arg9: memref<256x256xf32, #tpu.memory_space<vmem>>) attributes {dimension_semantics = [#tpu.dimension_semantics<parallel>, #tpu.dimension_semantics<arbitrary>], iteration_bounds = array<i64: 1, 1>, scalar_prefetch = 0 : i64, scratch_operands = 1 : i64, tpu.core_type = #tpu.core_type<tc>, window_params = [{transform_indices = @transform_0, window_bounds = array<i64: 256, 256>}, {transform_indices = @transform_1, window_bounds = array<i64: 256, 256>}, {pipeline_mode = #tpu.pipeline_mode<synchronous>, transform_indices = @transform_2, window_bounds = array<i64: 256, 128>}, {pipeline_mode = #tpu.pipeline_mode<synchronous>, transform_indices = @transform_3, window_bounds = array<i64: 1, 128>}, {pipeline_mode = #tpu.pipeline_mode<synchronous>, transform_indices = @transform_4, window_bounds = array<i64: 128, 128>}, {pipeline_mode = #tpu.pipeline_mode<synchronous>, transform_indices = @transform_5, window_bounds = array<i64: 1, 128>}, {transform_indices = @transform_6, window_bounds = array<i64: 256, 128>}]} {
    %c0_i32 = arith.constant 0 : i32
    %0 = arith.cmpi eq, %arg1, %c0_i32 : i32
    %1 = arith.extui %0 : i1 to i32
    %c0_i32_0 = arith.constant 0 : i32
    %2 = arith.cmpi ne, %1, %c0_i32_0 : i32
    scf.if %2 {
      %cst_10 = arith.constant 0.000000e+00 : f32
      %12 = vector.broadcast %cst_10 : f32 to vector<256x256xf32>
      %c0_11 = arith.constant 0 : index
      %c0_12 = arith.constant 0 : index
      %13 = vector.load %arg9[%c0_11, %c0_12] : memref<256x256xf32, #tpu.memory_space<vmem>>, vector<256x256xf32>
      tpu.vector_store %arg9[%c0_11, %c0_12], %12 {strides = array<i32>} : memref<256x256xf32, #tpu.memory_space<vmem>>, vector<256x256xf32>,
    } else {
    }
    %c0 = arith.constant 0 : index
    %c0_1 = arith.constant 0 : index
    %3 = vector.load %arg9[%c0, %c0_1] : memref<256x256xf32, #tpu.memory_space<vmem>>, vector<256x256xf32>
    %c0_2 = arith.constant 0 : index
    %c0_3 = arith.constant 0 : index
    %4 = vector.load %arg3[%c0_2, %c0_3] : memref<256x256xbf16, #tpu.memory_space<vmem>>, vector<256x256xbf16>
    %c0_4 = arith.constant 0 : index
    %c0_5 = arith.constant 0 : index
    %5 = vector.load %arg2[%c0_4, %c0_5] : memref<256x256xbf16, #tpu.memory_space<vmem>>, vector<256x256xbf16>
    %cst = arith.constant dense<0.000000e+00> : vector<256x256xf32>
    %6 = tpu.matmul %4, %5, %cst {dimension_numbers = #tpu.dot_dimension_numbers<[1], [0], [0], [1], [0, 0, 1, 1], [], []>} : vector<256x256xbf16>, vector<256x256xbf16>, vector<256x256xf32> -> vector<256x256xf32>
    %7 = arith.addf %3, %6 : vector<256x256xf32>
    %c0_6 = arith.constant 0 : index
    %c0_7 = arith.constant 0 : index
    %8 = vector.load %arg9[%c0_6, %c0_7] : memref<256x256xf32, #tpu.memory_space<vmem>>, vector<256x256xf32>
    tpu.vector_store %arg9[%c0_6, %c0_7], %7 {strides = array<i32>} : memref<256x256xf32, #tpu.memory_space<vmem>>, vector<256x256xf32>,
    %c0_i32_8 = arith.constant 0 : i32
    %9 = arith.cmpi eq, %arg1, %c0_i32_8 : i32
    %10 = arith.extui %9 : i1 to i32
    %c0_i32_9 = arith.constant 0 : i32
    %11 = arith.cmpi ne, %10, %c0_i32_9 : i32
    scf.if %11 {
      %c0_10 = arith.constant 0 : index
      %c0_11 = arith.constant 0 : index
      %12 = vector.load %arg9[%c0_10, %c0_11] : memref<256x256xf32, #tpu.memory_space<vmem>>, vector<256x256xf32>
      %13 = arith.truncf %12 : vector<256x256xf32> to vector<256x256xbf16>
      %c0_12 = arith.constant 0 : index
      %c0_13 = arith.constant 0 : index
      %14 = vector.load %arg4[%c0_12, %c0_13] : memref<256x128xbf16, #tpu.memory_space<vmem>>, vector<256x128xbf16>
      %cst_14 = arith.constant dense<0.000000e+00> : vector<256x128xf32>
      %15 = tpu.matmul %13, %14, %cst_14 {dimension_numbers = #tpu.dot_dimension_numbers<[1], [0], [0], [1], [0, 0, 1, 1], [], []>} : vector<256x256xbf16>, vector<256x128xbf16>, vector<256x128xf32> -> vector<256x128xf32>
      %c0_15 = arith.constant 0 : index
      %c0_16 = arith.constant 0 : index
      %16 = vector.load %arg5[%c0_15, %c0_16] : memref<1x128xf32, #tpu.memory_space<vmem>>, vector<1x128xf32>
      %17 = vector.broadcast %16 : vector<1x128xf32> to vector<256x128xf32>
      %18 = arith.addf %15, %17 : vector<256x128xf32>
      %cst_17 = arith.constant 0.000000e+00 : f32
      %19 = vector.broadcast %cst_17 : f32 to vector<256x128xf32>
      %20 = arith.maximumf %18, %19 : vector<256x128xf32>
      %21 = arith.truncf %20 : vector<256x128xf32> to vector<256x128xbf16>
      %c0_18 = arith.constant 0 : index
      %c0_19 = arith.constant 0 : index
      %22 = vector.load %arg6[%c0_18, %c0_19] : memref<128x128xbf16, #tpu.memory_space<vmem>>, vector<128x128xbf16>
      %cst_20 = arith.constant dense<0.000000e+00> : vector<256x128xf32>
      %23 = tpu.matmul %21, %22, %cst_20 {dimension_numbers = #tpu.dot_dimension_numbers<[1], [0], [0], [1], [0, 0, 1, 1], [], []>} : vector<256x128xbf16>, vector<128x128xbf16>, vector<256x128xf32> -> vector<256x128xf32>
      %c0_21 = arith.constant 0 : index
      %c0_22 = arith.constant 0 : index
      %24 = vector.load %arg7[%c0_21, %c0_22] : memref<1x128xf32, #tpu.memory_space<vmem>>, vector<1x128xf32>
      %25 = vector.broadcast %24 : vector<1x128xf32> to vector<256x128xf32>
      %26 = arith.addf %23, %25 : vector<256x128xf32>
      %cst_23 = arith.constant 0.000000e+00 : f32
      %27 = vector.broadcast %cst_23 : f32 to vector<256x128xf32>
      %28 = arith.maximumf %26, %27 : vector<256x128xf32>
      %29 = arith.truncf %28 : vector<256x128xf32> to vector<256x128xbf16>
      %c0_24 = arith.constant 0 : index
      %c0_25 = arith.constant 0 : index
      %30 = vector.load %arg8[%c0_24, %c0_25] : memref<256x128xbf16, #tpu.memory_space<vmem>>, vector<256x128xbf16>
      tpu.vector_store %arg8[%c0_24, %c0_25], %29 {strides = array<i32>} : memref<256x128xbf16, #tpu.memory_space<vmem>>, vector<256x128xbf16>,
    } else {
    }
    return
  }
  func.func @transform_0(%arg0: i32, %arg1: i32) -> (i32, i32) {
    %c0_i32 = arith.constant 0 : i32
    %c0_i32_0 = arith.constant 0 : i32
    return %arg1, %c0_i32 : i32, i32
  }
  func.func @transform_1(%arg0: i32, %arg1: i32) -> (i32, i32) {
    %c0_i32 = arith.constant 0 : i32
    return %arg0, %arg1 : i32, i32
  }
  func.func @transform_2(%arg0: i32, %arg1: i32) -> (i32, i32) {
    %c0_i32 = arith.constant 0 : i32
    %c0_i32_0 = arith.constant 0 : i32
    %c0_i32_1 = arith.constant 0 : i32
    return %c0_i32, %c0_i32_0 : i32, i32
  }
  func.func @transform_3(%arg0: i32, %arg1: i32) -> (i32, i32) {
    %c0_i32 = arith.constant 0 : i32
    %c0_i32_0 = arith.constant 0 : i32
    %c0_i32_1 = arith.constant 0 : i32
    return %c0_i32, %c0_i32_0 : i32, i32
  }
  func.func @transform_4(%arg0: i32, %arg1: i32) -> (i32, i32) {
    %c0_i32 = arith.constant 0 : i32
    %c0_i32_0 = arith.constant 0 : i32
    %c0_i32_1 = arith.constant 0 : i32
    return %c0_i32, %c0_i32_0 : i32, i32
  }
  func.func @transform_5(%arg0: i32, %arg1: i32) -> (i32, i32) {
    %c0_i32 = arith.constant 0 : i32
    %c0_i32_0 = arith.constant 0 : i32
    %c0_i32_1 = arith.constant 0 : i32
    return %c0_i32, %c0_i32_0 : i32, i32
  }
  func.func @transform_6(%arg0: i32, %arg1: i32) -> (i32, i32) {
    %c2_i32 = arith.constant 2 : i32
    %c0_i32 = arith.constant 0 : i32
    return %arg0, %c2_i32 : i32, i32
  }
}

module attributes {stable_mosaic.version = 11 : i64} {
  func.func @_pool_post_kernel(%arg0: i32, %arg1: memref<8x256xbf16, #tpu.memory_space<vmem>>, %arg2: memref<256x384xbf16, #tpu.memory_space<vmem>>, %arg3: memref<384x128xbf16, #tpu.memory_space<vmem>>, %arg4: memref<1x128xf32, #tpu.memory_space<vmem>>, %arg5: memref<128x128xbf16, #tpu.memory_space<vmem>>, %arg6: memref<1x128xf32, #tpu.memory_space<vmem>>, %arg7: memref<128x256xbf16, #tpu.memory_space<vmem>>, %arg8: memref<1x256xf32, #tpu.memory_space<vmem>>, %arg9: memref<256x128xbf16, #tpu.memory_space<vmem>>, %arg10: memref<1x128xf32, #tpu.memory_space<vmem>>, %arg11: memref<8x128xf32, #tpu.memory_space<vmem>>, %arg12: memref<8x384xf32, #tpu.memory_space<vmem>>) attributes {dimension_semantics = [#tpu.dimension_semantics<arbitrary>], iteration_bounds = array<i64: 1>, scalar_prefetch = 0 : i64, scratch_operands = 1 : i64, tpu.core_type = #tpu.core_type<tc>, window_params = [{transform_indices = @transform_0, window_bounds = array<i64: 8, 256>}, {transform_indices = @transform_1, window_bounds = array<i64: 256, 384>}, {pipeline_mode = #tpu.pipeline_mode<synchronous>, transform_indices = @transform_2, window_bounds = array<i64: 384, 128>}, {pipeline_mode = #tpu.pipeline_mode<synchronous>, transform_indices = @transform_3, window_bounds = array<i64: 1, 128>}, {pipeline_mode = #tpu.pipeline_mode<synchronous>, transform_indices = @transform_4, window_bounds = array<i64: 128, 128>}, {pipeline_mode = #tpu.pipeline_mode<synchronous>, transform_indices = @transform_5, window_bounds = array<i64: 1, 128>}, {pipeline_mode = #tpu.pipeline_mode<synchronous>, transform_indices = @transform_6, window_bounds = array<i64: 128, 256>}, {pipeline_mode = #tpu.pipeline_mode<synchronous>, transform_indices = @transform_7, window_bounds = array<i64: 1, 256>}, {pipeline_mode = #tpu.pipeline_mode<synchronous>, transform_indices = @transform_8, window_bounds = array<i64: 256, 128>}, {pipeline_mode = #tpu.pipeline_mode<synchronous>, transform_indices = @transform_9, window_bounds = array<i64: 1, 128>}, {pipeline_mode = #tpu.pipeline_mode<synchronous>, transform_indices = @transform_10, window_bounds = array<i64: 8, 128>}]} {
    %c0_i32 = arith.constant 0 : i32
    %0 = arith.cmpi eq, %arg0, %c0_i32 : i32
    %1 = arith.extui %0 : i1 to i32
    %c0_i32_0 = arith.constant 0 : i32
    %2 = arith.cmpi ne, %1, %c0_i32_0 : i32
    scf.if %2 {
      %cst_10 = arith.constant 0.000000e+00 : f32
      %12 = vector.broadcast %cst_10 : f32 to vector<8x384xf32>
      %c0_11 = arith.constant 0 : index
      %c0_12 = arith.constant 0 : index
      %13 = vector.load %arg12[%c0_11, %c0_12] : memref<8x384xf32, #tpu.memory_space<vmem>>, vector<8x384xf32>
      tpu.vector_store %arg12[%c0_11, %c0_12], %12 {strides = array<i32>} : memref<8x384xf32, #tpu.memory_space<vmem>>, vector<8x384xf32>,
    } else {
    }
    %c0 = arith.constant 0 : index
    %c0_1 = arith.constant 0 : index
    %3 = vector.load %arg12[%c0, %c0_1] : memref<8x384xf32, #tpu.memory_space<vmem>>, vector<8x384xf32>
    %c0_2 = arith.constant 0 : index
    %c0_3 = arith.constant 0 : index
    %4 = vector.load %arg1[%c0_2, %c0_3] : memref<8x256xbf16, #tpu.memory_space<vmem>>, vector<8x256xbf16>
    %c0_4 = arith.constant 0 : index
    %c0_5 = arith.constant 0 : index
    %5 = vector.load %arg2[%c0_4, %c0_5] : memref<256x384xbf16, #tpu.memory_space<vmem>>, vector<256x384xbf16>
    %cst = arith.constant dense<0.000000e+00> : vector<8x384xf32>
    %6 = tpu.matmul %4, %5, %cst {dimension_numbers = #tpu.dot_dimension_numbers<[1], [0], [0], [1], [0, 0, 1, 1], [], []>} : vector<8x256xbf16>, vector<256x384xbf16>, vector<8x384xf32> -> vector<8x384xf32>
    %7 = arith.addf %3, %6 : vector<8x384xf32>
    %c0_6 = arith.constant 0 : index
    %c0_7 = arith.constant 0 : index
    %8 = vector.load %arg12[%c0_6, %c0_7] : memref<8x384xf32, #tpu.memory_space<vmem>>, vector<8x384xf32>
    tpu.vector_store %arg12[%c0_6, %c0_7], %7 {strides = array<i32>} : memref<8x384xf32, #tpu.memory_space<vmem>>, vector<8x384xf32>,
    %c0_i32_8 = arith.constant 0 : i32
    %9 = arith.cmpi eq, %arg0, %c0_i32_8 : i32
    %10 = arith.extui %9 : i1 to i32
    %c0_i32_9 = arith.constant 0 : i32
    %11 = arith.cmpi ne, %10, %c0_i32_9 : i32
    scf.if %11 {
      %c0_10 = arith.constant 0 : index
      %c0_11 = arith.constant 0 : index
      %12 = vector.load %arg12[%c0_10, %c0_11] : memref<8x384xf32, #tpu.memory_space<vmem>>, vector<8x384xf32>
      %13 = arith.truncf %12 : vector<8x384xf32> to vector<8x384xbf16>
      %c0_12 = arith.constant 0 : index
      %c0_13 = arith.constant 0 : index
      %14 = vector.load %arg3[%c0_12, %c0_13] : memref<384x128xbf16, #tpu.memory_space<vmem>>, vector<384x128xbf16>
      %cst_14 = arith.constant dense<0.000000e+00> : vector<8x128xf32>
      %15 = tpu.matmul %13, %14, %cst_14 {dimension_numbers = #tpu.dot_dimension_numbers<[1], [0], [0], [1], [0, 0, 1, 1], [], []>} : vector<8x384xbf16>, vector<384x128xbf16>, vector<8x128xf32> -> vector<8x128xf32>
      %c0_15 = arith.constant 0 : index
      %c0_16 = arith.constant 0 : index
      %16 = vector.load %arg4[%c0_15, %c0_16] : memref<1x128xf32, #tpu.memory_space<vmem>>, vector<1x128xf32>
      %17 = vector.broadcast %16 : vector<1x128xf32> to vector<8x128xf32>
      %18 = arith.addf %15, %17 : vector<8x128xf32>
      %cst_17 = arith.constant 0.000000e+00 : f32
      %19 = vector.broadcast %cst_17 : f32 to vector<8x128xf32>
      %20 = arith.cmpf ogt, %18, %19 : vector<8x128xf32>
      %cst_18 = arith.constant 1.000000e-01 : f32
      %21 = vector.broadcast %cst_18 : f32 to vector<8x128xf32>
      %22 = arith.mulf %21, %18 : vector<8x128xf32>
      %23 = arith.select %20, %18, %22 : vector<8x128xi1>, vector<8x128xf32>
      %24 = arith.truncf %23 : vector<8x128xf32> to vector<8x128xbf16>
      %c0_19 = arith.constant 0 : index
      %c0_20 = arith.constant 0 : index
      %25 = vector.load %arg5[%c0_19, %c0_20] : memref<128x128xbf16, #tpu.memory_space<vmem>>, vector<128x128xbf16>
      %cst_21 = arith.constant dense<0.000000e+00> : vector<8x128xf32>
      %26 = tpu.matmul %24, %25, %cst_21 {dimension_numbers = #tpu.dot_dimension_numbers<[1], [0], [0], [1], [0, 0, 1, 1], [], []>} : vector<8x128xbf16>, vector<128x128xbf16>, vector<8x128xf32> -> vector<8x128xf32>
      %c0_22 = arith.constant 0 : index
      %c0_23 = arith.constant 0 : index
      %27 = vector.load %arg6[%c0_22, %c0_23] : memref<1x128xf32, #tpu.memory_space<vmem>>, vector<1x128xf32>
      %28 = vector.broadcast %27 : vector<1x128xf32> to vector<8x128xf32>
      %29 = arith.addf %26, %28 : vector<8x128xf32>
      %cst_24 = arith.constant 0.000000e+00 : f32
      %30 = vector.broadcast %cst_24 : f32 to vector<8x128xf32>
      %31 = arith.maximumf %29, %30 : vector<8x128xf32>
      %32 = arith.truncf %31 : vector<8x128xf32> to vector<8x128xbf16>
      %c0_25 = arith.constant 0 : index
      %c0_26 = arith.constant 0 : index
      %33 = vector.load %arg7[%c0_25, %c0_26] : memref<128x256xbf16, #tpu.memory_space<vmem>>, vector<128x256xbf16>
      %cst_27 = arith.constant dense<0.000000e+00> : vector<8x256xf32>
      %34 = tpu.matmul %32, %33, %cst_27 {dimension_numbers = #tpu.dot_dimension_numbers<[1], [0], [0], [1], [0, 0, 1, 1], [], []>} : vector<8x128xbf16>, vector<128x256xbf16>, vector<8x256xf32> -> vector<8x256xf32>
      %c0_28 = arith.constant 0 : index
      %c0_29 = arith.constant 0 : index
      %35 = vector.load %arg8[%c0_28, %c0_29] : memref<1x256xf32, #tpu.memory_space<vmem>>, vector<1x256xf32>
      %36 = vector.broadcast %35 : vector<1x256xf32> to vector<8x256xf32>
      %37 = arith.addf %34, %36 : vector<8x256xf32>
      %cst_30 = arith.constant 0.000000e+00 : f32
      %38 = vector.broadcast %cst_30 : f32 to vector<8x256xf32>
      %39 = arith.maximumf %37, %38 : vector<8x256xf32>
      %40 = arith.truncf %39 : vector<8x256xf32> to vector<8x256xbf16>
      %c0_31 = arith.constant 0 : index
      %c0_32 = arith.constant 0 : index
      %41 = vector.load %arg9[%c0_31, %c0_32] : memref<256x128xbf16, #tpu.memory_space<vmem>>, vector<256x128xbf16>
      %cst_33 = arith.constant dense<0.000000e+00> : vector<8x128xf32>
      %42 = tpu.matmul %40, %41, %cst_33 {dimension_numbers = #tpu.dot_dimension_numbers<[1], [0], [0], [1], [0, 0, 1, 1], [], []>} : vector<8x256xbf16>, vector<256x128xbf16>, vector<8x128xf32> -> vector<8x128xf32>
      %c0_34 = arith.constant 0 : index
      %c0_35 = arith.constant 0 : index
      %43 = vector.load %arg10[%c0_34, %c0_35] : memref<1x128xf32, #tpu.memory_space<vmem>>, vector<1x128xf32>
      %44 = vector.broadcast %43 : vector<1x128xf32> to vector<8x128xf32>
      %45 = arith.addf %42, %44 : vector<8x128xf32>
      %c0_36 = arith.constant 0 : index
      %c0_37 = arith.constant 0 : index
      %46 = vector.load %arg11[%c0_36, %c0_37] : memref<8x128xf32, #tpu.memory_space<vmem>>, vector<8x128xf32>
      tpu.vector_store %arg11[%c0_36, %c0_37], %45 {strides = array<i32>} : memref<8x128xf32, #tpu.memory_space<vmem>>, vector<8x128xf32>,
    } else {
    }
    return
  }
  func.func @transform_0(%arg0: i32) -> (i32, i32) {
    %c0_i32 = arith.constant 0 : i32
    %c0_i32_0 = arith.constant 0 : i32
    return %c0_i32, %arg0 : i32, i32
  }
  func.func @transform_1(%arg0: i32) -> (i32, i32) {
    %c0_i32 = arith.constant 0 : i32
    %c0_i32_0 = arith.constant 0 : i32
    return %arg0, %c0_i32 : i32, i32
  }
  func.func @transform_2(%arg0: i32) -> (i32, i32) {
    %c0_i32 = arith.constant 0 : i32
    %c0_i32_0 = arith.constant 0 : i32
    %c0_i32_1 = arith.constant 0 : i32
    return %c0_i32, %c0_i32_0 : i32, i32
  }
  func.func @transform_3(%arg0: i32) -> (i32, i32) {
    %c0_i32 = arith.constant 0 : i32
    %c0_i32_0 = arith.constant 0 : i32
    %c0_i32_1 = arith.constant 0 : i32
    return %c0_i32, %c0_i32_0 : i32, i32
  }
  func.func @transform_4(%arg0: i32) -> (i32, i32) {
    %c0_i32 = arith.constant 0 : i32
    %c0_i32_0 = arith.constant 0 : i32
    %c0_i32_1 = arith.constant 0 : i32
    return %c0_i32, %c0_i32_0 : i32, i32
  }
  func.func @transform_5(%arg0: i32) -> (i32, i32) {
    %c0_i32 = arith.constant 0 : i32
    %c0_i32_0 = arith.constant 0 : i32
    %c0_i32_1 = arith.constant 0 : i32
    return %c0_i32, %c0_i32_0 : i32, i32
  }
  func.func @transform_6(%arg0: i32) -> (i32, i32) {
    %c0_i32 = arith.constant 0 : i32
    %c0_i32_0 = arith.constant 0 : i32
    %c0_i32_1 = arith.constant 0 : i32
    return %c0_i32, %c0_i32_0 : i32, i32
  }
  func.func @transform_7(%arg0: i32) -> (i32, i32) {
    %c0_i32 = arith.constant 0 : i32
    %c0_i32_0 = arith.constant 0 : i32
    %c0_i32_1 = arith.constant 0 : i32
    return %c0_i32, %c0_i32_0 : i32, i32
  }
  func.func @transform_8(%arg0: i32) -> (i32, i32) {
    %c0_i32 = arith.constant 0 : i32
    %c0_i32_0 = arith.constant 0 : i32
    %c0_i32_1 = arith.constant 0 : i32
    return %c0_i32, %c0_i32_0 : i32, i32
  }
  func.func @transform_9(%arg0: i32) -> (i32, i32) {
    %c0_i32 = arith.constant 0 : i32
    %c0_i32_0 = arith.constant 0 : i32
    %c0_i32_1 = arith.constant 0 : i32
    return %c0_i32, %c0_i32_0 : i32, i32
  }
  func.func @transform_10(%arg0: i32) -> (i32, i32) {
    %c0_i32 = arith.constant 0 : i32
    %c0_i32_0 = arith.constant 0 : i32
    %c0_i32_1 = arith.constant 0 : i32
    return %c0_i32, %c0_i32_0 : i32, i32
  }
}

</mosaic_0001>

<llo_original>
// kernel: gnn_encoder_forward.4
$region0: #{gnn_encoder_forward.4}
  #allocation0 [shape = 'u32[]', space=smem, size = 0x4, offset = 0x4, fixed_abs, tag = 'smem constant byte address 0x4 - core index']
  #allocation1 [shape = 'u32[144,128]{1,0:T(1,128)}', space=vmem, size = 0x12000, scoped, tag = 'internal scratch']
  %s0 = inlined_call_operand.vmem [shape: bf16[256,128], index: 0, kind: input, shape index: {}]
  %s1 = inlined_call_operand.vmem [shape: bf16[128,128], index: 1, kind: input, shape index: {}]
  %s2 = inlined_call_operand.vmem [shape: f32[1,128], index: 2, kind: input, shape index: {}]
  %s3 = inlined_call_operand.vmem [shape: bf16[256,384], index: 3, kind: output, shape index: {}]
  %s4 = sld [smem:[#allocation0]]
  $region22: #{gnn_encoder_forward.4} parent=0
    _
  %s6 = ssub.s32 1, %s4
  %s7 = scalar_select 0, %s6, %s4
  // Predicated region
  $region2: #{gnn_encoder_forward.4} parent=0 // pred_check
    _
  $region3: #{gnn_encoder_forward.4} parent=0 // pred_check_branch
    %9 = sbr.rel (0) target = $region5
  $region4: #{gnn_encoder_forward.4} parent=0 // pred_region
    _
  $region5: #{gnn_encoder_forward.4} parent=0 // pred_fallthru
    _
  // Predicated region
  $region6: #{gnn_encoder_forward.4} parent=0 // pred_check
    _
  $region7: #{gnn_encoder_forward.4} parent=0 // pred_check_branch
    %11 = sbr.rel (0) target = $region9
  $region8: #{gnn_encoder_forward.4} parent=0 // pred_region
    _
  $region9: #{gnn_encoder_forward.4} parent=0 // pred_fallthru
    _
  // Predicated region
  $region10: #{gnn_encoder_forward.4} parent=0 // pred_check
    _
  $region11: #{gnn_encoder_forward.4} parent=0 // pred_check_branch
    %13 = sbr.rel (0) target = $region13
  $region12: #{gnn_encoder_forward.4} parent=0 // pred_region
    _
  $region13: #{gnn_encoder_forward.4} parent=0 // pred_fallthru
    _
  %v15 = vld [vmem:[%s0] sm:$0xf]
  %v16 = vld [vmem:[%s0 + $0x4] sm:$0xf]
  %v17 = vld [vmem:[%s0 + $0x8] sm:$0xf]
  %v18 = vld [vmem:[%s0 + $0xc] sm:$0xf]
  %v19 = vld [vmem:[%s0 + $0x10] sm:$0xf]
  %v20 = vld [vmem:[%s0 + $0x14] sm:$0xf]
  %v21 = vld [vmem:[%s0 + $0x18] sm:$0xf]
  %v22 = vld [vmem:[%s0 + $0x1c] sm:$0xf]
  %v23 = vld [vmem:[%s0 + $0x20] sm:$0xf]
  %v24 = vld [vmem:[%s0 + $0x24] sm:$0xf]
  %v25 = vld [vmem:[%s0 + $0x28] sm:$0xf]
  %v26 = vld [vmem:[%s0 + $0x2c] sm:$0xf]
  %v27 = vld [vmem:[%s0 + $0x30] sm:$0xf]
  %v28 = vld [vmem:[%s0 + $0x34] sm:$0xf]
  %v29 = vld [vmem:[%s0 + $0x38] sm:$0xf]
  %v30 = vld [vmem:[%s0 + $0x3c] sm:$0xf]
  %v31 = vld [vmem:[%s0 + $0x40] sm:$0xf]
  %v32 = vld [vmem:[%s0 + $0x44] sm:$0xf]
  %v33 = vld [vmem:[%s0 + $0x48] sm:$0xf]
  %v34 = vld [vmem:[%s0 + $0x4c] sm:$0xf]
  %v35 = vld [vmem:[%s0 + $0x50] sm:$0xf]
  %v36 = vld [vmem:[%s0 + $0x54] sm:$0xf]
  %v37 = vld [vmem:[%s0 + $0x58] sm:$0xf]
  %v38 = vld [vmem:[%s0 + $0x5c] sm:$0xf]
  %v39 = vld [vmem:[%s0 + $0x60] sm:$0xf]
  %v40 = vld [vmem:[%s0 + $0x64] sm:$0xf]
  %v41 = vld [vmem:[%s0 + $0x68] sm:$0xf]
  %v42 = vld [vmem:[%s0 + $0x6c] sm:$0xf]
  %v43 = vld [vmem:[%s0 + $0x70] sm:$0xf]
  %v44 = vld [vmem:[%s0 + $0x74] sm:$0xf]
  %v45 = vld [vmem:[%s0 + $0x78] sm:$0xf]
  %v46 = vld [vmem:[%s0 + $0x7c] sm:$0xf]
  %v47 = vld [vmem:[%s1] sm:$0xf]
  %v48 = vld [vmem:[%s1 + $0x4] sm:$0xf]
  %v49 = vld [vmem:[%s1 + $0x8] sm:$0xf]
  %v50 = vld [vmem:[%s1 + $0xc] sm:$0xf]
  %v51 = vld [vmem:[%s1 + $0x10] sm:$0xf]
  %v52 = vld [vmem:[%s1 + $0x14] sm:$0xf]
  %v53 = vld [vmem:[%s1 + $0x18] sm:$0xf]
  %v54 = vld [vmem:[%s1 + $0x1c] sm:$0xf]
  %v55 = vld [vmem:[%s1 + $0x20] sm:$0xf]
  %v56 = vld [vmem:[%s1 + $0x24] sm:$0xf]
  %v57 = vld [vmem:[%s1 + $0x28] sm:$0xf]
  %v58 = vld [vmem:[%s1 + $0x2c] sm:$0xf]
  %v59 = vld [vmem:[%s1 + $0x30] sm:$0xf]
  %v60 = vld [vmem:[%s1 + $0x34] sm:$0xf]
  %v61 = vld [vmem:[%s1 + $0x38] sm:$0xf]
  %v62 = vld [vmem:[%s1 + $0x3c] sm:$0xf]
  %v63 = vld [vmem:[%s2] sm:$0x1]
  %v65 = vlaneseq
  %v66 = vshrl.u32 %v65, 7
  %v67 = vsub.s32 0, %v66
  %v68 = vrot.slane %v63, %v67
  %v102 = vunpack.c.l.b16 %v15
  %v103 = vunpack.c.l.b16 %v16
  %v104 = vunpack.c.l.b16 %v17
  %v105 = vunpack.c.l.b16 %v18
  %v106 = vunpack.c.l.b16 %v19
  %v107 = vunpack.c.l.b16 %v20
  %v108 = vunpack.c.l.b16 %v21
  %v109 = vunpack.c.l.b16 %v22
  %v110 = vunpack.c.l.b16 %v23
  %v111 = vunpack.c.l.b16 %v24
  %v112 = vunpack.c.l.b16 %v25
  %v113 = vunpack.c.l.b16 %v26
  %v114 = vunpack.c.l.b16 %v27
  %v115 = vunpack.c.l.b16 %v28
  %v116 = vunpack.c.l.b16 %v29
  %v117 = vunpack.c.l.b16 %v30
  %v118 = vunpack.c.l.b16 %v31
  %v119 = vunpack.c.l.b16 %v32
  %v120 = vunpack.c.l.b16 %v33
  %v121 = vunpack.c.l.b16 %v34
  %v122 = vunpack.c.l.b16 %v35
  %v123 = vunpack.c.l.b16 %v36
  %v124 = vunpack.c.l.b16 %v37
  %v125 = vunpack.c.l.b16 %v38
  %v126 = vunpack.c.l.b16 %v39
  %v127 = vunpack.c.l.b16 %v40
  %v128 = vunpack.c.l.b16 %v41
  %v129 = vunpack.c.l.b16 %v42
  %v130 = vunpack.c.l.b16 %v43
  %v131 = vunpack.c.l.b16 %v44
  %v132 = vunpack.c.l.b16 %v45
  %v133 = vunpack.c.l.b16 %v46
  %v134 = vpack.c.b16 %v103, %v102
  %v135 = vpack.c.b16 %v105, %v104
  %v136 = vpack.c.b16 %v107, %v106
  %v137 = vpack.c.b16 %v109, %v108
  %v138 = vpack.c.b16 %v111, %v110
  %v139 = vpack.c.b16 %v113, %v112
  %v140 = vpack.c.b16 %v115, %v114
  %v141 = vpack.c.b16 %v117, %v116
  %v142 = vpack.c.b16 %v119, %v118
  %v143 = vpack.c.b16 %v121, %v120
  %v144 = vpack.c.b16 %v123, %v122
  %v145 = vpack.c.b16 %v125, %v124
  %v146 = vpack.c.b16 %v127, %v126
  %v147 = vpack.c.b16 %v129, %v128
  %v148 = vpack.c.b16 %v131, %v130
  %v149 = vpack.c.b16 %v133, %v132
  %v182 = vunpack.c.l.b16 %v47
  %v183 = vunpack.c.l.b16 %v48
  %v184 = vunpack.c.l.b16 %v49
  %v185 = vunpack.c.l.b16 %v50
  %v186 = vunpack.c.l.b16 %v51
  %v187 = vunpack.c.l.b16 %v52
  %v188 = vunpack.c.l.b16 %v53
  %v189 = vunpack.c.l.b16 %v54
  %v190 = vunpack.c.l.b16 %v55
  %v191 = vunpack.c.l.b16 %v56
  %v192 = vunpack.c.l.b16 %v57
  %v193 = vunpack.c.l.b16 %v58
  %v194 = vunpack.c.l.b16 %v59
  %v195 = vunpack.c.l.b16 %v60
  %v196 = vunpack.c.l.b16 %v61
  %v197 = vunpack.c.l.b16 %v62
  %v198 = vpack.c.b16 %v183, %v182
  %v199 = vpack.c.b16 %v185, %v184
  %v200 = vpack.c.b16 %v187, %v186
  %v201 = vpack.c.b16 %v189, %v188
  %v202 = vpack.c.b16 %v191, %v190
  %v203 = vpack.c.b16 %v193, %v192
  %v204 = vpack.c.b16 %v195, %v194
  %v205 = vpack.c.b16 %v197, %v196
  %214 = vmatprep.subr.bf16.mxu0 0
  %215 = vmatpush1.bf16.msra.mxu0 %v198
  %216 = vmatprep.subr.bf16.mxu0 0
  %217 = vmatpush1.bf16.msra.mxu0 %v199
  %218 = vmatprep.subr.bf16.mxu0 0
  %219 = vmatpush1.bf16.msra.mxu0 %v200
  %220 = vmatprep.subr.bf16.mxu0 0
  %221 = vmatpush1.bf16.msra.mxu0 %v201
  %222 = vmatprep.subr.bf16.mxu0 0
  %223 = vmatpush1.bf16.msra.mxu0 %v202
  %224 = vmatprep.subr.bf16.mxu0 0
  %225 = vmatpush1.bf16.msra.mxu0 %v203
  %226 = vmatprep.subr.bf16.mxu0 0
  %227 = vmatpush1.bf16.msra.mxu0 %v204
  %228 = vmatprep.subr.bf16.mxu0 0
  %229 = vmatpush1.bf16.msra.mxu0 %v205
  %230 = vmatprep.subr.bf16.mxu0 0
  %231 = vmatpush1.bf16.msra.mxu0 0
  %232 = vmatprep.subr.bf16.mxu0 0
  %233 = vmatpush1.bf16.msra.mxu0 0
  %234 = vmatprep.subr.bf16.mxu0 0
  %235 = vmatpush1.bf16.msra.mxu0 0
  %236 = vmatprep.subr.bf16.mxu0 0
  %237 = vmatpush1.bf16.msra.mxu0 0
  %238 = vmatprep.subr.bf16.mxu0 0
  %239 = vmatpush1.bf16.msra.mxu0 0
  %240 = vmatprep.subr.bf16.mxu0 0
  %241 = vmatpush1.bf16.msra.mxu0 0
  %242 = vmatprep.subr.bf16.mxu0 0
  %243 = vmatpush1.bf16.msra.mxu0 0
  %244 = vmatprep.subr.bf16.mxu0 0
  %245 = vmatpush1.bf16.msra.mxu0 0
  %246 = vmatprep.mubr.bf16.mxu0 0
  %247 = vmatmul.mubr.bf16.gmra.mrb[0].mxu0 %v134
  %v248 = vpop.f32.mrb[0].mxu0
  %v249 = vadd.f32 %v68, %v248
  %v250 = vpop.f32.mrb[0].mxu0
  %v251 = vpop.f32.mrb[0].mxu0
  %v252 = vadd.f32 %v68, %v251
  %v253 = vpop.f32.mrb[0].mxu0
  %254 = vmatprep.mubr.bf16.mxu0 0
  %255 = vmatmul.mubr.bf16.gmra.mrb[0].mxu0 %v135
  %v256 = vpop.f32.mrb[0].mxu0
  %v257 = vadd.f32 %v68, %v256
  %v258 = vpop.f32.mrb[0].mxu0
  %v259 = vpop.f32.mrb[0].mxu0
  %v260 = vadd.f32 %v68, %v259
  %v261 = vpop.f32.mrb[0].mxu0
  %262 = vmatprep.mubr.bf16.mxu0 0
  %263 = vmatmul.mubr.bf16.gmra.mrb[0].mxu0 %v136
  %v264 = vpop.f32.mrb[0].mxu0
  %v265 = vadd.f32 %v68, %v264
  %v266 = vpop.f32.mrb[0].mxu0
  %v267 = vpop.f32.mrb[0].mxu0
  %v268 = vadd.f32 %v68, %v267
  %v269 = vpop.f32.mrb[0].mxu0
  %270 = vmatprep.mubr.bf16.mxu0 0
  %271 = vmatmul.mubr.bf16.gmra.mrb[0].mxu0 %v137
  %v272 = vpop.f32.mrb[0].mxu0
  %v273 = vadd.f32 %v68, %v272
  %v274 = vpop.f32.mrb[0].mxu0
  %v275 = vpop.f32.mrb[0].mxu0
  %v276 = vadd.f32 %v68, %v275
  %v277 = vpop.f32.mrb[0].mxu0
  %278 = vmatprep.mubr.bf16.mxu0 0
  %279 = vmatmul.mubr.bf16.gmra.mrb[0].mxu0 %v138
  %v280 = vpop.f32.mrb[0].mxu0
  %v281 = vadd.f32 %v68, %v280
  %v282 = vpop.f32.mrb[0].mxu0
  %v283 = vpop.f32.mrb[0].mxu0
  %v284 = vadd.f32 %v68, %v283
  %v285 = vpop.f32.mrb[0].mxu0
  %286 = vmatprep.mubr.bf16.mxu0 0
  %287 = vmatmul.mubr.bf16.gmra.mrb[0].mxu0 %v139
  %v288 = vpop.f32.mrb[0].mxu0
  %v289 = vadd.f32 %v68, %v288
  %v290 = vpop.f32.mrb[0].mxu0
  %v291 = vpop.f32.mrb[0].mxu0
  %v292 = vadd.f32 %v68, %v291
  %v293 = vpop.f32.mrb[0].mxu0
  %294 = vmatprep.mubr.bf16.mxu0 0
  %295 = vmatmul.mubr.bf16.gmra.mrb[0].mxu0 %v140
  %v296 = vpop.f32.mrb[0].mxu0
  %v297 = vadd.f32 %v68, %v296
  %v298 = vpop.f32.mrb[0].mxu0
  %v299 = vpop.f32.mrb[0].mxu0
  %v300 = vadd.f32 %v68, %v299
  %v301 = vpop.f32.mrb[0].mxu0
  %302 = vmatprep.mubr.bf16.mxu0 0
  %303 = vmatmul.mubr.bf16.gmra.mrb[0].mxu0 %v141
  %v304 = vpop.f32.mrb[0].mxu0
  %v305 = vadd.f32 %v68, %v304
  %v306 = vpop.f32.mrb[0].mxu0
  %v307 = vpop.f32.mrb[0].mxu0
  %v308 = vadd.f32 %v68, %v307
  %v309 = vpop.f32.mrb[0].mxu0
  %310 = vmatprep.mubr.bf16.mxu0 0
  %311 = vmatmul.mubr.bf16.gmra.mrb[0].mxu0 %v142
  %v312 = vpop.f32.mrb[0].mxu0
  %v313 = vadd.f32 %v68, %v312
  %v314 = vpop.f32.mrb[0].mxu0
  %v315 = vpop.f32.mrb[0].mxu0
  %v316 = vadd.f32 %v68, %v315
  %v317 = vpop.f32.mrb[0].mxu0
  %318 = vmatprep.mubr.bf16.mxu0 0
  %319 = vmatmul.mubr.bf16.gmra.mrb[0].mxu0 %v143
  %v320 = vpop.f32.mrb[0].mxu0
  %v321 = vadd.f32 %v68, %v320
  %v322 = vpop.f32.mrb[0].mxu0
  %v323 = vpop.f32.mrb[0].mxu0
  %v324 = vadd.f32 %v68, %v323
  %v325 = vpop.f32.mrb[0].mxu0
  %326 = vmatprep.mubr.bf16.mxu0 0
  %327 = vmatmul.mubr.bf16.gmra.mrb[0].mxu0 %v144
  %v328 = vpop.f32.mrb[0].mxu0
  %v329 = vadd.f32 %v68, %v328
  %v330 = vpop.f32.mrb[0].mxu0
  %v331 = vpop.f32.mrb[0].mxu0
  %v332 = vadd.f32 %v68, %v331
  %v333 = vpop.f32.mrb[0].mxu0
  %334 = vmatprep.mubr.bf16.mxu0 0
  %335 = vmatmul.mubr.bf16.gmra.mrb[0].mxu0 %v145
  %v336 = vpop.f32.mrb[0].mxu0
  %v337 = vadd.f32 %v68, %v336
  %v338 = vpop.f32.mrb[0].mxu0
  %v339 = vpop.f32.mrb[0].mxu0
  %v340 = vadd.f32 %v68, %v339
  %v341 = vpop.f32.mrb[0].mxu0
  %342 = vmatprep.mubr.bf16.mxu0 0
  %343 = vmatmul.mubr.bf16.gmra.mrb[0].mxu0 %v146
  %v344 = vpop.f32.mrb[0].mxu0
  %v345 = vadd.f32 %v68, %v344
  %v346 = vpop.f32.mrb[0].mxu0
  %v347 = vpop.f32.mrb[0].mxu0
  %v348 = vadd.f32 %v68, %v347
  %v349 = vpop.f32.mrb[0].mxu0
  %350 = vmatprep.mubr.bf16.mxu0 0
  %351 = vmatmul.mubr.bf16.gmra.mrb[0].mxu0 %v147
  %v352 = vpop.f32.mrb[0].mxu0
  %v353 = vadd.f32 %v68, %v352
  %v354 = vpop.f32.mrb[0].mxu0
  %v355 = vpop.f32.mrb[0].mxu0
  %v356 = vadd.f32 %v68, %v355
  %v357 = vpop.f32.mrb[0].mxu0
  %358 = vmatprep.mubr.bf16.mxu0 0
  %359 = vmatmul.mubr.bf16.gmra.mrb[0].mxu0 %v148
  %v360 = vpop.f32.mrb[0].mxu0
  %v361 = vadd.f32 %v68, %v360
  %v362 = vpop.f32.mrb[0].mxu0
  %v363 = vpop.f32.mrb[0].mxu0
  %v364 = vadd.f32 %v68, %v363
  %v365 = vpop.f32.mrb[0].mxu0
  %366 = vmatprep.mubr.bf16.mxu0 0
  %367 = vmatmul.mubr.bf16.gmra.mrb[0].mxu0 %v149
  %v368 = vpop.f32.mrb[0].mxu0
  %v369 = vadd.f32 %v68, %v368
  %v370 = vpop.f32.mrb[0].mxu0
  %v371 = vpop.f32.mrb[0].mxu0
  %v372 = vadd.f32 %v68, %v371
  %v373 = vpop.f32.mrb[0].mxu0
  %374 = vdwg.mxu0
  %v375 = vpack.c.bf16 %v252, %v249
  %v376 = vpack.c.bf16 %v260, %v257
  %v377 = vpack.c.bf16 %v268, %v265
  %v378 = vpack.c.bf16 %v276, %v273
  %v379 = vpack.c.bf16 %v284, %v281
  %v380 = vpack.c.bf16 %v292, %v289
  %v381 = vpack.c.bf16 %v300, %v297
  %v382 = vpack.c.bf16 %v308, %v305
  %v383 = vpack.c.bf16 %v316, %v313
  %v384 = vpack.c.bf16 %v324, %v321
  %v385 = vpack.c.bf16 %v332, %v329
  %v386 = vpack.c.bf16 %v340, %v337
  %v387 = vpack.c.bf16 %v348, %v345
  %v388 = vpack.c.bf16 %v356, %v353
  %v389 = vpack.c.bf16 %v364, %v361
  %v390 = vpack.c.bf16 %v372, %v369
  %v407 = vunpack.c.l.b16 %v375
  %v408 = vunpack.c.h.b16 %v375
  %v409 = vunpack.c.l.b16 %v376
  %v410 = vunpack.c.h.b16 %v376
  %v411 = vunpack.c.l.b16 %v377
  %v412 = vunpack.c.h.b16 %v377
  %v413 = vunpack.c.l.b16 %v378
  %v414 = vunpack.c.h.b16 %v378
  %v415 = vunpack.c.l.b16 %v379
  %v416 = vunpack.c.h.b16 %v379
  %v417 = vunpack.c.l.b16 %v380
  %v418 = vunpack.c.h.b16 %v380
  %v419 = vunpack.c.l.b16 %v381
  %v420 = vunpack.c.h.b16 %v381
  %v421 = vunpack.c.l.b16 %v382
  %v422 = vunpack.c.h.b16 %v382
  %v423 = vunpack.c.l.b16 %v383
  %v424 = vunpack.c.h.b16 %v383
  %v425 = vunpack.c.l.b16 %v384
  %v426 = vunpack.c.h.b16 %v384
  %v427 = vunpack.c.l.b16 %v385
  %v428 = vunpack.c.h.b16 %v385
  %v429 = vunpack.c.l.b16 %v386
  %v430 = vunpack.c.h.b16 %v386
  %v431 = vunpack.c.l.b16 %v387
  %v432 = vunpack.c.h.b16 %v387
  %v433 = vunpack.c.l.b16 %v388
  %v434 = vunpack.c.h.b16 %v388
  %v435 = vunpack.c.l.b16 %v389
  %v436 = vunpack.c.h.b16 %v389
  %v437 = vunpack.c.l.b16 %v390
  %v438 = vunpack.c.h.b16 %v390
  %v439 = vpack.c.b16 %v407, %v407
  %v440 = vpack.c.b16 %v408, %v408
  %v441 = vpack.c.b16 %v409, %v409
  %v442 = vpack.c.b16 %v410, %v410
  %v443 = vpack.c.b16 %v411, %v411
  %v444 = vpack.c.b16 %v412, %v412
  %v445 = vpack.c.b16 %v413, %v413
  %v446 = vpack.c.b16 %v414, %v414
  %v447 = vpack.c.b16 %v415, %v415
  %v448 = vpack.c.b16 %v416, %v416
  %v449 = vpack.c.b16 %v417, %v417
  %v450 = vpack.c.b16 %v418, %v418
  %v451 = vpack.c.b16 %v419, %v419
  %v452 = vpack.c.b16 %v420, %v420
  %v453 = vpack.c.b16 %v421, %v421
  %v454 = vpack.c.b16 %v422, %v422
  %v455 = vpack.c.b16 %v423, %v423
  %v456 = vpack.c.b16 %v424, %v424
  %v457 = vpack.c.b16 %v425, %v425
  %v458 = vpack.c.b16 %v426, %v426
  %v459 = vpack.c.b16 %v427, %v427
  %v460 = vpack.c.b16 %v428, %v428
  %v461 = vpack.c.b16 %v429, %v429
  %v462 = vpack.c.b16 %v430, %v430
  %v463 = vpack.c.b16 %v431, %v431
  %v464 = vpack.c.b16 %v432, %v432
  %v465 = vpack.c.b16 %v433, %v433
  %v466 = vpack.c.b16 %v434, %v434
  %v467 = vpack.c.b16 %v435, %v435
  %v468 = vpack.c.b16 %v436, %v436
  %v469 = vpack.c.b16 %v437, %v437
  %v470 = vpack.c.b16 %v438, %v438
  %503 = vst [vmem:[%s3] sm:$0xf] %v439
  %504 = vst [vmem:[%s3 + $0xc] sm:$0xf] %v440
  %505 = vst [vmem:[%s3 + $0x18] sm:$0xf] %v441
  %506 = vst [vmem:[%s3 + $0x24] sm:$0xf] %v442
  %507 = vst [vmem:[%s3 + $0x30] sm:$0xf] %v443
  %508 = vst [vmem:[%s3 + $0x3c] sm:$0xf] %v444
  %509 = vst [vmem:[%s3 + $0x48] sm:$0xf] %v445
  %510 = vst [vmem:[%s3 + $0x54] sm:$0xf] %v446
  %511 = vst [vmem:[%s3 + $0x60] sm:$0xf] %v447
  %512 = vst [vmem:[%s3 + $0x6c] sm:$0xf] %v448
  %513 = vst [vmem:[%s3 + $0x78] sm:$0xf] %v449
  %514 = vst [vmem:[%s3 + $0x84] sm:$0xf] %v450
  %515 = vst [vmem:[%s3 + $0x90] sm:$0xf] %v451
  %516 = vst [vmem:[%s3 + $0x9c] sm:$0xf] %v452
  %517 = vst [vmem:[%s3 + $0xa8] sm:$0xf] %v453
  %518 = vst [vmem:[%s3 + $0xb4] sm:$0xf] %v454
  %519 = vst [vmem:[%s3 + $0xc0] sm:$0xf] %v455
  %520 = vst [vmem:[%s3 + $0xcc] sm:$0xf] %v456
  %521 = vst [vmem:[%s3 + $0xd8] sm:$0xf] %v457
  %522 = vst [vmem:[%s3 + $0xe4] sm:$0xf] %v458
  %523 = vst [vmem:[%s3 + $0xf0] sm:$0xf] %v459
  %524 = vst [vmem:[%s3 + $0xfc] sm:$0xf] %v460
  %525 = vst [vmem:[%s3 + $0x108] sm:$0xf] %v461
  %526 = vst [vmem:[%s3 + $0x114] sm:$0xf] %v462
  %527 = vst [vmem:[%s3 + $0x120] sm:$0xf] %v463
  %528 = vst [vmem:[%s3 + $0x12c] sm:$0xf] %v464
  %529 = vst [vmem:[%s3 + $0x138] sm:$0xf] %v465
  %530 = vst [vmem:[%s3 + $0x144] sm:$0xf] %v466
  %531 = vst [vmem:[%s3 + $0x150] sm:$0xf] %v467
  %532 = vst [vmem:[%s3 + $0x15c] sm:$0xf] %v468
  %533 = vst [vmem:[%s3 + $0x168] sm:$0xf] %v469
  %534 = vst [vmem:[%s3 + $0x174] sm:$0xf] %v470
  %535 = vst [vmem:[%s3 + $0x4] sm:$0xff] 0
  %536 = vst [vmem:[%s3 + $0x10] sm:$0xff] 0
  %537 = vst [vmem:[%s3 + $0x1c] sm:$0xff] 0
  %538 = vst [vmem:[%s3 + $0x28] sm:$0xff] 0
  %539 = vst [vmem:[%s3 + $0x34] sm:$0xff] 0
  %540 = vst [vmem:[%s3 + $0x40] sm:$0xff] 0
  %541 = vst [vmem:[%s3 + $0x4c] sm:$0xff] 0
  %542 = vst [vmem:[%s3 + $0x58] sm:$0xff] 0
  %543 = vst [vmem:[%s3 + $0x64] sm:$0xff] 0
  %544 = vst [vmem:[%s3 + $0x70] sm:$0xff] 0
  %545 = vst [vmem:[%s3 + $0x7c] sm:$0xff] 0
  %546 = vst [vmem:[%s3 + $0x88] sm:$0xff] 0
  %547 = vst [vmem:[%s3 + $0x94] sm:$0xff] 0
  %548 = vst [vmem:[%s3 + $0xa0] sm:$0xff] 0
  %549 = vst [vmem:[%s3 + $0xac] sm:$0xff] 0
  %550 = vst [vmem:[%s3 + $0xb8] sm:$0xff] 0
  %551 = vst [vmem:[%s3 + $0xc4] sm:$0xff] 0
  %552 = vst [vmem:[%s3 + $0xd0] sm:$0xff] 0
  %553 = vst [vmem:[%s3 + $0xdc] sm:$0xff] 0
  %554 = vst [vmem:[%s3 + $0xe8] sm:$0xff] 0
  %555 = vst [vmem:[%s3 + $0xf4] sm:$0xff] 0
  %556 = vst [vmem:[%s3 + $0x100] sm:$0xff] 0
  %557 = vst [vmem:[%s3 + $0x10c] sm:$0xff] 0
  %558 = vst [vmem:[%s3 + $0x118] sm:$0xff] 0
  %559 = vst [vmem:[%s3 + $0x124] sm:$0xff] 0
  %560 = vst [vmem:[%s3 + $0x130] sm:$0xff] 0
  %561 = vst [vmem:[%s3 + $0x13c] sm:$0xff] 0
  %562 = vst [vmem:[%s3 + $0x148] sm:$0xff] 0
  %563 = vst [vmem:[%s3 + $0x154] sm:$0xff] 0
  %564 = vst [vmem:[%s3 + $0x160] sm:$0xff] 0
  %565 = vst [vmem:[%s3 + $0x16c] sm:$0xff] 0
  %566 = vst [vmem:[%s3 + $0x178] sm:$0xff] 0
  // Predicated region
  $region14: #{gnn_encoder_forward.4} parent=0 // pred_check
    _
  $region15: #{gnn_encoder_forward.4} parent=0 // pred_check_branch
    %568 = sbr.rel (0) target = $region17
  $region16: #{gnn_encoder_forward.4} parent=0 // pred_region
    _
  $region17: #{gnn_encoder_forward.4} parent=0 // pred_fallthru
    _
  // Predicated region
  $region18: #{gnn_encoder_forward.4} parent=0 // pred_check
    _
  $region19: #{gnn_encoder_forward.4} parent=0 // pred_check_branch
    %570 = sbr.rel (0) target = $region21
  $region20: #{gnn_encoder_forward.4} parent=0 // pred_region
    _
  $region21: #{gnn_encoder_forward.4} parent=0 // pred_fallthru
    _

// kernel: gnn_encoder_forward.5
$region0: #{gnn_encoder_forward.5}
  #allocation0 [shape = 'u32[]', space=smem, size = 0x4, offset = 0x4, fixed_abs, tag = 'smem constant byte address 0x4 - core index']
  #allocation1 [shape = 'u32[144,128]{1,0:T(1,128)}', space=vmem, size = 0x12000, scoped, tag = 'internal scratch']
  #allocation2 [shape = 'f32[256,128]{1,0:T(8,128)}', space=vmem, size = 0x20000, scoped, tag = 'scratch operand']
  %s0 = inlined_call_operand.vmem [shape: bf16[256,384], index: 0, kind: input, shape index: {}, may-alias: {0,6}]
  %s1 = inlined_call_operand.vmem [shape: bf16[256,256], index: 1, kind: input, shape index: {}]
  %s2 = inlined_call_operand.vmem [shape: bf16[128,128], index: 2, kind: input, shape index: {}]
  %s3 = inlined_call_operand.vmem [shape: f32[1,128], index: 3, kind: input, shape index: {}]
  %s4 = inlined_call_operand.vmem [shape: bf16[128,128], index: 4, kind: input, shape index: {}]
  %s5 = inlined_call_operand.vmem [shape: f32[1,128], index: 5, kind: input, shape index: {}]
  %s6 = inlined_call_operand.vmem [shape: bf16[256,384], index: 6, kind: output, shape index: {}, may-alias: {0,6}]
  %s7 = sld [smem:[#allocation0]]
  $region120: #{gnn_encoder_forward.5} parent=0
    _
  %s9 = ssub.s32 1, %s7
  %s10 = scalar_select 0, %s9, %s7
  $region1: #{gnn_encoder_forward.5} parent=0
    #allocation3 [shape = 'u8[65536]{0}', space=vmem, size = 0x10000, scoped, tag = 'input window, operand 0, single buffered']
    #allocation4 [shape = 'u8[65536]{0}', space=vmem, size = 0x10000, scoped, tag = 'output window, operand 0, single buffered']
    // Predicated region
    $region2: #{gnn_encoder_forward.5} parent=1 // pred_check
      _
    $region3: #{gnn_encoder_forward.5} parent=1 // pred_check_branch
      %12 = sbr.rel (0) target = $region5
    $region4: #{gnn_encoder_forward.5} parent=1 // pred_region
      // Predicated region
      $region6: #{gnn_encoder_forward.5} parent=4 // pred_check
        _
      $region7: #{gnn_encoder_forward.5} parent=4 // pred_check_branch
        %14 = sbr.rel (0) target = $region9
      $region8: #{gnn_encoder_forward.5} parent=4 // pred_region
        // Predicated region
        $region10: #{gnn_encoder_forward.5} parent=8 // pred_check
          _
        $region11: #{gnn_encoder_forward.5} parent=8 // pred_check_branch
          %16 = sbr.rel target = $region13
        $region12: #{gnn_encoder_forward.5} parent=8 // pred_region
          // Predicated region
          $region25: #{gnn_encoder_forward.5} parent=12 // pred_check
            _
          $region26: #{gnn_encoder_forward.5} parent=12 // pred_check_branch
            %93 = sbr.rel (0) target = $region28
          $region27: #{gnn_encoder_forward.5} parent=12 // pred_region
            loop: start=0, step=1, limit=1
            $region29: #{gnn_encoder_forward.5} parent=27 // loop_pre_header
              _
            $region30: #{gnn_encoder_forward.5} parent=27 // loop_header
              %s95 = sphi 0, %s99
              %p96 = scmp.ge.s32.totalorder %s95, 1
              %s100 = sphi %s0, %s0
              %s101 = sphi [#allocation3], [#allocation3]
            $region31: #{gnn_encoder_forward.5} parent=27 // loop_header_branch
              %98 = sbr.rel (%p96) target = $region35
            $region32: #{gnn_encoder_forward.5} parent=27 // loop_body
              _
            $region33: #{gnn_encoder_forward.5} parent=27 // loop_footer
              %s99 = sadd.s32 1, %s95
            $region34: #{gnn_encoder_forward.5} parent=27 // loop_footer_branch
              %94 = sbr.rel target = $region30
            $region35: #{gnn_encoder_forward.5} parent=27 // loop_exit
              _
            loop: start=0, step=1, limit=1
            $region36: #{gnn_encoder_forward.5} parent=27 // loop_pre_header
              _
            $region37: #{gnn_encoder_forward.5} parent=27 // loop_header
              %s104 = sphi 0, %s108
              %p105 = scmp.ge.s32.totalorder %s104, 1
              %s109 = sphi %s0, %s0
              %s110 = sphi [#allocation3], [#allocation3]
            $region38: #{gnn_encoder_forward.5} parent=27 // loop_header_branch
              %107 = sbr.rel (%p105) target = $region42
            $region39: #{gnn_encoder_forward.5} parent=27 // loop_body
              %v111 = vld [vmem:[%s109] sm:$0xf]
              %112 = vst [vmem:[%s110] sm:$0xf] %v111
              %v113 = vld [vmem:[%s109 + $0xc] sm:$0xf]
              %114 = vst [vmem:[%s110 + $0x4] sm:$0xf] %v113
              %v115 = vld [vmem:[%s109 + $0x18] sm:$0xf]
              %116 = vst [vmem:[%s110 + $0x8] sm:$0xf] %v115
              %v117 = vld [vmem:[%s109 + $0x24] sm:$0xf]
              %118 = vst [vmem:[%s110 + $0xc] sm:$0xf] %v117
              %v119 = vld [vmem:[%s109 + $0x30] sm:$0xf]
              %120 = vst [vmem:[%s110 + $0x10] sm:$0xf] %v119
              %v121 = vld [vmem:[%s109 + $0x3c] sm:$0xf]
              %122 = vst [vmem:[%s110 + $0x14] sm:$0xf] %v121
              %v123 = vld [vmem:[%s109 + $0x48] sm:$0xf]
              %124 = vst [vmem:[%s110 + $0x18] sm:$0xf] %v123
              %v125 = vld [vmem:[%s109 + $0x54] sm:$0xf]
              %126 = vst [vmem:[%s110 + $0x1c] sm:$0xf] %v125
              %v127 = vld [vmem:[%s109 + $0x60] sm:$0xf]
              %128 = vst [vmem:[%s110 + $0x20] sm:$0xf] %v127
              %v129 = vld [vmem:[%s109 + $0x6c] sm:$0xf]
              %130 = vst [vmem:[%s110 + $0x24] sm:$0xf] %v129
              %v131 = vld [vmem:[%s109 + $0x78] sm:$0xf]
              %132 = vst [vmem:[%s110 + $0x28] sm:$0xf] %v131
              %v133 = vld [vmem:[%s109 + $0x84] sm:$0xf]
              %134 = vst [vmem:[%s110 + $0x2c] sm:$0xf] %v133
              %v135 = vld [vmem:[%s109 + $0x90] sm:$0xf]
              %136 = vst [vmem:[%s110 + $0x30] sm:$0xf] %v135
              %v137 = vld [vmem:[%s109 + $0x9c] sm:$0xf]
              %138 = vst [vmem:[%s110 + $0x34] sm:$0xf] %v137
              %v139 = vld [vmem:[%s109 + $0xa8] sm:$0xf]
              %140 = vst [vmem:[%s110 + $0x38] sm:$0xf] %v139
              %v141 = vld [vmem:[%s109 + $0xb4] sm:$0xf]
              %142 = vst [vmem:[%s110 + $0x3c] sm:$0xf] %v141
              %v143 = vld [vmem:[%s109 + $0xc0] sm:$0xf]
              %144 = vst [vmem:[%s110 + $0x40] sm:$0xf] %v143
              %v145 = vld [vmem:[%s109 + $0xcc] sm:$0xf]
              %146 = vst [vmem:[%s110 + $0x44] sm:$0xf] %v145
              %v147 = vld [vmem:[%s109 + $0xd8] sm:$0xf]
              %148 = vst [vmem:[%s110 + $0x48] sm:$0xf] %v147
              %v149 = vld [vmem:[%s109 + $0xe4] sm:$0xf]
              %150 = vst [vmem:[%s110 + $0x4c] sm:$0xf] %v149
              %v151 = vld [vmem:[%s109 + $0xf0] sm:$0xf]
              %152 = vst [vmem:[%s110 + $0x50] sm:$0xf] %v151
              %v153 = vld [vmem:[%s109 + $0xfc] sm:$0xf]
              %154 = vst [vmem:[%s110 + $0x54] sm:$0xf] %v153
              %v155 = vld [vmem:[%s109 + $0x108] sm:$0xf]
              %156 = vst [vmem:[%s110 + $0x58] sm:$0xf] %v155
              %v157 = vld [vmem:[%s109 + $0x114] sm:$0xf]
              %158 = vst [vmem:[%s110 + $0x5c] sm:$0xf] %v157
              %v159 = vld [vmem:[%s109 + $0x120] sm:$0xf]
              %160 = vst [vmem:[%s110 + $0x60] sm:$0xf] %v159
              %v161 = vld [vmem:[%s109 + $0x12c] sm:$0xf]
              %162 = vst [vmem:[%s110 + $0x64] sm:$0xf] %v161
              %v163 = vld [vmem:[%s109 + $0x138] sm:$0xf]
              %164 = vst [vmem:[%s110 + $0x68] sm:$0xf] %v163
              %v165 = vld [vmem:[%s109 + $0x144] sm:$0xf]
              %166 = vst [vmem:[%s110 + $0x6c] sm:$0xf] %v165
              %v167 = vld [vmem:[%s109 + $0x150] sm:$0xf]
              %168 = vst [vmem:[%s110 + $0x70] sm:$0xf] %v167
              %v169 = vld [vmem:[%s109 + $0x15c] sm:$0xf]
              %170 = vst [vmem:[%s110 + $0x74] sm:$0xf] %v169
              %v171 = vld [vmem:[%s109 + $0x168] sm:$0xf]
              %172 = vst [vmem:[%s110 + $0x78] sm:$0xf] %v171
              %v173 = vld [vmem:[%s109 + $0x174] sm:$0xf]
              %174 = vst [vmem:[%s110 + $0x7c] sm:$0xf] %v173
            $region40: #{gnn_encoder_forward.5} parent=27 // loop_footer
              %s108 = sadd.s32 1, %s104
            $region41: #{gnn_encoder_forward.5} parent=27 // loop_footer_branch
              %103 = sbr.rel target = $region37
            $region42: #{gnn_encoder_forward.5} parent=27 // loop_exit
              _
          $region28: #{gnn_encoder_forward.5} parent=12 // pred_fallthru
            _
        $region13: #{gnn_encoder_forward.5} parent=8 // pred_fallthru
          _
        // Predicated region
        $region14: #{gnn_encoder_forward.5} parent=8 // pred_check
          _
        $region15: #{gnn_encoder_forward.5} parent=8 // pred_check_branch
          %18 = sbr.rel (0) target = $region17
        $region16: #{gnn_encoder_forward.5} parent=8 // pred_region
          loop: start=0, step=1, limit=1
          $region18: #{gnn_encoder_forward.5} parent=16 // loop_pre_header
            _
          $region19: #{gnn_encoder_forward.5} parent=16 // loop_header
            %s21 = sphi 0, %s25
            %p22 = scmp.ge.s32.totalorder %s21, 1
            %s26 = sphi %s0, %s0
            %s27 = sphi [#allocation3], [#allocation3]
          $region20: #{gnn_encoder_forward.5} parent=16 // loop_header_branch
            %24 = sbr.rel (%p22) target = $region24
          $region21: #{gnn_encoder_forward.5} parent=16 // loop_body
            %v28 = vld [vmem:[%s26] sm:$0xf]
            %29 = vst [vmem:[%s27] sm:$0xf] %v28
            %v30 = vld [vmem:[%s26 + $0xc] sm:$0xf]
            %31 = vst [vmem:[%s27 + $0x4] sm:$0xf] %v30
            %v32 = vld [vmem:[%s26 + $0x18] sm:$0xf]
            %33 = vst [vmem:[%s27 + $0x8] sm:$0xf] %v32
            %v34 = vld [vmem:[%s26 + $0x24] sm:$0xf]
            %35 = vst [vmem:[%s27 + $0xc] sm:$0xf] %v34
            %v36 = vld [vmem:[%s26 + $0x30] sm:$0xf]
            %37 = vst [vmem:[%s27 + $0x10] sm:$0xf] %v36
            %v38 = vld [vmem:[%s26 + $0x3c] sm:$0xf]
            %39 = vst [vmem:[%s27 + $0x14] sm:$0xf] %v38
            %v40 = vld [vmem:[%s26 + $0x48] sm:$0xf]
            %41 = vst [vmem:[%s27 + $0x18] sm:$0xf] %v40
            %v42 = vld [vmem:[%s26 + $0x54] sm:$0xf]
            %43 = vst [vmem:[%s27 + $0x1c] sm:$0xf] %v42
            %v44 = vld [vmem:[%s26 + $0x60] sm:$0xf]
            %45 = vst [vmem:[%s27 + $0x20] sm:$0xf] %v44
            %v46 = vld [vmem:[%s26 + $0x6c] sm:$0xf]
            %47 = vst [vmem:[%s27 + $0x24] sm:$0xf] %v46
            %v48 = vld [vmem:[%s26 + $0x78] sm:$0xf]
            %49 = vst [vmem:[%s27 + $0x28] sm:$0xf] %v48
            %v50 = vld [vmem:[%s26 + $0x84] sm:$0xf]
            %51 = vst [vmem:[%s27 + $0x2c] sm:$0xf] %v50
            %v52 = vld [vmem:[%s26 + $0x90] sm:$0xf]
            %53 = vst [vmem:[%s27 + $0x30] sm:$0xf] %v52
            %v54 = vld [vmem:[%s26 + $0x9c] sm:$0xf]
            %55 = vst [vmem:[%s27 + $0x34] sm:$0xf] %v54
            %v56 = vld [vmem:[%s26 + $0xa8] sm:$0xf]
            %57 = vst [vmem:[%s27 + $0x38] sm:$0xf] %v56
            %v58 = vld [vmem:[%s26 + $0xb4] sm:$0xf]
            %59 = vst [vmem:[%s27 + $0x3c] sm:$0xf] %v58
            %v60 = vld [vmem:[%s26 + $0xc0] sm:$0xf]
            %61 = vst [vmem:[%s27 + $0x40] sm:$0xf] %v60
            %v62 = vld [vmem:[%s26 + $0xcc] sm:$0xf]
            %63 = vst [vmem:[%s27 + $0x44] sm:$0xf] %v62
            %v64 = vld [vmem:[%s26 + $0xd8] sm:$0xf]
            %65 = vst [vmem:[%s27 + $0x48] sm:$0xf] %v64
            %v66 = vld [vmem:[%s26 + $0xe4] sm:$0xf]
            %67 = vst [vmem:[%s27 + $0x4c] sm:$0xf] %v66
            %v68 = vld [vmem:[%s26 + $0xf0] sm:$0xf]
            %69 = vst [vmem:[%s27 + $0x50] sm:$0xf] %v68
            %v70 = vld [vmem:[%s26 + $0xfc] sm:$0xf]
            %71 = vst [vmem:[%s27 + $0x54] sm:$0xf] %v70
            %v72 = vld [vmem:[%s26 + $0x108] sm:$0xf]
            %73 = vst [vmem:[%s27 + $0x58] sm:$0xf] %v72
            %v74 = vld [vmem:[%s26 + $0x114] sm:$0xf]
            %75 = vst [vmem:[%s27 + $0x5c] sm:$0xf] %v74
            %v76 = vld [vmem:[%s26 + $0x120] sm:$0xf]
            %77 = vst [vmem:[%s27 + $0x60] sm:$0xf] %v76
            %v78 = vld [vmem:[%s26 + $0x12c] sm:$0xf]
            %79 = vst [vmem:[%s27 + $0x64] sm:$0xf] %v78
            %v80 = vld [vmem:[%s26 + $0x138] sm:$0xf]
            %81 = vst [vmem:[%s27 + $0x68] sm:$0xf] %v80
            %v82 = vld [vmem:[%s26 + $0x144] sm:$0xf]
            %83 = vst [vmem:[%s27 + $0x6c] sm:$0xf] %v82
            %v84 = vld [vmem:[%s26 + $0x150] sm:$0xf]
            %85 = vst [vmem:[%s27 + $0x70] sm:$0xf] %v84
            %v86 = vld [vmem:[%s26 + $0x15c] sm:$0xf]
            %87 = vst [vmem:[%s27 + $0x74] sm:$0xf] %v86
            %v88 = vld [vmem:[%s26 + $0x168] sm:$0xf]
            %89 = vst [vmem:[%s27 + $0x78] sm:$0xf] %v88
            %v90 = vld [vmem:[%s26 + $0x174] sm:$0xf]
            %91 = vst [vmem:[%s27 + $0x7c] sm:$0xf] %v90
          $region22: #{gnn_encoder_forward.5} parent=16 // loop_footer
            %s25 = sadd.s32 1, %s21
          $region23: #{gnn_encoder_forward.5} parent=16 // loop_footer_branch
            %20 = sbr.rel target = $region19
          $region24: #{gnn_encoder_forward.5} parent=16 // loop_exit
            _
        $region17: #{gnn_encoder_forward.5} parent=8 // pred_fallthru
          _
      $region9: #{gnn_encoder_forward.5} parent=4 // pred_fallthru
        _
      %175 = vnop
    $region5: #{gnn_encoder_forward.5} parent=1 // pred_fallthru
      _
    // Predicated region
    $region43: #{gnn_encoder_forward.5} parent=1 // pred_check
      _
    $region44: #{gnn_encoder_forward.5} parent=1 // pred_check_branch
      %177 = sbr.rel (0) target = $region46
    $region45: #{gnn_encoder_forward.5} parent=1 // pred_region
      _
    $region46: #{gnn_encoder_forward.5} parent=1 // pred_fallthru
      _
    // Predicated region
    $region47: #{gnn_encoder_forward.5} parent=1 // pred_check
      _
    $region48: #{gnn_encoder_forward.5} parent=1 // pred_check_branch
      %179 = sbr.rel (0) target = $region50
    $region49: #{gnn_encoder_forward.5} parent=1 // pred_region
      _
    $region50: #{gnn_encoder_forward.5} parent=1 // pred_fallthru
      _
    // Predicated region
    $region51: #{gnn_encoder_forward.5} parent=1 // pred_check
      _
    $region52: #{gnn_encoder_forward.5} parent=1 // pred_check_branch
      %181 = sbr.rel (0) target = $region54
    $region53: #{gnn_encoder_forward.5} parent=1 // pred_region
      _
    $region54: #{gnn_encoder_forward.5} parent=1 // pred_fallthru
      _
    // Predicated region
    $region55: #{gnn_encoder_forward.5} parent=1 // pred_check
      _
    $region56: #{gnn_encoder_forward.5} parent=1 // pred_check_branch
      %183 = sbr.rel (0) target = $region58
    $region57: #{gnn_encoder_forward.5} parent=1 // pred_region
      _
    $region58: #{gnn_encoder_forward.5} parent=1 // pred_fallthru
      _
    // Predicated region
    $region59: #{gnn_encoder_forward.5} parent=1 // pred_check
      _
    $region60: #{gnn_encoder_forward.5} parent=1 // pred_check_branch
      %185 = sbr.rel (0) target = $region62
    $region61: #{gnn_encoder_forward.5} parent=1 // pred_region
      _
    $region62: #{gnn_encoder_forward.5} parent=1 // pred_fallthru
      _
    // Predicated region
    $region63: #{gnn_encoder_forward.5} parent=1 // pred_check
      _
    $region64: #{gnn_encoder_forward.5} parent=1 // pred_check_branch
      %187 = sbr.rel (0) target = $region66
    $region65: #{gnn_encoder_forward.5} parent=1 // pred_region
      _
    $region66: #{gnn_encoder_forward.5} parent=1 // pred_fallthru
      _
    %p189 = scmp.eq.s32.totalorder 0, 0
    // Predicated region
    $region67: #{gnn_encoder_forward.5} parent=1 // pred_check
      %p190 = pneg %p189
    $region68: #{gnn_encoder_forward.5} parent=1 // pred_check_branch
      %192 = sbr.rel (%p190) target = $region70
    $region69: #{gnn_encoder_forward.5} parent=1 // pred_region
      %193 = vst [vmem:[#allocation2] sm:$0xff] 0.0
      %194 = vst [vmem:[#allocation2 + $0x8] sm:$0xff] 0.0
      %195 = vst [vmem:[#allocation2 + $0x10] sm:$0xff] 0.0
      %196 = vst [vmem:[#allocation2 + $0x18] sm:$0xff] 0.0
      %197 = vst [vmem:[#allocation2 + $0x20] sm:$0xff] 0.0
      %198 = vst [vmem:[#allocation2 + $0x28] sm:$0xff] 0.0
      %199 = vst [vmem:[#allocation2 + $0x30] sm:$0xff] 0.0
      %200 = vst [vmem:[#allocation2 + $0x38] sm:$0xff] 0.0
      %201 = vst [vmem:[#allocation2 + $0x40] sm:$0xff] 0.0
      %202 = vst [vmem:[#allocation2 + $0x48] sm:$0xff] 0.0
      %203 = vst [vmem:[#allocation2 + $0x50] sm:$0xff] 0.0
      %204 = vst [vmem:[#allocation2 + $0x58] sm:$0xff] 0.0
      %205 = vst [vmem:[#allocation2 + $0x60] sm:$0xff] 0.0
      %206 = vst [vmem:[#allocation2 + $0x68] sm:$0xff] 0.0
      %207 = vst [vmem:[#allocation2 + $0x70] sm:$0xff] 0.0
      %208 = vst [vmem:[#allocation2 + $0x78] sm:$0xff] 0.0
      %209 = vst [vmem:[#allocation2 + $0x80] sm:$0xff] 0.0
      %210 = vst [vmem:[#allocation2 + $0x88] sm:$0xff] 0.0
      %211 = vst [vmem:[#allocation2 + $0x90] sm:$0xff] 0.0
      %212 = vst [vmem:[#allocation2 + $0x98] sm:$0xff] 0.0
      %213 = vst [vmem:[#allocation2 + $0xa0] sm:$0xff] 0.0
      %214 = vst [vmem:[#allocation2 + $0xa8] sm:$0xff] 0.0
      %215 = vst [vmem:[#allocation2 + $0xb0] sm:$0xff] 0.0
      %216 = vst [vmem:[#allocation2 + $0xb8] sm:$0xff] 0.0
      %217 = vst [vmem:[#allocation2 + $0xc0] sm:$0xff] 0.0
      %218 = vst [vmem:[#allocation2 + $0xc8] sm:$0xff] 0.0
      %219 = vst [vmem:[#allocation2 + $0xd0] sm:$0xff] 0.0
      %220 = vst [vmem:[#allocation2 + $0xd8] sm:$0xff] 0.0
      %221 = vst [vmem:[#allocation2 + $0xe0] sm:$0xff] 0.0
      %222 = vst [vmem:[#allocation2 + $0xe8] sm:$0xff] 0.0
      %223 = vst [vmem:[#allocation2 + $0xf0] sm:$0xff] 0.0
      %224 = vst [vmem:[#allocation2 + $0xf8] sm:$0xff] 0.0
    $region70: #{gnn_encoder_forward.5} parent=1 // pred_fallthru
      _
    %v225 = vld [vmem:[#allocation2] sm:$0xff]
    %v226 = vld [vmem:[#allocation2 + $0x8] sm:$0xff]
    %v227 = vld [vmem:[#allocation2 + $0x10] sm:$0xff]
    %v228 = vld [vmem:[#allocation2 + $0x18] sm:$0xff]
    %v229 = vld [vmem:[#allocation2 + $0x20] sm:$0xff]
    %v230 = vld [vmem:[#allocation2 + $0x28] sm:$0xff]
    %v231 = vld [vmem:[#allocation2 + $0x30] sm:$0xff]
    %v232 = vld [vmem:[#allocation2 + $0x38] sm:$0xff]
    %v233 = vld [vmem:[#allocation2 + $0x40] sm:$0xff]
    %v234 = vld [vmem:[#allocation2 + $0x48] sm:$0xff]
    %v235 = vld [vmem:[#allocation2 + $0x50] sm:$0xff]
    %v236 = vld [vmem:[#allocation2 + $0x58] sm:$0xff]
    %v237 = vld [vmem:[#allocation2 + $0x60] sm:$0xff]
    %v238 = vld [vmem:[#allocation2 + $0x68] sm:$0xff]
    %v239 = vld [vmem:[#allocation2 + $0x70] sm:$0xff]
    %v240 = vld [vmem:[#allocation2 + $0x78] sm:$0xff]
    %v241 = vld [vmem:[#allocation2 + $0x80] sm:$0xff]
    %v242 = vld [vmem:[#allocation2 + $0x88] sm:$0xff]
    %v243 = vld [vmem:[#allocation2 + $0x90] sm:$0xff]
    %v244 = vld [vmem:[#allocation2 + $0x98] sm:$0xff]
    %v245 = vld [vmem:[#allocation2 + $0xa0] sm:$0xff]
    %v246 = vld [vmem:[#allocation2 + $0xa8] sm:$0xff]
    %v247 = vld [vmem:[#allocation2 + $0xb0] sm:$0xff]
    %v248 = vld [vmem:[#allocation2 + $0xb8] sm:$0xff]
    %v249 = vld [vmem:[#allocation2 + $0xc0] sm:$0xff]
    %v250 = vld [vmem:[#allocation2 + $0xc8] sm:$0xff]
    %v251 = vld [vmem:[#allocation2 + $0xd0] sm:$0xff]
    %v252 = vld [vmem:[#allocation2 + $0xd8] sm:$0xff]
    %v253 = vld [vmem:[#allocation2 + $0xe0] sm:$0xff]
    %v254 = vld [vmem:[#allocation2 + $0xe8] sm:$0xff]
    %v255 = vld [vmem:[#allocation2 + $0xf0] sm:$0xff]
    %v256 = vld [vmem:[#allocation2 + $0xf8] sm:$0xff]
    %v257 = vld [vmem:[%s1] sm:$0xff]
    %v258 = vld [vmem:[%s1 + $0x8] sm:$0xff]
    %v259 = vld [vmem:[%s1 + $0x10] sm:$0xff]
    %v260 = vld [vmem:[%s1 + $0x18] sm:$0xff]
    %v261 = vld [vmem:[%s1 + $0x20] sm:$0xff]
    %v262 = vld [vmem:[%s1 + $0x28] sm:$0xff]
    %v263 = vld [vmem:[%s1 + $0x30] sm:$0xff]
    %v264 = vld [vmem:[%s1 + $0x38] sm:$0xff]
    %v265 = vld [vmem:[%s1 + $0x40] sm:$0xff]
    %v266 = vld [vmem:[%s1 + $0x48] sm:$0xff]
    %v267 = vld [vmem:[%s1 + $0x50] sm:$0xff]
    %v268 = vld [vmem:[%s1 + $0x58] sm:$0xff]
    %v269 = vld [vmem:[%s1 + $0x60] sm:$0xff]
    %v270 = vld [vmem:[%s1 + $0x68] sm:$0xff]
    %v271 = vld [vmem:[%s1 + $0x70] sm:$0xff]
    %v272 = vld [vmem:[%s1 + $0x78] sm:$0xff]
    %v273 = vld [vmem:[%s1 + $0x80] sm:$0xff]
    %v274 = vld [vmem:[%s1 + $0x88] sm:$0xff]
    %v275 = vld [vmem:[%s1 + $0x90] sm:$0xff]
    %v276 = vld [vmem:[%s1 + $0x98] sm:$0xff]
    %v277 = vld [vmem:[%s1 + $0xa0] sm:$0xff]
    %v278 = vld [vmem:[%s1 + $0xa8] sm:$0xff]
    %v279 = vld [vmem:[%s1 + $0xb0] sm:$0xff]
    %v280 = vld [vmem:[%s1 + $0xb8] sm:$0xff]
    %v281 = vld [vmem:[%s1 + $0xc0] sm:$0xff]
    %v282 = vld [vmem:[%s1 + $0xc8] sm:$0xff]
    %v283 = vld [vmem:[%s1 + $0xd0] sm:$0xff]
    %v284 = vld [vmem:[%s1 + $0xd8] sm:$0xff]
    %v285 = vld [vmem:[%s1 + $0xe0] sm:$0xff]
    %v286 = vld [vmem:[%s1 + $0xe8] sm:$0xff]
    %v287 = vld [vmem:[%s1 + $0xf0] sm:$0xff]
    %v288 = vld [vmem:[%s1 + $0xf8] sm:$0xff]
    %v289 = vld [vmem:[#allocation3] sm:$0xf]
    %v290 = vld [vmem:[#allocation3 + $0x4] sm:$0xf]
    %v291 = vld [vmem:[#allocation3 + $0x8] sm:$0xf]
    %v292 = vld [vmem:[#allocation3 + $0xc] sm:$0xf]
    %v293 = vld [vmem:[#allocation3 + $0x10] sm:$0xf]
    %v294 = vld [vmem:[#allocation3 + $0x14] sm:$0xf]
    %v295 = vld [vmem:[#allocation3 + $0x18] sm:$0xf]
    %v296 = vld [vmem:[#allocation3 + $0x1c] sm:$0xf]
    %v297 = vld [vmem:[#allocation3 + $0x20] sm:$0xf]
    %v298 = vld [vmem:[#allocation3 + $0x24] sm:$0xf]
    %v299 = vld [vmem:[#allocation3 + $0x28] sm:$0xf]
    %v300 = vld [vmem:[#allocation3 + $0x2c] sm:$0xf]
    %v301 = vld [vmem:[#allocation3 + $0x30] sm:$0xf]
    %v302 = vld [vmem:[#allocation3 + $0x34] sm:$0xf]
    %v303 = vld [vmem:[#allocation3 + $0x38] sm:$0xf]
    %v304 = vld [vmem:[#allocation3 + $0x3c] sm:$0xf]
    %v305 = vld [vmem:[#allocation3 + $0x40] sm:$0xf]
    %v306 = vld [vmem:[#allocation3 + $0x44] sm:$0xf]
    %v307 = vld [vmem:[#allocation3 + $0x48] sm:$0xf]
    %v308 = vld [vmem:[#allocation3 + $0x4c] sm:$0xf]
    %v309 = vld [vmem:[#allocation3 + $0x50] sm:$0xf]
    %v310 = vld [vmem:[#allocation3 + $0x54] sm:$0xf]
    %v311 = vld [vmem:[#allocation3 + $0x58] sm:$0xf]
    %v312 = vld [vmem:[#allocation3 + $0x5c] sm:$0xf]
    %v313 = vld [vmem:[#allocation3 + $0x60] sm:$0xf]
    %v314 = vld [vmem:[#allocation3 + $0x64] sm:$0xf]
    %v315 = vld [vmem:[#allocation3 + $0x68] sm:$0xf]
    %v316 = vld [vmem:[#allocation3 + $0x6c] sm:$0xf]
    %v317 = vld [vmem:[#allocation3 + $0x70] sm:$0xf]
    %v318 = vld [vmem:[#allocation3 + $0x74] sm:$0xf]
    %v319 = vld [vmem:[#allocation3 + $0x78] sm:$0xf]
    %v320 = vld [vmem:[#allocation3 + $0x7c] sm:$0xf]
    %v353 = vunpack.c.l.b16 %v257
    %v354 = vunpack.c.h.b16 %v257
    %v355 = vunpack.c.l.b16 %v258
    %v356 = vunpack.c.h.b16 %v258
    %v357 = vunpack.c.l.b16 %v259
    %v358 = vunpack.c.h.b16 %v259
    %v359 = vunpack.c.l.b16 %v260
    %v360 = vunpack.c.h.b16 %v260
    %v361 = vunpack.c.l.b16 %v261
    %v362 = vunpack.c.h.b16 %v261
    %v363 = vunpack.c.l.b16 %v262
    %v364 = vunpack.c.h.b16 %v262
    %v365 = vunpack.c.l.b16 %v263
    %v366 = vunpack.c.h.b16 %v263
    %v367 = vunpack.c.l.b16 %v264
    %v368 = vunpack.c.h.b16 %v264
    %v369 = vunpack.c.l.b16 %v265
    %v370 = vunpack.c.h.b16 %v265
    %v371 = vunpack.c.l.b16 %v266
    %v372 = vunpack.c.h.b16 %v266
    %v373 = vunpack.c.l.b16 %v267
    %v374 = vunpack.c.h.b16 %v267
    %v375 = vunpack.c.l.b16 %v268
    %v376 = vunpack.c.h.b16 %v268
    %v377 = vunpack.c.l.b16 %v269
    %v378 = vunpack.c.h.b16 %v269
    %v379 = vunpack.c.l.b16 %v270
    %v380 = vunpack.c.h.b16 %v270
    %v381 = vunpack.c.l.b16 %v271
    %v382 = vunpack.c.h.b16 %v271
    %v383 = vunpack.c.l.b16 %v272
    %v384 = vunpack.c.h.b16 %v272
    %v385 = vunpack.c.l.b16 %v273
    %v386 = vunpack.c.h.b16 %v273
    %v387 = vunpack.c.l.b16 %v274
    %v388 = vunpack.c.h.b16 %v274
    %v389 = vunpack.c.l.b16 %v275
    %v390 = vunpack.c.h.b16 %v275
    %v391 = vunpack.c.l.b16 %v276
    %v392 = vunpack.c.h.b16 %v276
    %v393 = vunpack.c.l.b16 %v277
    %v394 = vunpack.c.h.b16 %v277
    %v395 = vunpack.c.l.b16 %v278
    %v396 = vunpack.c.h.b16 %v278
    %v397 = vunpack.c.l.b16 %v279
    %v398 = vunpack.c.h.b16 %v279
    %v399 = vunpack.c.l.b16 %v280
    %v400 = vunpack.c.h.b16 %v280
    %v401 = vunpack.c.l.b16 %v281
    %v402 = vunpack.c.h.b16 %v281
    %v403 = vunpack.c.l.b16 %v282
    %v404 = vunpack.c.h.b16 %v282
    %v405 = vunpack.c.l.b16 %v283
    %v406 = vunpack.c.h.b16 %v283
    %v407 = vunpack.c.l.b16 %v284
    %v408 = vunpack.c.h.b16 %v284
    %v409 = vunpack.c.l.b16 %v285
    %v410 = vunpack.c.h.b16 %v285
    %v411 = vunpack.c.l.b16 %v286
    %v412 = vunpack.c.h.b16 %v286
    %v413 = vunpack.c.l.b16 %v287
    %v414 = vunpack.c.h.b16 %v287
    %v415 = vunpack.c.l.b16 %v288
    %v416 = vunpack.c.h.b16 %v288
    %v417 = vpack.c.b16 %v355, %v353
    %v418 = vpack.c.b16 %v356, %v354
    %v419 = vpack.c.b16 %v359, %v357
    %v420 = vpack.c.b16 %v360, %v358
    %v421 = vpack.c.b16 %v363, %v361
    %v422 = vpack.c.b16 %v364, %v362
    %v423 = vpack.c.b16 %v367, %v365
    %v424 = vpack.c.b16 %v368, %v366
    %v425 = vpack.c.b16 %v371, %v369
    %v426 = vpack.c.b16 %v372, %v370
    %v427 = vpack.c.b16 %v375, %v373
    %v428 = vpack.c.b16 %v376, %v374
    %v429 = vpack.c.b16 %v379, %v377
    %v430 = vpack.c.b16 %v380, %v378
    %v431 = vpack.c.b16 %v383, %v381
    %v432 = vpack.c.b16 %v384, %v382
    %v433 = vpack.c.b16 %v387, %v385
    %v434 = vpack.c.b16 %v388, %v386
    %v435 = vpack.c.b16 %v391, %v389
    %v436 = vpack.c.b16 %v392, %v390
    %v437 = vpack.c.b16 %v395, %v393
    %v438 = vpack.c.b16 %v396, %v394
    %v439 = vpack.c.b16 %v399, %v397
    %v440 = vpack.c.b16 %v400, %v398
    %v441 = vpack.c.b16 %v403, %v401
    %v442 = vpack.c.b16 %v404, %v402
    %v443 = vpack.c.b16 %v407, %v405
    %v444 = vpack.c.b16 %v408, %v406
    %v445 = vpack.c.b16 %v411, %v409
    %v446 = vpack.c.b16 %v412, %v410
    %v447 = vpack.c.b16 %v415, %v413
    %v448 = vpack.c.b16 %v416, %v414
    %v513 = vunpack.c.l.b16 %v289
    %v514 = vunpack.c.l.b16 %v290
    %v515 = vunpack.c.l.b16 %v291
    %v516 = vunpack.c.l.b16 %v292
    %v517 = vunpack.c.l.b16 %v293
    %v518 = vunpack.c.l.b16 %v294
    %v519 = vunpack.c.l.b16 %v295
    %v520 = vunpack.c.l.b16 %v296
    %v521 = vunpack.c.l.b16 %v297
    %v522 = vunpack.c.l.b16 %v298
    %v523 = vunpack.c.l.b16 %v299
    %v524 = vunpack.c.l.b16 %v300
    %v525 = vunpack.c.l.b16 %v301
    %v526 = vunpack.c.l.b16 %v302
    %v527 = vunpack.c.l.b16 %v303
    %v528 = vunpack.c.l.b16 %v304
    %v529 = vunpack.c.l.b16 %v305
    %v530 = vunpack.c.l.b16 %v306
    %v531 = vunpack.c.l.b16 %v307
    %v532 = vunpack.c.l.b16 %v308
    %v533 = vunpack.c.l.b16 %v309
    %v534 = vunpack.c.l.b16 %v310
    %v535 = vunpack.c.l.b16 %v311
    %v536 = vunpack.c.l.b16 %v312
    %v537 = vunpack.c.l.b16 %v313
    %v538 = vunpack.c.l.b16 %v314
    %v539 = vunpack.c.l.b16 %v315
    %v540 = vunpack.c.l.b16 %v316
    %v541 = vunpack.c.l.b16 %v317
    %v542 = vunpack.c.l.b16 %v318
    %v543 = vunpack.c.l.b16 %v319
    %v544 = vunpack.c.l.b16 %v320
    %v545 = vpack.c.b16 %v514, %v513
    %v546 = vpack.c.b16 %v516, %v515
    %v547 = vpack.c.b16 %v518, %v517
    %v548 = vpack.c.b16 %v520, %v519
    %v549 = vpack.c.b16 %v522, %v521
    %v550 = vpack.c.b16 %v524, %v523
    %v551 = vpack.c.b16 %v526, %v525
    %v552 = vpack.c.b16 %v528, %v527
    %v553 = vpack.c.b16 %v530, %v529
    %v554 = vpack.c.b16 %v532, %v531
    %v555 = vpack.c.b16 %v534, %v533
    %v556 = vpack.c.b16 %v536, %v535
    %v557 = vpack.c.b16 %v538, %v537
    %v558 = vpack.c.b16 %v540, %v539
    %v559 = vpack.c.b16 %v542, %v541
    %v560 = vpack.c.b16 %v544, %v543
    %577 = vmatprep.subr.bf16.mxu0 0
    %578 = vmatpush1.bf16.msra.mxu0 %v545
    %579 = vmatprep.subr.bf16.mxu0 0
    %580 = vmatpush1.bf16.msra.mxu0 %v546
    %581 = vmatprep.subr.bf16.mxu0 0
    %582 = vmatpush1.bf16.msra.mxu0 %v547
    %583 = vmatprep.subr.bf16.mxu0 0
    %584 = vmatpush1.bf16.msra.mxu0 %v548
    %585 = vmatprep.subr.bf16.mxu0 0
    %586 = vmatpush1.bf16.msra.mxu0 %v549
    %587 = vmatprep.subr.bf16.mxu0 0
    %588 = vmatpush1.bf16.msra.mxu0 %v550
    %589 = vmatprep.subr.bf16.mxu0 0
    %590 = vmatpush1.bf16.msra.mxu0 %v551
    %591 = vmatprep.subr.bf16.mxu0 0
    %592 = vmatpush1.bf16.msra.mxu0 %v552
    %593 = vmatprep.subr.bf16.mxu0 0
    %594 = vmatpush1.bf16.msra.mxu0 %v553
    %595 = vmatprep.subr.bf16.mxu0 0
    %596 = vmatpush1.bf16.msra.mxu0 %v554
    %597 = vmatprep.subr.bf16.mxu0 0
    %598 = vmatpush1.bf16.msra.mxu0 %v555
    %599 = vmatprep.subr.bf16.mxu0 0
    %600 = vmatpush1.bf16.msra.mxu0 %v556
    %601 = vmatprep.subr.bf16.mxu0 0
    %602 = vmatpush1.bf16.msra.mxu0 %v557
    %603 = vmatprep.subr.bf16.mxu0 0
    %604 = vmatpush1.bf16.msra.mxu0 %v558
    %605 = vmatprep.subr.bf16.mxu0 0
    %606 = vmatpush1.bf16.msra.mxu0 %v559
    %607 = vmatprep.subr.bf16.mxu0 0
    %608 = vmatpush1.bf16.msra.mxu0 %v560
    %609 = vmatprep.mubr.bf16.mxu0 %v418
    %610 = vmatmul.mubr.bf16.gmra.mrb[0].mxu0 %v417
    %v611 = vpop.f32.mrb[0].mxu0
    %v612 = vadd.f32 0.0, %v611
    %v613 = vpop.f32.mrb[0].mxu0
    %v614 = vpop.f32.mrb[0].mxu0
    %v615 = vadd.f32 0.0, %v614
    %v616 = vpop.f32.mrb[0].mxu0
    %617 = vmatprep.mubr.bf16.mxu0 %v420
    %618 = vmatmul.mubr.bf16.gmra.mrb[0].mxu0 %v419
    %v619 = vpop.f32.mrb[0].mxu0
    %v620 = vadd.f32 0.0, %v619
    %v621 = vpop.f32.mrb[0].mxu0
    %v622 = vpop.f32.mrb[0].mxu0
    %v623 = vadd.f32 0.0, %v622
    %v624 = vpop.f32.mrb[0].mxu0
    %625 = vmatprep.mubr.bf16.mxu0 %v422
    %626 = vmatmul.mubr.bf16.gmra.mrb[0].mxu0 %v421
    %v627 = vpop.f32.mrb[0].mxu0
    %v628 = vadd.f32 0.0, %v627
    %v629 = vpop.f32.mrb[0].mxu0
    %v630 = vpop.f32.mrb[0].mxu0
    %v631 = vadd.f32 0.0, %v630
    %v632 = vpop.f32.mrb[0].mxu0
    %633 = vmatprep.mubr.bf16.mxu0 %v424
    %634 = vmatmul.mubr.bf16.gmra.mrb[0].mxu0 %v423
    %v635 = vpop.f32.mrb[0].mxu0
    %v636 = vadd.f32 0.0, %v635
    %v637 = vpop.f32.mrb[0].mxu0
    %v638 = vpop.f32.mrb[0].mxu0
    %v639 = vadd.f32 0.0, %v638
    %v640 = vpop.f32.mrb[0].mxu0
    %641 = vmatprep.mubr.bf16.mxu0 %v426
    %642 = vmatmul.mubr.bf16.gmra.mrb[0].mxu0 %v425
    %v643 = vpop.f32.mrb[0].mxu0
    %v644 = vadd.f32 0.0, %v643
    %v645 = vpop.f32.mrb[0].mxu0
    %v646 = vpop.f32.mrb[0].mxu0
    %v647 = vadd.f32 0.0, %v646
    %v648 = vpop.f32.mrb[0].mxu0
    %649 = vmatprep.mubr.bf16.mxu0 %v428
    %650 = vmatmul.mubr.bf16.gmra.mrb[0].mxu0 %v427
    %v651 = vpop.f32.mrb[0].mxu0
    %v652 = vadd.f32 0.0, %v651
    %v653 = vpop.f32.mrb[0].mxu0
    %v654 = vpop.f32.mrb[0].mxu0
    %v655 = vadd.f32 0.0, %v654
    %v656 = vpop.f32.mrb[0].mxu0
    %657 = vmatprep.mubr.bf16.mxu0 %v430
    %658 = vmatmul.mubr.bf16.gmra.mrb[0].mxu0 %v429
    %v659 = vpop.f32.mrb[0].mxu0
    %v660 = vadd.f32 0.0, %v659
    %v661 = vpop.f32.mrb[0].mxu0
    %v662 = vpop.f32.mrb[0].mxu0
    %v663 = vadd.f32 0.0, %v662
    %v664 = vpop.f32.mrb[0].mxu0
    %665 = vmatprep.mubr.bf16.mxu0 %v432
    %666 = vmatmul.mubr.bf16.gmra.mrb[0].mxu0 %v431
    %v667 = vpop.f32.mrb[0].mxu0
    %v668 = vadd.f32 0.0, %v667
    %v669 = vpop.f32.mrb[0].mxu0
    %v670 = vpop.f32.mrb[0].mxu0
    %v671 = vadd.f32 0.0, %v670
    %v672 = vpop.f32.mrb[0].mxu0
    %673 = vmatprep.mubr.bf16.mxu0 %v434
    %674 = vmatmul.mubr.bf16.gmra.mrb[0].mxu0 %v433
    %v675 = vpop.f32.mrb[0].mxu0
    %v676 = vadd.f32 0.0, %v675
    %v677 = vpop.f32.mrb[0].mxu0
    %v678 = vpop.f32.mrb[0].mxu0
    %v679 = vadd.f32 0.0, %v678
    %v680 = vpop.f32.mrb[0].mxu0
    %681 = vmatprep.mubr.bf16.mxu0 %v436
    %682 = vmatmul.mubr.bf16.gmra.mrb[0].mxu0 %v435
    %v683 = vpop.f32.mrb[0].mxu0
    %v684 = vadd.f32 0.0, %v683
    %v685 = vpop.f32.mrb[0].mxu0
    %v686 = vpop.f32.mrb[0].mxu0
    %v687 = vadd.f32 0.0, %v686
    %v688 = vpop.f32.mrb[0].mxu0
    %689 = vmatprep.mubr.bf16.mxu0 %v438
    %690 = vmatmul.mubr.bf16.gmra.mrb[0].mxu0 %v437
    %v691 = vpop.f32.mrb[0].mxu0
    %v692 = vadd.f32 0.0, %v691
    %v693 = vpop.f32.mrb[0].mxu0
    %v694 = vpop.f32.mrb[0].mxu0
    %v695 = vadd.f32 0.0, %v694
    %v696 = vpop.f32.mrb[0].mxu0
    %697 = vmatprep.mubr.bf16.mxu0 %v440
    %698 = vmatmul.mubr.bf16.gmra.mrb[0].mxu0 %v439
    %v699 = vpop.f32.mrb[0].mxu0
    %v700 = vadd.f32 0.0, %v699
    %v701 = vpop.f32.mrb[0].mxu0
    %v702 = vpop.f32.mrb[0].mxu0
    %v703 = vadd.f32 0.0, %v702
    %v704 = vpop.f32.mrb[0].mxu0
    %705 = vmatprep.mubr.bf16.mxu0 %v442
    %706 = vmatmul.mubr.bf16.gmra.mrb[0].mxu0 %v441
    %v707 = vpop.f32.mrb[0].mxu0
    %v708 = vadd.f32 0.0, %v707
    %v709 = vpop.f32.mrb[0].mxu0
    %v710 = vpop.f32.mrb[0].mxu0
    %v711 = vadd.f32 0.0, %v710
    %v712 = vpop.f32.mrb[0].mxu0
    %713 = vmatprep.mubr.bf16.mxu0 %v444
    %714 = vmatmul.mubr.bf16.gmra.mrb[0].mxu0 %v443
    %v715 = vpop.f32.mrb[0].mxu0
    %v716 = vadd.f32 0.0, %v715
    %v717 = vpop.f32.mrb[0].mxu0
    %v718 = vpop.f32.mrb[0].mxu0
    %v719 = vadd.f32 0.0, %v718
    %v720 = vpop.f32.mrb[0].mxu0
    %721 = vmatprep.mubr.bf16.mxu0 %v446
    %722 = vmatmul.mubr.bf16.gmra.mrb[0].mxu0 %v445
    %v723 = vpop.f32.mrb[0].mxu0
    %v724 = vadd.f32 0.0, %v723
    %v725 = vpop.f32.mrb[0].mxu0
    %v726 = vpop.f32.mrb[0].mxu0
    %v727 = vadd.f32 0.0, %v726
    %v728 = vpop.f32.mrb[0].mxu0
    %729 = vmatprep.mubr.bf16.mxu0 %v448
    %730 = vmatmul.mubr.bf16.gmra.mrb[0].mxu0 %v447
    %v731 = vpop.f32.mrb[0].mxu0
    %v732 = vadd.f32 0.0, %v731
    %v733 = vpop.f32.mrb[0].mxu0
    %v734 = vpop.f32.mrb[0].mxu0
    %v735 = vadd.f32 0.0, %v734
    %v736 = vpop.f32.mrb[0].mxu0
    %737 = vdwg.mxu0
    %v738 = vadd.f32 %v225, %v612
    %v739 = vadd.f32 %v226, %v615
    %v740 = vadd.f32 %v227, %v620
    %v741 = vadd.f32 %v228, %v623
    %v742 = vadd.f32 %v229, %v628
    %v743 = vadd.f32 %v230, %v631
    %v744 = vadd.f32 %v231, %v636
    %v745 = vadd.f32 %v232, %v639
    %v746 = vadd.f32 %v233, %v644
    %v747 = vadd.f32 %v234, %v647
    %v748 = vadd.f32 %v235, %v652
    %v749 = vadd.f32 %v236, %v655
    %v750 = vadd.f32 %v237, %v660
    %v751 = vadd.f32 %v238, %v663
    %v752 = vadd.f32 %v239, %v668
    %v753 = vadd.f32 %v240, %v671
    %v754 = vadd.f32 %v241, %v676
    %v755 = vadd.f32 %v242, %v679
    %v756 = vadd.f32 %v243, %v684
    %v757 = vadd.f32 %v244, %v687
    %v758 = vadd.f32 %v245, %v692
    %v759 = vadd.f32 %v246, %v695
    %v760 = vadd.f32 %v247, %v700
    %v761 = vadd.f32 %v248, %v703
    %v762 = vadd.f32 %v249, %v708
    %v763 = vadd.f32 %v250, %v711
    %v764 = vadd.f32 %v251, %v716
    %v765 = vadd.f32 %v252, %v719
    %v766 = vadd.f32 %v253, %v724
    %v767 = vadd.f32 %v254, %v727
    %v768 = vadd.f32 %v255, %v732
    %v769 = vadd.f32 %v256, %v735
    %770 = vst [vmem:[#allocation2] sm:$0xff] %v738
    %771 = vst [vmem:[#allocation2 + $0x8] sm:$0xff] %v739
    %772 = vst [vmem:[#allocation2 + $0x10] sm:$0xff] %v740
    %773 = vst [vmem:[#allocation2 + $0x18] sm:$0xff] %v741
    %774 = vst [vmem:[#allocation2 + $0x20] sm:$0xff] %v742
    %775 = vst [vmem:[#allocation2 + $0x28] sm:$0xff] %v743
    %776 = vst [vmem:[#allocation2 + $0x30] sm:$0xff] %v744
    %777 = vst [vmem:[#allocation2 + $0x38] sm:$0xff] %v745
    %778 = vst [vmem:[#allocation2 + $0x40] sm:$0xff] %v746
    %779 = vst [vmem:[#allocation2 + $0x48] sm:$0xff] %v747
    %780 = vst [vmem:[#allocation2 + $0x50] sm:$0xff] %v748
    %781 = vst [vmem:[#allocation2 + $0x58] sm:$0xff] %v749
    %782 = vst [vmem:[#allocation2 + $0x60] sm:$0xff] %v750
    %783 = vst [vmem:[#allocation2 + $0x68] sm:$0xff] %v751
    %784 = vst [vmem:[#allocation2 + $0x70] sm:$0xff] %v752
    %785 = vst [vmem:[#allocation2 + $0x78] sm:$0xff] %v753
    %786 = vst [vmem:[#allocation2 + $0x80] sm:$0xff] %v754
    %787 = vst [vmem:[#allocation2 + $0x88] sm:$0xff] %v755
    %788 = vst [vmem:[#allocation2 + $0x90] sm:$0xff] %v756
    %789 = vst [vmem:[#allocation2 + $0x98] sm:$0xff] %v757
    %790 = vst [vmem:[#allocation2 + $0xa0] sm:$0xff] %v758
    %791 = vst [vmem:[#allocation2 + $0xa8] sm:$0xff] %v759
    %792 = vst [vmem:[#allocation2 + $0xb0] sm:$0xff] %v760
    %793 = vst [vmem:[#allocation2 + $0xb8] sm:$0xff] %v761
    %794 = vst [vmem:[#allocation2 + $0xc0] sm:$0xff] %v762
    %795 = vst [vmem:[#allocation2 + $0xc8] sm:$0xff] %v763
    %796 = vst [vmem:[#allocation2 + $0xd0] sm:$0xff] %v764
    %797 = vst [vmem:[#allocation2 + $0xd8] sm:$0xff] %v765
    %798 = vst [vmem:[#allocation2 + $0xe0] sm:$0xff] %v766
    %799 = vst [vmem:[#allocation2 + $0xe8] sm:$0xff] %v767
    %800 = vst [vmem:[#allocation2 + $0xf0] sm:$0xff] %v768
    %801 = vst [vmem:[#allocation2 + $0xf8] sm:$0xff] %v769
    // Predicated region
    $region71: #{gnn_encoder_forward.5} parent=1 // pred_check
      %p802 = pneg %p189
    $region72: #{gnn_encoder_forward.5} parent=1 // pred_check_branch
      %804 = sbr.rel (%p802) target = $region74
    $region73: #{gnn_encoder_forward.5} parent=1 // pred_region
      %v805 = vld [vmem:[#allocation2] sm:$0xff]
      %v806 = vld [vmem:[#allocation2 + $0x8] sm:$0xff]
      %v807 = vld [vmem:[#allocation2 + $0x10] sm:$0xff]
      %v808 = vld [vmem:[#allocation2 + $0x18] sm:$0xff]
      %v809 = vld [vmem:[#allocation2 + $0x20] sm:$0xff]
      %v810 = vld [vmem:[#allocation2 + $0x28] sm:$0xff]
      %v811 = vld [vmem:[#allocation2 + $0x30] sm:$0xff]
      %v812 = vld [vmem:[#allocation2 + $0x38] sm:$0xff]
      %v813 = vld [vmem:[#allocation2 + $0x40] sm:$0xff]
      %v814 = vld [vmem:[#allocation2 + $0x48] sm:$0xff]
      %v815 = vld [vmem:[#allocation2 + $0x50] sm:$0xff]
      %v816 = vld [vmem:[#allocation2 + $0x58] sm:$0xff]
      %v817 = vld [vmem:[#allocation2 + $0x60] sm:$0xff]
      %v818 = vld [vmem:[#allocation2 + $0x68] sm:$0xff]
      %v819 = vld [vmem:[#allocation2 + $0x70] sm:$0xff]
      %v820 = vld [vmem:[#allocation2 + $0x78] sm:$0xff]
      %v821 = vld [vmem:[#allocation2 + $0x80] sm:$0xff]
      %v822 = vld [vmem:[#allocation2 + $0x88] sm:$0xff]
      %v823 = vld [vmem:[#allocation2 + $0x90] sm:$0xff]
      %v824 = vld [vmem:[#allocation2 + $0x98] sm:$0xff]
      %v825 = vld [vmem:[#allocation2 + $0xa0] sm:$0xff]
      %v826 = vld [vmem:[#allocation2 + $0xa8] sm:$0xff]
      %v827 = vld [vmem:[#allocation2 + $0xb0] sm:$0xff]
      %v828 = vld [vmem:[#allocation2 + $0xb8] sm:$0xff]
      %v829 = vld [vmem:[#allocation2 + $0xc0] sm:$0xff]
      %v830 = vld [vmem:[#allocation2 + $0xc8] sm:$0xff]
      %v831 = vld [vmem:[#allocation2 + $0xd0] sm:$0xff]
      %v832 = vld [vmem:[#allocation2 + $0xd8] sm:$0xff]
      %v833 = vld [vmem:[#allocation2 + $0xe0] sm:$0xff]
      %v834 = vld [vmem:[#allocation2 + $0xe8] sm:$0xff]
      %v835 = vld [vmem:[#allocation2 + $0xf0] sm:$0xff]
      %v836 = vld [vmem:[#allocation2 + $0xf8] sm:$0xff]
      %v837 = vpack.c.bf16 %v806, %v805
      %v838 = vpack.c.bf16 %v808, %v807
      %v839 = vpack.c.bf16 %v810, %v809
      %v840 = vpack.c.bf16 %v812, %v811
      %v841 = vpack.c.bf16 %v814, %v813
      %v842 = vpack.c.bf16 %v816, %v815
      %v843 = vpack.c.bf16 %v818, %v817
      %v844 = vpack.c.bf16 %v820, %v819
      %v845 = vpack.c.bf16 %v822, %v821
      %v846 = vpack.c.bf16 %v824, %v823
      %v847 = vpack.c.bf16 %v826, %v825
      %v848 = vpack.c.bf16 %v828, %v827
      %v849 = vpack.c.bf16 %v830, %v829
      %v850 = vpack.c.bf16 %v832, %v831
      %v851 = vpack.c.bf16 %v834, %v833
      %v852 = vpack.c.bf16 %v836, %v835
      %v853 = vld [vmem:[%s2] sm:$0xf]
      %v854 = vld [vmem:[%s2 + $0x4] sm:$0xf]
      %v855 = vld [vmem:[%s2 + $0x8] sm:$0xf]
      %v856 = vld [vmem:[%s2 + $0xc] sm:$0xf]
      %v857 = vld [vmem:[%s2 + $0x10] sm:$0xf]
      %v858 = vld [vmem:[%s2 + $0x14] sm:$0xf]
      %v859 = vld [vmem:[%s2 + $0x18] sm:$0xf]
      %v860 = vld [vmem:[%s2 + $0x1c] sm:$0xf]
      %v861 = vld [vmem:[%s2 + $0x20] sm:$0xf]
      %v862 = vld [vmem:[%s2 + $0x24] sm:$0xf]
      %v863 = vld [vmem:[%s2 + $0x28] sm:$0xf]
      %v864 = vld [vmem:[%s2 + $0x2c] sm:$0xf]
      %v865 = vld [vmem:[%s2 + $0x30] sm:$0xf]
      %v866 = vld [vmem:[%s2 + $0x34] sm:$0xf]
      %v867 = vld [vmem:[%s2 + $0x38] sm:$0xf]
      %v868 = vld [vmem:[%s2 + $0x3c] sm:$0xf]
      %v869 = vld [vmem:[%s3] sm:$0x1]
      %v871 = vlaneseq
      %v872 = vshrl.u32 %v871, 7
      %v873 = vsub.s32 0, %v872
      %v874 = vrot.slane %v869, %v873
      %v892 = vunpack.c.l.b16 %v853
      %v893 = vunpack.c.l.b16 %v854
      %v894 = vunpack.c.l.b16 %v855
      %v895 = vunpack.c.l.b16 %v856
      %v896 = vunpack.c.l.b16 %v857
      %v897 = vunpack.c.l.b16 %v858
      %v898 = vunpack.c.l.b16 %v859
      %v899 = vunpack.c.l.b16 %v860
      %v900 = vunpack.c.l.b16 %v861
      %v901 = vunpack.c.l.b16 %v862
      %v902 = vunpack.c.l.b16 %v863
      %v903 = vunpack.c.l.b16 %v864
      %v904 = vunpack.c.l.b16 %v865
      %v905 = vunpack.c.l.b16 %v866
      %v906 = vunpack.c.l.b16 %v867
      %v907 = vunpack.c.l.b16 %v868
      %v908 = vpack.c.b16 %v893, %v892
      %v909 = vpack.c.b16 %v895, %v894
      %v910 = vpack.c.b16 %v897, %v896
      %v911 = vpack.c.b16 %v899, %v898
      %v912 = vpack.c.b16 %v901, %v900
      %v913 = vpack.c.b16 %v903, %v902
      %v914 = vpack.c.b16 %v905, %v904
      %v915 = vpack.c.b16 %v907, %v906
      %924 = vmatprep.subr.bf16.mxu0 0
      %925 = vmatpush1.bf16.msra.mxu0 %v908
      %926 = vmatprep.subr.bf16.mxu0 0
      %927 = vmatpush1.bf16.msra.mxu0 %v909
      %928 = vmatprep.subr.bf16.mxu0 0
      %929 = vmatpush1.bf16.msra.mxu0 %v910
      %930 = vmatprep.subr.bf16.mxu0 0
      %931 = vmatpush1.bf16.msra.mxu0 %v911
      %932 = vmatprep.subr.bf16.mxu0 0
      %933 = vmatpush1.bf16.msra.mxu0 %v912
      %934 = vmatprep.subr.bf16.mxu0 0
      %935 = vmatpush1.bf16.msra.mxu0 %v913
      %936 = vmatprep.subr.bf16.mxu0 0
      %937 = vmatpush1.bf16.msra.mxu0 %v914
      %938 = vmatprep.subr.bf16.mxu0 0
      %939 = vmatpush1.bf16.msra.mxu0 %v915
      %940 = vmatprep.subr.bf16.mxu0 0
      %941 = vmatpush1.bf16.msra.mxu0 0
      %942 = vmatprep.subr.bf16.mxu0 0
      %943 = vmatpush1.bf16.msra.mxu0 0
      %944 = vmatprep.subr.bf16.mxu0 0
      %945 = vmatpush1.bf16.msra.mxu0 0
      %946 = vmatprep.subr.bf16.mxu0 0
      %947 = vmatpush1.bf16.msra.mxu0 0
      %948 = vmatprep.subr.bf16.mxu0 0
      %949 = vmatpush1.bf16.msra.mxu0 0
      %950 = vmatprep.subr.bf16.mxu0 0
      %951 = vmatpush1.bf16.msra.mxu0 0
      %952 = vmatprep.subr.bf16.mxu0 0
      %953 = vmatpush1.bf16.msra.mxu0 0
      %954 = vmatprep.subr.bf16.mxu0 0
      %955 = vmatpush1.bf16.msra.mxu0 0
      %956 = vmatprep.mubr.bf16.mxu0 0
      %957 = vmatmul.mubr.bf16.gmra.mrb[0].mxu0 %v837
      %v958 = vpop.f32.mrb[0].mxu0
      %v959 = vadd.f32 %v874, %v958
      %v960 = vpop.f32.mrb[0].mxu0
      %v961 = vpop.f32.mrb[0].mxu0
      %v962 = vadd.f32 %v874, %v961
      %v963 = vpop.f32.mrb[0].mxu0
      %964 = vmatprep.mubr.bf16.mxu0 0
      %965 = vmatmul.mubr.bf16.gmra.mrb[0].mxu0 %v838
      %v966 = vpop.f32.mrb[0].mxu0
      %v967 = vadd.f32 %v874, %v966
      %v968 = vpop.f32.mrb[0].mxu0
      %v969 = vpop.f32.mrb[0].mxu0
      %v970 = vadd.f32 %v874, %v969
      %v971 = vpop.f32.mrb[0].mxu0
      %972 = vmatprep.mubr.bf16.mxu0 0
      %973 = vmatmul.mubr.bf16.gmra.mrb[0].mxu0 %v839
      %v974 = vpop.f32.mrb[0].mxu0
      %v975 = vadd.f32 %v874, %v974
      %v976 = vpop.f32.mrb[0].mxu0
      %v977 = vpop.f32.mrb[0].mxu0
      %v978 = vadd.f32 %v874, %v977
      %v979 = vpop.f32.mrb[0].mxu0
      %980 = vmatprep.mubr.bf16.mxu0 0
      %981 = vmatmul.mubr.bf16.gmra.mrb[0].mxu0 %v840
      %v982 = vpop.f32.mrb[0].mxu0
      %v983 = vadd.f32 %v874, %v982
      %v984 = vpop.f32.mrb[0].mxu0
      %v985 = vpop.f32.mrb[0].mxu0
      %v986 = vadd.f32 %v874, %v985
      %v987 = vpop.f32.mrb[0].mxu0
      %988 = vmatprep.mubr.bf16.mxu0 0
      %989 = vmatmul.mubr.bf16.gmra.mrb[0].mxu0 %v841
      %v990 = vpop.f32.mrb[0].mxu0
      %v991 = vadd.f32 %v874, %v990
      %v992 = vpop.f32.mrb[0].mxu0
      %v993 = vpop.f32.mrb[0].mxu0
      %v994 = vadd.f32 %v874, %v993
      %v995 = vpop.f32.mrb[0].mxu0
      %996 = vmatprep.mubr.bf16.mxu0 0
      %997 = vmatmul.mubr.bf16.gmra.mrb[0].mxu0 %v842
      %v998 = vpop.f32.mrb[0].mxu0
      %v999 = vadd.f32 %v874, %v998
      %v1000 = vpop.f32.mrb[0].mxu0
      %v1001 = vpop.f32.mrb[0].mxu0
      %v1002 = vadd.f32 %v874, %v1001
      %v1003 = vpop.f32.mrb[0].mxu0
      %1004 = vmatprep.mubr.bf16.mxu0 0
      %1005 = vmatmul.mubr.bf16.gmra.mrb[0].mxu0 %v843
      %v1006 = vpop.f32.mrb[0].mxu0
      %v1007 = vadd.f32 %v874, %v1006
      %v1008 = vpop.f32.mrb[0].mxu0
      %v1009 = vpop.f32.mrb[0].mxu0
      %v1010 = vadd.f32 %v874, %v1009
      %v1011 = vpop.f32.mrb[0].mxu0
      %1012 = vmatprep.mubr.bf16.mxu0 0
      %1013 = vmatmul.mubr.bf16.gmra.mrb[0].mxu0 %v844
      %v1014 = vpop.f32.mrb[0].mxu0
      %v1015 = vadd.f32 %v874, %v1014
      %v1016 = vpop.f32.mrb[0].mxu0
      %v1017 = vpop.f32.mrb[0].mxu0
      %v1018 = vadd.f32 %v874, %v1017
      %v1019 = vpop.f32.mrb[0].mxu0
      %1020 = vmatprep.mubr.bf16.mxu0 0
      %1021 = vmatmul.mubr.bf16.gmra.mrb[0].mxu0 %v845
      %v1022 = vpop.f32.mrb[0].mxu0
      %v1023 = vadd.f32 %v874, %v1022
      %v1024 = vpop.f32.mrb[0].mxu0
      %v1025 = vpop.f32.mrb[0].mxu0
      %v1026 = vadd.f32 %v874, %v1025
      %v1027 = vpop.f32.mrb[0].mxu0
      %1028 = vmatprep.mubr.bf16.mxu0 0
      %1029 = vmatmul.mubr.bf16.gmra.mrb[0].mxu0 %v846
      %v1030 = vpop.f32.mrb[0].mxu0
      %v1031 = vadd.f32 %v874, %v1030
      %v1032 = vpop.f32.mrb[0].mxu0
      %v1033 = vpop.f32.mrb[0].mxu0
      %v1034 = vadd.f32 %v874, %v1033
      %v1035 = vpop.f32.mrb[0].mxu0
      %1036 = vmatprep.mubr.bf16.mxu0 0
      %1037 = vmatmul.mubr.bf16.gmra.mrb[0].mxu0 %v847
      %v1038 = vpop.f32.mrb[0].mxu0
      %v1039 = vadd.f32 %v874, %v1038
      %v1040 = vpop.f32.mrb[0].mxu0
      %v1041 = vpop.f32.mrb[0].mxu0
      %v1042 = vadd.f32 %v874, %v1041
      %v1043 = vpop.f32.mrb[0].mxu0
      %1044 = vmatprep.mubr.bf16.mxu0 0
      %1045 = vmatmul.mubr.bf16.gmra.mrb[0].mxu0 %v848
      %v1046 = vpop.f32.mrb[0].mxu0
      %v1047 = vadd.f32 %v874, %v1046
      %v1048 = vpop.f32.mrb[0].mxu0
      %v1049 = vpop.f32.mrb[0].mxu0
      %v1050 = vadd.f32 %v874, %v1049
      %v1051 = vpop.f32.mrb[0].mxu0
      %1052 = vmatprep.mubr.bf16.mxu0 0
      %1053 = vmatmul.mubr.bf16.gmra.mrb[0].mxu0 %v849
      %v1054 = vpop.f32.mrb[0].mxu0
      %v1055 = vadd.f32 %v874, %v1054
      %v1056 = vpop.f32.mrb[0].mxu0
      %v1057 = vpop.f32.mrb[0].mxu0
      %v1058 = vadd.f32 %v874, %v1057
      %v1059 = vpop.f32.mrb[0].mxu0
      %1060 = vmatprep.mubr.bf16.mxu0 0
      %1061 = vmatmul.mubr.bf16.gmra.mrb[0].mxu0 %v850
      %v1062 = vpop.f32.mrb[0].mxu0
      %v1063 = vadd.f32 %v874, %v1062
      %v1064 = vpop.f32.mrb[0].mxu0
      %v1065 = vpop.f32.mrb[0].mxu0
      %v1066 = vadd.f32 %v874, %v1065
      %v1067 = vpop.f32.mrb[0].mxu0
      %1068 = vmatprep.mubr.bf16.mxu0 0
      %1069 = vmatmul.mubr.bf16.gmra.mrb[0].mxu0 %v851
      %v1070 = vpop.f32.mrb[0].mxu0
      %v1071 = vadd.f32 %v874, %v1070
      %v1072 = vpop.f32.mrb[0].mxu0
      %v1073 = vpop.f32.mrb[0].mxu0
      %v1074 = vadd.f32 %v874, %v1073
      %v1075 = vpop.f32.mrb[0].mxu0
      %1076 = vmatprep.mubr.bf16.mxu0 0
      %1077 = vmatmul.mubr.bf16.gmra.mrb[0].mxu0 %v852
      %v1078 = vpop.f32.mrb[0].mxu0
      %v1079 = vadd.f32 %v874, %v1078
      %v1080 = vpop.f32.mrb[0].mxu0
      %v1081 = vpop.f32.mrb[0].mxu0
      %v1082 = vadd.f32 %v874, %v1081
      %v1083 = vpop.f32.mrb[0].mxu0
      %1084 = vdwg.mxu0
      %v1085 = vmax.f32 %v959, 0.0
      %v1086 = vmax.f32 %v962, 0.0
      %v1087 = vmax.f32 %v967, 0.0
      %v1088 = vmax.f32 %v970, 0.0
      %v1089 = vmax.f32 %v975, 0.0
      %v1090 = vmax.f32 %v978, 0.0
      %v1091 = vmax.f32 %v983, 0.0
      %v1092 = vmax.f32 %v986, 0.0
      %v1093 = vmax.f32 %v991, 0.0
      %v1094 = vmax.f32 %v994, 0.0
      %v1095 = vmax.f32 %v999, 0.0
      %v1096 = vmax.f32 %v1002, 0.0
      %v1097 = vmax.f32 %v1007, 0.0
      %v1098 = vmax.f32 %v1010, 0.0
      %v1099 = vmax.f32 %v1015, 0.0
      %v1100 = vmax.f32 %v1018, 0.0
      %v1101 = vmax.f32 %v1023, 0.0
      %v1102 = vmax.f32 %v1026, 0.0
      %v1103 = vmax.f32 %v1031, 0.0
      %v1104 = vmax.f32 %v1034, 0.0
      %v1105 = vmax.f32 %v1039, 0.0
      %v1106 = vmax.f32 %v1042, 0.0
      %v1107 = vmax.f32 %v1047, 0.0
      %v1108 = vmax.f32 %v1050, 0.0
      %v1109 = vmax.f32 %v1055, 0.0
      %v1110 = vmax.f32 %v1058, 0.0
      %v1111 = vmax.f32 %v1063, 0.0
      %v1112 = vmax.f32 %v1066, 0.0
      %v1113 = vmax.f32 %v1071, 0.0
      %v1114 = vmax.f32 %v1074, 0.0
      %v1115 = vmax.f32 %v1079, 0.0
      %v1116 = vmax.f32 %v1082, 0.0
      %v1117 = vpack.c.bf16 %v1086, %v1085
      %v1118 = vpack.c.bf16 %v1088, %v1087
      %v1119 = vpack.c.bf16 %v1090, %v1089
      %v1120 = vpack.c.bf16 %v1092, %v1091
      %v1121 = vpack.c.bf16 %v1094, %v1093
      %v1122 = vpack.c.bf16 %v1096, %v1095
      %v1123 = vpack.c.bf16 %v1098, %v1097
      %v1124 = vpack.c.bf16 %v1100, %v1099
      %v1125 = vpack.c.bf16 %v1102, %v1101
      %v1126 = vpack.c.bf16 %v1104, %v1103
      %v1127 = vpack.c.bf16 %v1106, %v1105
      %v1128 = vpack.c.bf16 %v1108, %v1107
      %v1129 = vpack.c.bf16 %v1110, %v1109
      %v1130 = vpack.c.bf16 %v1112, %v1111
      %v1131 = vpack.c.bf16 %v1114, %v1113
      %v1132 = vpack.c.bf16 %v1116, %v1115
      %v1133 = vld [vmem:[%s4] sm:$0xf]
      %v1134 = vld [vmem:[%s4 + $0x4] sm:$0xf]
      %v1135 = vld [vmem:[%s4 + $0x8] sm:$0xf]
      %v1136 = vld [vmem:[%s4 + $0xc] sm:$0xf]
      %v1137 = vld [vmem:[%s4 + $0x10] sm:$0xf]
      %v1138 = vld [vmem:[%s4 + $0x14] sm:$0xf]
      %v1139 = vld [vmem:[%s4 + $0x18] sm:$0xf]
      %v1140 = vld [vmem:[%s4 + $0x1c] sm:$0xf]
      %v1141 = vld [vmem:[%s4 + $0x20] sm:$0xf]
      %v1142 = vld [vmem:[%s4 + $0x24] sm:$0xf]
      %v1143 = vld [vmem:[%s4 + $0x28] sm:$0xf]
      %v1144 = vld [vmem:[%s4 + $0x2c] sm:$0xf]
      %v1145 = vld [vmem:[%s4 + $0x30] sm:$0xf]
      %v1146 = vld [vmem:[%s4 + $0x34] sm:$0xf]
      %v1147 = vld [vmem:[%s4 + $0x38] sm:$0xf]
      %v1148 = vld [vmem:[%s4 + $0x3c] sm:$0xf]
      %v1149 = vld [vmem:[%s5] sm:$0x1]
      %v1151 = vlaneseq
      %v1152 = vshrl.u32 %v1151, 7
      %v1153 = vsub.s32 0, %v1152
      %v1154 = vrot.slane %v1149, %v1153
      %v1172 = vunpack.c.l.b16 %v1133
      %v1173 = vunpack.c.l.b16 %v1134
      %v1174 = vunpack.c.l.b16 %v1135
      %v1175 = vunpack.c.l.b16 %v1136
      %v1176 = vunpack.c.l.b16 %v1137
      %v1177 = vunpack.c.l.b16 %v1138
      %v1178 = vunpack.c.l.b16 %v1139
      %v1179 = vunpack.c.l.b16 %v1140
      %v1180 = vunpack.c.l.b16 %v1141
      %v1181 = vunpack.c.l.b16 %v1142
      %v1182 = vunpack.c.l.b16 %v1143
      %v1183 = vunpack.c.l.b16 %v1144
      %v1184 = vunpack.c.l.b16 %v1145
      %v1185 = vunpack.c.l.b16 %v1146
      %v1186 = vunpack.c.l.b16 %v1147
      %v1187 = vunpack.c.l.b16 %v1148
      %v1188 = vpack.c.b16 %v1173, %v1172
      %v1189 = vpack.c.b16 %v1175, %v1174
      %v1190 = vpack.c.b16 %v1177, %v1176
      %v1191 = vpack.c.b16 %v1179, %v1178
      %v1192 = vpack.c.b16 %v1181, %v1180
      %v1193 = vpack.c.b16 %v1183, %v1182
      %v1194 = vpack.c.b16 %v1185, %v1184
      %v1195 = vpack.c.b16 %v1187, %v1186
      %1204 = vmatprep.subr.bf16.mxu0 0
      %1205 = vmatpush1.bf16.msra.mxu0 %v1188
      %1206 = vmatprep.subr.bf16.mxu0 0
      %1207 = vmatpush1.bf16.msra.mxu0 %v1189
      %1208 = vmatprep.subr.bf16.mxu0 0
      %1209 = vmatpush1.bf16.msra.mxu0 %v1190
      %1210 = vmatprep.subr.bf16.mxu0 0
      %1211 = vmatpush1.bf16.msra.mxu0 %v1191
      %1212 = vmatprep.subr.bf16.mxu0 0
      %1213 = vmatpush1.bf16.msra.mxu0 %v1192
      %1214 = vmatprep.subr.bf16.mxu0 0
      %1215 = vmatpush1.bf16.msra.mxu0 %v1193
      %1216 = vmatprep.subr.bf16.mxu0 0
      %1217 = vmatpush1.bf16.msra.mxu0 %v1194
      %1218 = vmatprep.subr.bf16.mxu0 0
      %1219 = vmatpush1.bf16.msra.mxu0 %v1195
      %1220 = vmatprep.subr.bf16.mxu0 0
      %1221 = vmatpush1.bf16.msra.mxu0 0
      %1222 = vmatprep.subr.bf16.mxu0 0
      %1223 = vmatpush1.bf16.msra.mxu0 0
      %1224 = vmatprep.subr.bf16.mxu0 0
      %1225 = vmatpush1.bf16.msra.mxu0 0
      %1226 = vmatprep.subr.bf16.mxu0 0
      %1227 = vmatpush1.bf16.msra.mxu0 0
      %1228 = vmatprep.subr.bf16.mxu0 0
      %1229 = vmatpush1.bf16.msra.mxu0 0
      %1230 = vmatprep.subr.bf16.mxu0 0
      %1231 = vmatpush1.bf16.msra.mxu0 0
      %1232 = vmatprep.subr.bf16.mxu0 0
      %1233 = vmatpush1.bf16.msra.mxu0 0
      %1234 = vmatprep.subr.bf16.mxu0 0
      %1235 = vmatpush1.bf16.msra.mxu0 0
      %1236 = vmatprep.mubr.bf16.mxu0 0
      %1237 = vmatmul.mubr.bf16.gmra.mrb[0].mxu0 %v1117
      %v1238 = vpop.f32.mrb[0].mxu0
      %v1239 = vadd.f32 %v1154, %v1238
      %v1240 = vpop.f32.mrb[0].mxu0
      %v1241 = vpop.f32.mrb[0].mxu0
      %v1242 = vadd.f32 %v1154, %v1241
      %v1243 = vpop.f32.mrb[0].mxu0
      %1244 = vmatprep.mubr.bf16.mxu0 0
      %1245 = vmatmul.mubr.bf16.gmra.mrb[0].mxu0 %v1118
      %v1246 = vpop.f32.mrb[0].mxu0
      %v1247 = vadd.f32 %v1154, %v1246
      %v1248 = vpop.f32.mrb[0].mxu0
      %v1249 = vpop.f32.mrb[0].mxu0
      %v1250 = vadd.f32 %v1154, %v1249
      %v1251 = vpop.f32.mrb[0].mxu0
      %1252 = vmatprep.mubr.bf16.mxu0 0
      %1253 = vmatmul.mubr.bf16.gmra.mrb[0].mxu0 %v1119
      %v1254 = vpop.f32.mrb[0].mxu0
      %v1255 = vadd.f32 %v1154, %v1254
      %v1256 = vpop.f32.mrb[0].mxu0
      %v1257 = vpop.f32.mrb[0].mxu0
      %v1258 = vadd.f32 %v1154, %v1257
      %v1259 = vpop.f32.mrb[0].mxu0
      %1260 = vmatprep.mubr.bf16.mxu0 0
      %1261 = vmatmul.mubr.bf16.gmra.mrb[0].mxu0 %v1120
      %v1262 = vpop.f32.mrb[0].mxu0
      %v1263 = vadd.f32 %v1154, %v1262
      %v1264 = vpop.f32.mrb[0].mxu0
      %v1265 = vpop.f32.mrb[0].mxu0
      %v1266 = vadd.f32 %v1154, %v1265
      %v1267 = vpop.f32.mrb[0].mxu0
      %1268 = vmatprep.mubr.bf16.mxu0 0
      %1269 = vmatmul.mubr.bf16.gmra.mrb[0].mxu0 %v1121
      %v1270 = vpop.f32.mrb[0].mxu0
      %v1271 = vadd.f32 %v1154, %v1270
      %v1272 = vpop.f32.mrb[0].mxu0
      %v1273 = vpop.f32.mrb[0].mxu0
      %v1274 = vadd.f32 %v1154, %v1273
      %v1275 = vpop.f32.mrb[0].mxu0
      %1276 = vmatprep.mubr.bf16.mxu0 0
      %1277 = vmatmul.mubr.bf16.gmra.mrb[0].mxu0 %v1122
      %v1278 = vpop.f32.mrb[0].mxu0
      %v1279 = vadd.f32 %v1154, %v1278
      %v1280 = vpop.f32.mrb[0].mxu0
      %v1281 = vpop.f32.mrb[0].mxu0
      %v1282 = vadd.f32 %v1154, %v1281
      %v1283 = vpop.f32.mrb[0].mxu0
      %1284 = vmatprep.mubr.bf16.mxu0 0
      %1285 = vmatmul.mubr.bf16.gmra.mrb[0].mxu0 %v1123
      %v1286 = vpop.f32.mrb[0].mxu0
      %v1287 = vadd.f32 %v1154, %v1286
      %v1288 = vpop.f32.mrb[0].mxu0
      %v1289 = vpop.f32.mrb[0].mxu0
      %v1290 = vadd.f32 %v1154, %v1289
      %v1291 = vpop.f32.mrb[0].mxu0
      %1292 = vmatprep.mubr.bf16.mxu0 0
      %1293 = vmatmul.mubr.bf16.gmra.mrb[0].mxu0 %v1124
      %v1294 = vpop.f32.mrb[0].mxu0
      %v1295 = vadd.f32 %v1154, %v1294
      %v1296 = vpop.f32.mrb[0].mxu0
      %v1297 = vpop.f32.mrb[0].mxu0
      %v1298 = vadd.f32 %v1154, %v1297
      %v1299 = vpop.f32.mrb[0].mxu0
      %1300 = vmatprep.mubr.bf16.mxu0 0
      %1301 = vmatmul.mubr.bf16.gmra.mrb[0].mxu0 %v1125
      %v1302 = vpop.f32.mrb[0].mxu0
      %v1303 = vadd.f32 %v1154, %v1302
      %v1304 = vpop.f32.mrb[0].mxu0
      %v1305 = vpop.f32.mrb[0].mxu0
      %v1306 = vadd.f32 %v1154, %v1305
      %v1307 = vpop.f32.mrb[0].mxu0
      %1308 = vmatprep.mubr.bf16.mxu0 0
      %1309 = vmatmul.mubr.bf16.gmra.mrb[0].mxu0 %v1126
      %v1310 = vpop.f32.mrb[0].mxu0
      %v1311 = vadd.f32 %v1154, %v1310
      %v1312 = vpop.f32.mrb[0].mxu0
      %v1313 = vpop.f32.mrb[0].mxu0
      %v1314 = vadd.f32 %v1154, %v1313
      %v1315 = vpop.f32.mrb[0].mxu0
      %1316 = vmatprep.mubr.bf16.mxu0 0
      %1317 = vmatmul.mubr.bf16.gmra.mrb[0].mxu0 %v1127
      %v1318 = vpop.f32.mrb[0].mxu0
      %v1319 = vadd.f32 %v1154, %v1318
      %v1320 = vpop.f32.mrb[0].mxu0
      %v1321 = vpop.f32.mrb[0].mxu0
      %v1322 = vadd.f32 %v1154, %v1321
      %v1323 = vpop.f32.mrb[0].mxu0
      %1324 = vmatprep.mubr.bf16.mxu0 0
      %1325 = vmatmul.mubr.bf16.gmra.mrb[0].mxu0 %v1128
      %v1326 = vpop.f32.mrb[0].mxu0
      %v1327 = vadd.f32 %v1154, %v1326
      %v1328 = vpop.f32.mrb[0].mxu0
      %v1329 = vpop.f32.mrb[0].mxu0
      %v1330 = vadd.f32 %v1154, %v1329
      %v1331 = vpop.f32.mrb[0].mxu0
      %1332 = vmatprep.mubr.bf16.mxu0 0
      %1333 = vmatmul.mubr.bf16.gmra.mrb[0].mxu0 %v1129
      %v1334 = vpop.f32.mrb[0].mxu0
      %v1335 = vadd.f32 %v1154, %v1334
      %v1336 = vpop.f32.mrb[0].mxu0
      %v1337 = vpop.f32.mrb[0].mxu0
      %v1338 = vadd.f32 %v1154, %v1337
      %v1339 = vpop.f32.mrb[0].mxu0
      %1340 = vmatprep.mubr.bf16.mxu0 0
      %1341 = vmatmul.mubr.bf16.gmra.mrb[0].mxu0 %v1130
      %v1342 = vpop.f32.mrb[0].mxu0
      %v1343 = vadd.f32 %v1154, %v1342
      %v1344 = vpop.f32.mrb[0].mxu0
      %v1345 = vpop.f32.mrb[0].mxu0
      %v1346 = vadd.f32 %v1154, %v1345
      %v1347 = vpop.f32.mrb[0].mxu0
      %1348 = vmatprep.mubr.bf16.mxu0 0
      %1349 = vmatmul.mubr.bf16.gmra.mrb[0].mxu0 %v1131
      %v1350 = vpop.f32.mrb[0].mxu0
      %v1351 = vadd.f32 %v1154, %v1350
      %v1352 = vpop.f32.mrb[0].mxu0
      %v1353 = vpop.f32.mrb[0].mxu0
      %v1354 = vadd.f32 %v1154, %v1353
      %v1355 = vpop.f32.mrb[0].mxu0
      %1356 = vmatprep.mubr.bf16.mxu0 0
      %1357 = vmatmul.mubr.bf16.gmra.mrb[0].mxu0 %v1132
      %v1358 = vpop.f32.mrb[0].mxu0
      %v1359 = vadd.f32 %v1154, %v1358
      %v1360 = vpop.f32.mrb[0].mxu0
      %v1361 = vpop.f32.mrb[0].mxu0
      %v1362 = vadd.f32 %v1154, %v1361
      %v1363 = vpop.f32.mrb[0].mxu0
      %1364 = vdwg.mxu0
      %v1365 = vmax.f32 %v1239, 0.0
      %v1366 = vmax.f32 %v1242, 0.0
      %v1367 = vmax.f32 %v1247, 0.0
      %v1368 = vmax.f32 %v1250, 0.0
      %v1369 = vmax.f32 %v1255, 0.0
      %v1370 = vmax.f32 %v1258, 0.0
      %v1371 = vmax.f32 %v1263, 0.0
      %v1372 = vmax.f32 %v1266, 0.0
      %v1373 = vmax.f32 %v1271, 0.0
      %v1374 = vmax.f32 %v1274, 0.0
      %v1375 = vmax.f32 %v1279, 0.0
      %v1376 = vmax.f32 %v1282, 0.0
      %v1377 = vmax.f32 %v1287, 0.0
      %v1378 = vmax.f32 %v1290, 0.0
      %v1379 = vmax.f32 %v1295, 0.0
      %v1380 = vmax.f32 %v1298, 0.0
      %v1381 = vmax.f32 %v1303, 0.0
      %v1382 = vmax.f32 %v1306, 0.0
      %v1383 = vmax.f32 %v1311, 0.0
      %v1384 = vmax.f32 %v1314, 0.0
      %v1385 = vmax.f32 %v1319, 0.0
      %v1386 = vmax.f32 %v1322, 0.0
      %v1387 = vmax.f32 %v1327, 0.0
      %v1388 = vmax.f32 %v1330, 0.0
      %v1389 = vmax.f32 %v1335, 0.0
      %v1390 = vmax.f32 %v1338, 0.0
      %v1391 = vmax.f32 %v1343, 0.0
      %v1392 = vmax.f32 %v1346, 0.0
      %v1393 = vmax.f32 %v1351, 0.0
      %v1394 = vmax.f32 %v1354, 0.0
      %v1395 = vmax.f32 %v1359, 0.0
      %v1396 = vmax.f32 %v1362, 0.0
      %v1397 = vpack.c.bf16 %v1366, %v1365
      %v1398 = vpack.c.bf16 %v1368, %v1367
      %v1399 = vpack.c.bf16 %v1370, %v1369
      %v1400 = vpack.c.bf16 %v1372, %v1371
      %v1401 = vpack.c.bf16 %v1374, %v1373
      %v1402 = vpack.c.bf16 %v1376, %v1375
      %v1403 = vpack.c.bf16 %v1378, %v1377
      %v1404 = vpack.c.bf16 %v1380, %v1379
      %v1405 = vpack.c.bf16 %v1382, %v1381
      %v1406 = vpack.c.bf16 %v1384, %v1383
      %v1407 = vpack.c.bf16 %v1386, %v1385
      %v1408 = vpack.c.bf16 %v1388, %v1387
      %v1409 = vpack.c.bf16 %v1390, %v1389
      %v1410 = vpack.c.bf16 %v1392, %v1391
      %v1411 = vpack.c.bf16 %v1394, %v1393
      %v1412 = vpack.c.bf16 %v1396, %v1395
      %v1429 = vunpack.c.l.b16 %v1397
      %v1430 = vunpack.c.h.b16 %v1397
      %v1431 = vunpack.c.l.b16 %v1398
      %v1432 = vunpack.c.h.b16 %v1398
      %v1433 = vunpack.c.l.b16 %v1399
      %v1434 = vunpack.c.h.b16 %v1399
      %v1435 = vunpack.c.l.b16 %v1400
      %v1436 = vunpack.c.h.b16 %v1400
      %v1437 = vunpack.c.l.b16 %v1401
      %v1438 = vunpack.c.h.b16 %v1401
      %v1439 = vunpack.c.l.b16 %v1402
      %v1440 = vunpack.c.h.b16 %v1402
      %v1441 = vunpack.c.l.b16 %v1403
      %v1442 = vunpack.c.h.b16 %v1403
      %v1443 = vunpack.c.l.b16 %v1404
      %v1444 = vunpack.c.h.b16 %v1404
      %v1445 = vunpack.c.l.b16 %v1405
      %v1446 = vunpack.c.h.b16 %v1405
      %v1447 = vunpack.c.l.b16 %v1406
      %v1448 = vunpack.c.h.b16 %v1406
      %v1449 = vunpack.c.l.b16 %v1407
      %v1450 = vunpack.c.h.b16 %v1407
      %v1451 = vunpack.c.l.b16 %v1408
      %v1452 = vunpack.c.h.b16 %v1408
      %v1453 = vunpack.c.l.b16 %v1409
      %v1454 = vunpack.c.h.b16 %v1409
      %v1455 = vunpack.c.l.b16 %v1410
      %v1456 = vunpack.c.h.b16 %v1410
      %v1457 = vunpack.c.l.b16 %v1411
      %v1458 = vunpack.c.h.b16 %v1411
      %v1459 = vunpack.c.l.b16 %v1412
      %v1460 = vunpack.c.h.b16 %v1412
      %v1461 = vpack.c.b16 %v1429, %v1429
      %v1462 = vpack.c.b16 %v1430, %v1430
      %v1463 = vpack.c.b16 %v1431, %v1431
      %v1464 = vpack.c.b16 %v1432, %v1432
      %v1465 = vpack.c.b16 %v1433, %v1433
      %v1466 = vpack.c.b16 %v1434, %v1434
      %v1467 = vpack.c.b16 %v1435, %v1435
      %v1468 = vpack.c.b16 %v1436, %v1436
      %v1469 = vpack.c.b16 %v1437, %v1437
      %v1470 = vpack.c.b16 %v1438, %v1438
      %v1471 = vpack.c.b16 %v1439, %v1439
      %v1472 = vpack.c.b16 %v1440, %v1440
      %v1473 = vpack.c.b16 %v1441, %v1441
      %v1474 = vpack.c.b16 %v1442, %v1442
      %v1475 = vpack.c.b16 %v1443, %v1443
      %v1476 = vpack.c.b16 %v1444, %v1444
      %v1477 = vpack.c.b16 %v1445, %v1445
      %v1478 = vpack.c.b16 %v1446, %v1446
      %v1479 = vpack.c.b16 %v1447, %v1447
      %v1480 = vpack.c.b16 %v1448, %v1448
      %v1481 = vpack.c.b16 %v1449, %v1449
      %v1482 = vpack.c.b16 %v1450, %v1450
      %v1483 = vpack.c.b16 %v1451, %v1451
      %v1484 = vpack.c.b16 %v1452, %v1452
      %v1485 = vpack.c.b16 %v1453, %v1453
      %v1486 = vpack.c.b16 %v1454, %v1454
      %v1487 = vpack.c.b16 %v1455, %v1455
      %v1488 = vpack.c.b16 %v1456, %v1456
      %v1489 = vpack.c.b16 %v1457, %v1457
      %v1490 = vpack.c.b16 %v1458, %v1458
      %v1491 = vpack.c.b16 %v1459, %v1459
      %v1492 = vpack.c.b16 %v1460, %v1460
      %1525 = vst [vmem:[#allocation4] sm:$0xf] %v1461
      %1526 = vst [vmem:[#allocation4 + $0x4] sm:$0xf] %v1462
      %1527 = vst [vmem:[#allocation4 + $0x8] sm:$0xf] %v1463
      %1528 = vst [vmem:[#allocation4 + $0xc] sm:$0xf] %v1464
      %1529 = vst [vmem:[#allocation4 + $0x10] sm:$0xf] %v1465
      %1530 = vst [vmem:[#allocation4 + $0x14] sm:$0xf] %v1466
      %1531 = vst [vmem:[#allocation4 + $0x18] sm:$0xf] %v1467
      %1532 = vst [vmem:[#allocation4 + $0x1c] sm:$0xf] %v1468
      %1533 = vst [vmem:[#allocation4 + $0x20] sm:$0xf] %v1469
      %1534 = vst [vmem:[#allocation4 + $0x24] sm:$0xf] %v1470
      %1535 = vst [vmem:[#allocation4 + $0x28] sm:$0xf] %v1471
      %1536 = vst [vmem:[#allocation4 + $0x2c] sm:$0xf] %v1472
      %1537 = vst [vmem:[#allocation4 + $0x30] sm:$0xf] %v1473
      %1538 = vst [vmem:[#allocation4 + $0x34] sm:$0xf] %v1474
      %1539 = vst [vmem:[#allocation4 + $0x38] sm:$0xf] %v1475
      %1540 = vst [vmem:[#allocation4 + $0x3c] sm:$0xf] %v1476
      %1541 = vst [vmem:[#allocation4 + $0x40] sm:$0xf] %v1477
      %1542 = vst [vmem:[#allocation4 + $0x44] sm:$0xf] %v1478
      %1543 = vst [vmem:[#allocation4 + $0x48] sm:$0xf] %v1479
      %1544 = vst [vmem:[#allocation4 + $0x4c] sm:$0xf] %v1480
      %1545 = vst [vmem:[#allocation4 + $0x50] sm:$0xf] %v1481
      %1546 = vst [vmem:[#allocation4 + $0x54] sm:$0xf] %v1482
      %1547 = vst [vmem:[#allocation4 + $0x58] sm:$0xf] %v1483
      %1548 = vst [vmem:[#allocation4 + $0x5c] sm:$0xf] %v1484
      %1549 = vst [vmem:[#allocation4 + $0x60] sm:$0xf] %v1485
      %1550 = vst [vmem:[#allocation4 + $0x64] sm:$0xf] %v1486
      %1551 = vst [vmem:[#allocation4 + $0x68] sm:$0xf] %v1487
      %1552 = vst [vmem:[#allocation4 + $0x6c] sm:$0xf] %v1488
      %1553 = vst [vmem:[#allocation4 + $0x70] sm:$0xf] %v1489
      %1554 = vst [vmem:[#allocation4 + $0x74] sm:$0xf] %v1490
      %1555 = vst [vmem:[#allocation4 + $0x78] sm:$0xf] %v1491
      %1556 = vst [vmem:[#allocation4 + $0x7c] sm:$0xf] %v1492
    $region74: #{gnn_encoder_forward.5} parent=1 // pred_fallthru
      _
    // Predicated region
    $region75: #{gnn_encoder_forward.5} parent=1 // pred_check
      _
    $region76: #{gnn_encoder_forward.5} parent=1 // pred_check_branch
      %1558 = sbr.rel (0) target = $region78
    $region77: #{gnn_encoder_forward.5} parent=1 // pred_region
      %s1559 = scalar_lea.vmem %s6, 4
      // Predicated region
      $region79: #{gnn_encoder_forward.5} parent=77 // pred_check
        _
      $region80: #{gnn_encoder_forward.5} parent=77 // pred_check_branch
        %1561 = sbr.rel (0) target = $region82
      $region81: #{gnn_encoder_forward.5} parent=77 // pred_region
        // Predicated region
        $region83: #{gnn_encoder_forward.5} parent=81 // pred_check
          _
        $region84: #{gnn_encoder_forward.5} parent=81 // pred_check_branch
          %1563 = sbr.rel target = $region86
        $region85: #{gnn_encoder_forward.5} parent=81 // pred_region
          // Predicated region
          $region98: #{gnn_encoder_forward.5} parent=85 // pred_check
            _
          $region99: #{gnn_encoder_forward.5} parent=85 // pred_check_branch
            %1640 = sbr.rel (0) target = $region101
          $region100: #{gnn_encoder_forward.5} parent=85 // pred_region
            loop: start=0, step=1, limit=1
            $region102: #{gnn_encoder_forward.5} parent=100 // loop_pre_header
              _
            $region103: #{gnn_encoder_forward.5} parent=100 // loop_header
              %s1642 = sphi 0, %s1646
              %p1643 = scmp.ge.s32.totalorder %s1642, 1
              %s1647 = sphi [#allocation4], [#allocation4]
              %s1648 = sphi %s1559, %s1559
            $region104: #{gnn_encoder_forward.5} parent=100 // loop_header_branch
              %1645 = sbr.rel (%p1643) target = $region108
            $region105: #{gnn_encoder_forward.5} parent=100 // loop_body
              _
            $region106: #{gnn_encoder_forward.5} parent=100 // loop_footer
              %s1646 = sadd.s32 1, %s1642
            $region107: #{gnn_encoder_forward.5} parent=100 // loop_footer_branch
              %1641 = sbr.rel target = $region103
            $region108: #{gnn_encoder_forward.5} parent=100 // loop_exit
              _
            loop: start=0, step=1, limit=1
            $region109: #{gnn_encoder_forward.5} parent=100 // loop_pre_header
              _
            $region110: #{gnn_encoder_forward.5} parent=100 // loop_header
              %s1651 = sphi 0, %s1655
              %p1652 = scmp.ge.s32.totalorder %s1651, 1
              %s1656 = sphi [#allocation4], [#allocation4]
              %s1657 = sphi %s1559, %s1559
            $region111: #{gnn_encoder_forward.5} parent=100 // loop_header_branch
              %1654 = sbr.rel (%p1652) target = $region115
            $region112: #{gnn_encoder_forward.5} parent=100 // loop_body
              %v1658 = vld [vmem:[%s1656] sm:$0xf]
              %1659 = vst [vmem:[%s1657] sm:$0xf] %v1658
              %v1660 = vld [vmem:[%s1656 + $0x4] sm:$0xf]
              %1661 = vst [vmem:[%s1657 + $0xc] sm:$0xf] %v1660
              %v1662 = vld [vmem:[%s1656 + $0x8] sm:$0xf]
              %1663 = vst [vmem:[%s1657 + $0x18] sm:$0xf] %v1662
              %v1664 = vld [vmem:[%s1656 + $0xc] sm:$0xf]
              %1665 = vst [vmem:[%s1657 + $0x24] sm:$0xf] %v1664
              %v1666 = vld [vmem:[%s1656 + $0x10] sm:$0xf]
              %1667 = vst [vmem:[%s1657 + $0x30] sm:$0xf] %v1666
              %v1668 = vld [vmem:[%s1656 + $0x14] sm:$0xf]
              %1669 = vst [vmem:[%s1657 + $0x3c] sm:$0xf] %v1668
              %v1670 = vld [vmem:[%s1656 + $0x18] sm:$0xf]
              %1671 = vst [vmem:[%s1657 + $0x48] sm:$0xf] %v1670
              %v1672 = vld [vmem:[%s1656 + $0x1c] sm:$0xf]
              %1673 = vst [vmem:[%s1657 + $0x54] sm:$0xf] %v1672
              %v1674 = vld [vmem:[%s1656 + $0x20] sm:$0xf]
              %1675 = vst [vmem:[%s1657 + $0x60] sm:$0xf] %v1674
              %v1676 = vld [vmem:[%s1656 + $0x24] sm:$0xf]
              %1677 = vst [vmem:[%s1657 + $0x6c] sm:$0xf] %v1676
              %v1678 = vld [vmem:[%s1656 + $0x28] sm:$0xf]
              %1679 = vst [vmem:[%s1657 + $0x78] sm:$0xf] %v1678
              %v1680 = vld [vmem:[%s1656 + $0x2c] sm:$0xf]
              %1681 = vst [vmem:[%s1657 + $0x84] sm:$0xf] %v1680
              %v1682 = vld [vmem:[%s1656 + $0x30] sm:$0xf]
              %1683 = vst [vmem:[%s1657 + $0x90] sm:$0xf] %v1682
              %v1684 = vld [vmem:[%s1656 + $0x34] sm:$0xf]
              %1685 = vst [vmem:[%s1657 + $0x9c] sm:$0xf] %v1684
              %v1686 = vld [vmem:[%s1656 + $0x38] sm:$0xf]
              %1687 = vst [vmem:[%s1657 + $0xa8] sm:$0xf] %v1686
              %v1688 = vld [vmem:[%s1656 + $0x3c] sm:$0xf]
              %1689 = vst [vmem:[%s1657 + $0xb4] sm:$0xf] %v1688
              %v1690 = vld [vmem:[%s1656 + $0x40] sm:$0xf]
              %1691 = vst [vmem:[%s1657 + $0xc0] sm:$0xf] %v1690
              %v1692 = vld [vmem:[%s1656 + $0x44] sm:$0xf]
              %1693 = vst [vmem:[%s1657 + $0xcc] sm:$0xf] %v1692
              %v1694 = vld [vmem:[%s1656 + $0x48] sm:$0xf]
              %1695 = vst [vmem:[%s1657 + $0xd8] sm:$0xf] %v1694
              %v1696 = vld [vmem:[%s1656 + $0x4c] sm:$0xf]
              %1697 = vst [vmem:[%s1657 + $0xe4] sm:$0xf] %v1696
              %v1698 = vld [vmem:[%s1656 + $0x50] sm:$0xf]
              %1699 = vst [vmem:[%s1657 + $0xf0] sm:$0xf] %v1698
              %v1700 = vld [vmem:[%s1656 + $0x54] sm:$0xf]
              %1701 = vst [vmem:[%s1657 + $0xfc] sm:$0xf] %v1700
              %v1702 = vld [vmem:[%s1656 + $0x58] sm:$0xf]
              %1703 = vst [vmem:[%s1657 + $0x108] sm:$0xf] %v1702
              %v1704 = vld [vmem:[%s1656 + $0x5c] sm:$0xf]
              %1705 = vst [vmem:[%s1657 + $0x114] sm:$0xf] %v1704
              %v1706 = vld [vmem:[%s1656 + $0x60] sm:$0xf]
              %1707 = vst [vmem:[%s1657 + $0x120] sm:$0xf] %v1706
              %v1708 = vld [vmem:[%s1656 + $0x64] sm:$0xf]
              %1709 = vst [vmem:[%s1657 + $0x12c] sm:$0xf] %v1708
              %v1710 = vld [vmem:[%s1656 + $0x68] sm:$0xf]
              %1711 = vst [vmem:[%s1657 + $0x138] sm:$0xf] %v1710
              %v1712 = vld [vmem:[%s1656 + $0x6c] sm:$0xf]
              %1713 = vst [vmem:[%s1657 + $0x144] sm:$0xf] %v1712
              %v1714 = vld [vmem:[%s1656 + $0x70] sm:$0xf]
              %1715 = vst [vmem:[%s1657 + $0x150] sm:$0xf] %v1714
              %v1716 = vld [vmem:[%s1656 + $0x74] sm:$0xf]
              %1717 = vst [vmem:[%s1657 + $0x15c] sm:$0xf] %v1716
              %v1718 = vld [vmem:[%s1656 + $0x78] sm:$0xf]
              %1719 = vst [vmem:[%s1657 + $0x168] sm:$0xf] %v1718
              %v1720 = vld [vmem:[%s1656 + $0x7c] sm:$0xf]
              %1721 = vst [vmem:[%s1657 + $0x174] sm:$0xf] %v1720
            $region113: #{gnn_encoder_forward.5} parent=100 // loop_footer
              %s1655 = sadd.s32 1, %s1651
            $region114: #{gnn_encoder_forward.5} parent=100 // loop_footer_branch
              %1650 = sbr.rel target = $region110
            $region115: #{gnn_encoder_forward.5} parent=100 // loop_exit
              _
          $region101: #{gnn_encoder_forward.5} parent=85 // pred_fallthru
            _
        $region86: #{gnn_encoder_forward.5} parent=81 // pred_fallthru
          _
        // Predicated region
        $region87: #{gnn_encoder_forward.5} parent=81 // pred_check
          _
        $region88: #{gnn_encoder_forward.5} parent=81 // pred_check_branch
          %1565 = sbr.rel (0) target = $region90
        $region89: #{gnn_encoder_forward.5} parent=81 // pred_region
          loop: start=0, step=1, limit=1
          $region91: #{gnn_encoder_forward.5} parent=89 // loop_pre_header
            _
          $region92: #{gnn_encoder_forward.5} parent=89 // loop_header
            %s1568 = sphi 0, %s1572
            %p1569 = scmp.ge.s32.totalorder %s1568, 1
            %s1573 = sphi [#allocation4], [#allocation4]
            %s1574 = sphi %s1559, %s1559
          $region93: #{gnn_encoder_forward.5} parent=89 // loop_header_branch
            %1571 = sbr.rel (%p1569) target = $region97
          $region94: #{gnn_encoder_forward.5} parent=89 // loop_body
            %v1575 = vld [vmem:[%s1573] sm:$0xf]
            %1576 = vst [vmem:[%s1574] sm:$0xf] %v1575
            %v1577 = vld [vmem:[%s1573 + $0x4] sm:$0xf]
            %1578 = vst [vmem:[%s1574 + $0xc] sm:$0xf] %v1577
            %v1579 = vld [vmem:[%s1573 + $0x8] sm:$0xf]
            %1580 = vst [vmem:[%s1574 + $0x18] sm:$0xf] %v1579
            %v1581 = vld [vmem:[%s1573 + $0xc] sm:$0xf]
            %1582 = vst [vmem:[%s1574 + $0x24] sm:$0xf] %v1581
            %v1583 = vld [vmem:[%s1573 + $0x10] sm:$0xf]
            %1584 = vst [vmem:[%s1574 + $0x30] sm:$0xf] %v1583
            %v1585 = vld [vmem:[%s1573 + $0x14] sm:$0xf]
            %1586 = vst [vmem:[%s1574 + $0x3c] sm:$0xf] %v1585
            %v1587 = vld [vmem:[%s1573 + $0x18] sm:$0xf]
            %1588 = vst [vmem:[%s1574 + $0x48] sm:$0xf] %v1587
            %v1589 = vld [vmem:[%s1573 + $0x1c] sm:$0xf]
            %1590 = vst [vmem:[%s1574 + $0x54] sm:$0xf] %v1589
            %v1591 = vld [vmem:[%s1573 + $0x20] sm:$0xf]
            %1592 = vst [vmem:[%s1574 + $0x60] sm:$0xf] %v1591
            %v1593 = vld [vmem:[%s1573 + $0x24] sm:$0xf]
            %1594 = vst [vmem:[%s1574 + $0x6c] sm:$0xf] %v1593
            %v1595 = vld [vmem:[%s1573 + $0x28] sm:$0xf]
            %1596 = vst [vmem:[%s1574 + $0x78] sm:$0xf] %v1595
            %v1597 = vld [vmem:[%s1573 + $0x2c] sm:$0xf]
            %1598 = vst [vmem:[%s1574 + $0x84] sm:$0xf] %v1597
            %v1599 = vld [vmem:[%s1573 + $0x30] sm:$0xf]
            %1600 = vst [vmem:[%s1574 + $0x90] sm:$0xf] %v1599
            %v1601 = vld [vmem:[%s1573 + $0x34] sm:$0xf]
            %1602 = vst [vmem:[%s1574 + $0x9c] sm:$0xf] %v1601
            %v1603 = vld [vmem:[%s1573 + $0x38] sm:$0xf]
            %1604 = vst [vmem:[%s1574 + $0xa8] sm:$0xf] %v1603
            %v1605 = vld [vmem:[%s1573 + $0x3c] sm:$0xf]
            %1606 = vst [vmem:[%s1574 + $0xb4] sm:$0xf] %v1605
            %v1607 = vld [vmem:[%s1573 + $0x40] sm:$0xf]
            %1608 = vst [vmem:[%s1574 + $0xc0] sm:$0xf] %v1607
            %v1609 = vld [vmem:[%s1573 + $0x44] sm:$0xf]
            %1610 = vst [vmem:[%s1574 + $0xcc] sm:$0xf] %v1609
            %v1611 = vld [vmem:[%s1573 + $0x48] sm:$0xf]
            %1612 = vst [vmem:[%s1574 + $0xd8] sm:$0xf] %v1611
            %v1613 = vld [vmem:[%s1573 + $0x4c] sm:$0xf]
            %1614 = vst [vmem:[%s1574 + $0xe4] sm:$0xf] %v1613
            %v1615 = vld [vmem:[%s1573 + $0x50] sm:$0xf]
            %1616 = vst [vmem:[%s1574 + $0xf0] sm:$0xf] %v1615
            %v1617 = vld [vmem:[%s1573 + $0x54] sm:$0xf]
            %1618 = vst [vmem:[%s1574 + $0xfc] sm:$0xf] %v1617
            %v1619 = vld [vmem:[%s1573 + $0x58] sm:$0xf]
            %1620 = vst [vmem:[%s1574 + $0x108] sm:$0xf] %v1619
            %v1621 = vld [vmem:[%s1573 + $0x5c] sm:$0xf]
            %1622 = vst [vmem:[%s1574 + $0x114] sm:$0xf] %v1621
            %v1623 = vld [vmem:[%s1573 + $0x60] sm:$0xf]
            %1624 = vst [vmem:[%s1574 + $0x120] sm:$0xf] %v1623
            %v1625 = vld [vmem:[%s1573 + $0x64] sm:$0xf]
            %1626 = vst [vmem:[%s1574 + $0x12c] sm:$0xf] %v1625
            %v1627 = vld [vmem:[%s1573 + $0x68] sm:$0xf]
            %1628 = vst [vmem:[%s1574 + $0x138] sm:$0xf] %v1627
            %v1629 = vld [vmem:[%s1573 + $0x6c] sm:$0xf]
            %1630 = vst [vmem:[%s1574 + $0x144] sm:$0xf] %v1629
            %v1631 = vld [vmem:[%s1573 + $0x70] sm:$0xf]
            %1632 = vst [vmem:[%s1574 + $0x150] sm:$0xf] %v1631
            %v1633 = vld [vmem:[%s1573 + $0x74] sm:$0xf]
            %1634 = vst [vmem:[%s1574 + $0x15c] sm:$0xf] %v1633
            %v1635 = vld [vmem:[%s1573 + $0x78] sm:$0xf]
            %1636 = vst [vmem:[%s1574 + $0x168] sm:$0xf] %v1635
            %v1637 = vld [vmem:[%s1573 + $0x7c] sm:$0xf]
            %1638 = vst [vmem:[%s1574 + $0x174] sm:$0xf] %v1637
          $region95: #{gnn_encoder_forward.5} parent=89 // loop_footer
            %s1572 = sadd.s32 1, %s1568
          $region96: #{gnn_encoder_forward.5} parent=89 // loop_footer_branch
            %1567 = sbr.rel target = $region92
          $region97: #{gnn_encoder_forward.5} parent=89 // loop_exit
            _
        $region90: #{gnn_encoder_forward.5} parent=81 // pred_fallthru
          _
      $region82: #{gnn_encoder_forward.5} parent=77 // pred_fallthru
        _
      %1722 = vnop
    $region78: #{gnn_encoder_forward.5} parent=1 // pred_fallthru
      _
    // Predicated region
    $region116: #{gnn_encoder_forward.5} parent=1 // pred_check
      _
    $region117: #{gnn_encoder_forward.5} parent=1 // pred_check_branch
      %1724 = sbr.rel (0) target = $region119
    $region118: #{gnn_encoder_forward.5} parent=1 // pred_region
      _
    $region119: #{gnn_encoder_forward.5} parent=1 // pred_fallthru
      _

// kernel: gnn_encoder_forward.6
$region0: #{gnn_encoder_forward.6}
  #allocation0 [shape = 'u32[]', space=smem, size = 0x4, offset = 0x4, fixed_abs, tag = 'smem constant byte address 0x4 - core index']
  #allocation1 [shape = 'u32[144,128]{1,0:T(1,128)}', space=vmem, size = 0x12000, scoped, tag = 'internal scratch']
  #allocation2 [shape = 'f32[256,256]{1,0:T(8,128)}', space=vmem, size = 0x40000, scoped, tag = 'scratch operand']
  %s0 = inlined_call_operand.vmem [shape: bf16[256,384], index: 0, kind: input, shape index: {}, may-alias: {0,6}]
  %s1 = inlined_call_operand.vmem [shape: bf16[256,256], index: 1, kind: input, shape index: {}]
  %s2 = inlined_call_operand.vmem [shape: bf16[256,128], index: 2, kind: input, shape index: {}]
  %s3 = inlined_call_operand.vmem [shape: f32[1,128], index: 3, kind: input, shape index: {}]
  %s4 = inlined_call_operand.vmem [shape: bf16[128,128], index: 4, kind: input, shape index: {}]
  %s5 = inlined_call_operand.vmem [shape: f32[1,128], index: 5, kind: input, shape index: {}]
  %s6 = inlined_call_operand.vmem [shape: bf16[256,384], index: 6, kind: output, shape index: {}, may-alias: {0,6}]
  %s7 = sld [smem:[#allocation0]]
  $region117: #{gnn_encoder_forward.6} parent=0
    _
  %s9 = ssub.s32 1, %s7
  %s10 = scalar_select 0, %s9, %s7
  $region1: #{gnn_encoder_forward.6} parent=0
    #allocation3 [shape = 'u8[131072]{0}', space=vmem, size = 0x20000, scoped, tag = 'input window, operand 0, single buffered']
    #allocation4 [shape = 'u8[65536]{0}', space=vmem, size = 0x10000, scoped, tag = 'output window, operand 0, single buffered']
    // Predicated region
    $region2: #{gnn_encoder_forward.6} parent=1 // pred_check
      _
    $region3: #{gnn_encoder_forward.6} parent=1 // pred_check_branch
      %12 = sbr.rel (0) target = $region5
    $region4: #{gnn_encoder_forward.6} parent=1 // pred_region
      // Predicated region
      $region6: #{gnn_encoder_forward.6} parent=4 // pred_check
        _
      $region7: #{gnn_encoder_forward.6} parent=4 // pred_check_branch
        %14 = sbr.rel (0) target = $region9
      $region8: #{gnn_encoder_forward.6} parent=4 // pred_region
        // Predicated region
        $region10: #{gnn_encoder_forward.6} parent=8 // pred_check
          _
        $region11: #{gnn_encoder_forward.6} parent=8 // pred_check_branch
          %16 = sbr.rel (0) target = $region13
        $region12: #{gnn_encoder_forward.6} parent=8 // pred_region
          // Predicated region
          $region25: #{gnn_encoder_forward.6} parent=12 // pred_check
            _
          $region26: #{gnn_encoder_forward.6} parent=12 // pred_check_branch
            %93 = sbr.rel (0) target = $region28
          $region27: #{gnn_encoder_forward.6} parent=12 // pred_region
            loop: start=0, step=1, limit=1
            $region29: #{gnn_encoder_forward.6} parent=27 // loop_pre_header
              _
            $region30: #{gnn_encoder_forward.6} parent=27 // loop_header
              %s95 = sphi 0, %s99
              %p96 = scmp.ge.s32.totalorder %s95, 1
              %s100 = sphi %s0, %s0
              %s101 = sphi [#allocation3], [#allocation3]
            $region31: #{gnn_encoder_forward.6} parent=27 // loop_header_branch
              %98 = sbr.rel (%p96) target = $region35
            $region32: #{gnn_encoder_forward.6} parent=27 // loop_body
              %v102 = vld [vmem:[%s100] sm:$0xff]
              %103 = vst [vmem:[%s101] sm:$0xff] %v102
              %v104 = vld [vmem:[%s100 + $0xc] sm:$0xff]
              %105 = vst [vmem:[%s101 + $0x8] sm:$0xff] %v104
              %v106 = vld [vmem:[%s100 + $0x18] sm:$0xff]
              %107 = vst [vmem:[%s101 + $0x10] sm:$0xff] %v106
              %v108 = vld [vmem:[%s100 + $0x24] sm:$0xff]
              %109 = vst [vmem:[%s101 + $0x18] sm:$0xff] %v108
              %v110 = vld [vmem:[%s100 + $0x30] sm:$0xff]
              %111 = vst [vmem:[%s101 + $0x20] sm:$0xff] %v110
              %v112 = vld [vmem:[%s100 + $0x3c] sm:$0xff]
              %113 = vst [vmem:[%s101 + $0x28] sm:$0xff] %v112
              %v114 = vld [vmem:[%s100 + $0x48] sm:$0xff]
              %115 = vst [vmem:[%s101 + $0x30] sm:$0xff] %v114
              %v116 = vld [vmem:[%s100 + $0x54] sm:$0xff]
              %117 = vst [vmem:[%s101 + $0x38] sm:$0xff] %v116
              %v118 = vld [vmem:[%s100 + $0x60] sm:$0xff]
              %119 = vst [vmem:[%s101 + $0x40] sm:$0xff] %v118
              %v120 = vld [vmem:[%s100 + $0x6c] sm:$0xff]
              %121 = vst [vmem:[%s101 + $0x48] sm:$0xff] %v120
              %v122 = vld [vmem:[%s100 + $0x78] sm:$0xff]
              %123 = vst [vmem:[%s101 + $0x50] sm:$0xff] %v122
              %v124 = vld [vmem:[%s100 + $0x84] sm:$0xff]
              %125 = vst [vmem:[%s101 + $0x58] sm:$0xff] %v124
              %v126 = vld [vmem:[%s100 + $0x90] sm:$0xff]
              %127 = vst [vmem:[%s101 + $0x60] sm:$0xff] %v126
              %v128 = vld [vmem:[%s100 + $0x9c] sm:$0xff]
              %129 = vst [vmem:[%s101 + $0x68] sm:$0xff] %v128
              %v130 = vld [vmem:[%s100 + $0xa8] sm:$0xff]
              %131 = vst [vmem:[%s101 + $0x70] sm:$0xff] %v130
              %v132 = vld [vmem:[%s100 + $0xb4] sm:$0xff]
              %133 = vst [vmem:[%s101 + $0x78] sm:$0xff] %v132
              %v134 = vld [vmem:[%s100 + $0xc0] sm:$0xff]
              %135 = vst [vmem:[%s101 + $0x80] sm:$0xff] %v134
              %v136 = vld [vmem:[%s100 + $0xcc] sm:$0xff]
              %137 = vst [vmem:[%s101 + $0x88] sm:$0xff] %v136
              %v138 = vld [vmem:[%s100 + $0xd8] sm:$0xff]
              %139 = vst [vmem:[%s101 + $0x90] sm:$0xff] %v138
              %v140 = vld [vmem:[%s100 + $0xe4] sm:$0xff]
              %141 = vst [vmem:[%s101 + $0x98] sm:$0xff] %v140
              %v142 = vld [vmem:[%s100 + $0xf0] sm:$0xff]
              %143 = vst [vmem:[%s101 + $0xa0] sm:$0xff] %v142
              %v144 = vld [vmem:[%s100 + $0xfc] sm:$0xff]
              %145 = vst [vmem:[%s101 + $0xa8] sm:$0xff] %v144
              %v146 = vld [vmem:[%s100 + $0x108] sm:$0xff]
              %147 = vst [vmem:[%s101 + $0xb0] sm:$0xff] %v146
              %v148 = vld [vmem:[%s100 + $0x114] sm:$0xff]
              %149 = vst [vmem:[%s101 + $0xb8] sm:$0xff] %v148
              %v150 = vld [vmem:[%s100 + $0x120] sm:$0xff]
              %151 = vst [vmem:[%s101 + $0xc0] sm:$0xff] %v150
              %v152 = vld [vmem:[%s100 + $0x12c] sm:$0xff]
              %153 = vst [vmem:[%s101 + $0xc8] sm:$0xff] %v152
              %v154 = vld [vmem:[%s100 + $0x138] sm:$0xff]
              %155 = vst [vmem:[%s101 + $0xd0] sm:$0xff] %v154
              %v156 = vld [vmem:[%s100 + $0x144] sm:$0xff]
              %157 = vst [vmem:[%s101 + $0xd8] sm:$0xff] %v156
              %v158 = vld [vmem:[%s100 + $0x150] sm:$0xff]
              %159 = vst [vmem:[%s101 + $0xe0] sm:$0xff] %v158
              %v160 = vld [vmem:[%s100 + $0x15c] sm:$0xff]
              %161 = vst [vmem:[%s101 + $0xe8] sm:$0xff] %v160
              %v162 = vld [vmem:[%s100 + $0x168] sm:$0xff]
              %163 = vst [vmem:[%s101 + $0xf0] sm:$0xff] %v162
              %v164 = vld [vmem:[%s100 + $0x174] sm:$0xff]
              %165 = vst [vmem:[%s101 + $0xf8] sm:$0xff] %v164
            $region33: #{gnn_encoder_forward.6} parent=27 // loop_footer
              %s99 = sadd.s32 1, %s95
            $region34: #{gnn_encoder_forward.6} parent=27 // loop_footer_branch
              %94 = sbr.rel target = $region30
            $region35: #{gnn_encoder_forward.6} parent=27 // loop_exit
              _
          $region28: #{gnn_encoder_forward.6} parent=12 // pred_fallthru
            _
          // Predicated region
          $region36: #{gnn_encoder_forward.6} parent=12 // pred_check
            _
          $region37: #{gnn_encoder_forward.6} parent=12 // pred_check_branch
            %167 = sbr.rel target = $region39
          $region38: #{gnn_encoder_forward.6} parent=12 // pred_region
            _
          $region39: #{gnn_encoder_forward.6} parent=12 // pred_fallthru
            _
        $region13: #{gnn_encoder_forward.6} parent=8 // pred_fallthru
          _
        // Predicated region
        $region14: #{gnn_encoder_forward.6} parent=8 // pred_check
          _
        $region15: #{gnn_encoder_forward.6} parent=8 // pred_check_branch
          %18 = sbr.rel target = $region17
        $region16: #{gnn_encoder_forward.6} parent=8 // pred_region
          loop: start=0, step=1, limit=1
          $region18: #{gnn_encoder_forward.6} parent=16 // loop_pre_header
            _
          $region19: #{gnn_encoder_forward.6} parent=16 // loop_header
            %s21 = sphi 0, %s25
            %p22 = scmp.ge.s32.totalorder %s21, 1
            %s26 = sphi %s0, %s0
            %s27 = sphi [#allocation3], [#allocation3]
          $region20: #{gnn_encoder_forward.6} parent=16 // loop_header_branch
            %24 = sbr.rel (%p22) target = $region24
          $region21: #{gnn_encoder_forward.6} parent=16 // loop_body
            %v28 = vld [vmem:[%s26] sm:$0xff]
            %29 = vst [vmem:[%s27] sm:$0xff] %v28
            %v30 = vld [vmem:[%s26 + $0xc] sm:$0xff]
            %31 = vst [vmem:[%s27 + $0x8] sm:$0xff] %v30
            %v32 = vld [vmem:[%s26 + $0x18] sm:$0xff]
            %33 = vst [vmem:[%s27 + $0x10] sm:$0xff] %v32
            %v34 = vld [vmem:[%s26 + $0x24] sm:$0xff]
            %35 = vst [vmem:[%s27 + $0x18] sm:$0xff] %v34
            %v36 = vld [vmem:[%s26 + $0x30] sm:$0xff]
            %37 = vst [vmem:[%s27 + $0x20] sm:$0xff] %v36
            %v38 = vld [vmem:[%s26 + $0x3c] sm:$0xff]
            %39 = vst [vmem:[%s27 + $0x28] sm:$0xff] %v38
            %v40 = vld [vmem:[%s26 + $0x48] sm:$0xff]
            %41 = vst [vmem:[%s27 + $0x30] sm:$0xff] %v40
            %v42 = vld [vmem:[%s26 + $0x54] sm:$0xff]
            %43 = vst [vmem:[%s27 + $0x38] sm:$0xff] %v42
            %v44 = vld [vmem:[%s26 + $0x60] sm:$0xff]
            %45 = vst [vmem:[%s27 + $0x40] sm:$0xff] %v44
            %v46 = vld [vmem:[%s26 + $0x6c] sm:$0xff]
            %47 = vst [vmem:[%s27 + $0x48] sm:$0xff] %v46
            %v48 = vld [vmem:[%s26 + $0x78] sm:$0xff]
            %49 = vst [vmem:[%s27 + $0x50] sm:$0xff] %v48
            %v50 = vld [vmem:[%s26 + $0x84] sm:$0xff]
            %51 = vst [vmem:[%s27 + $0x58] sm:$0xff] %v50
            %v52 = vld [vmem:[%s26 + $0x90] sm:$0xff]
            %53 = vst [vmem:[%s27 + $0x60] sm:$0xff] %v52
            %v54 = vld [vmem:[%s26 + $0x9c] sm:$0xff]
            %55 = vst [vmem:[%s27 + $0x68] sm:$0xff] %v54
            %v56 = vld [vmem:[%s26 + $0xa8] sm:$0xff]
            %57 = vst [vmem:[%s27 + $0x70] sm:$0xff] %v56
            %v58 = vld [vmem:[%s26 + $0xb4] sm:$0xff]
            %59 = vst [vmem:[%s27 + $0x78] sm:$0xff] %v58
            %v60 = vld [vmem:[%s26 + $0xc0] sm:$0xff]
            %61 = vst [vmem:[%s27 + $0x80] sm:$0xff] %v60
            %v62 = vld [vmem:[%s26 + $0xcc] sm:$0xff]
            %63 = vst [vmem:[%s27 + $0x88] sm:$0xff] %v62
            %v64 = vld [vmem:[%s26 + $0xd8] sm:$0xff]
            %65 = vst [vmem:[%s27 + $0x90] sm:$0xff] %v64
            %v66 = vld [vmem:[%s26 + $0xe4] sm:$0xff]
            %67 = vst [vmem:[%s27 + $0x98] sm:$0xff] %v66
            %v68 = vld [vmem:[%s26 + $0xf0] sm:$0xff]
            %69 = vst [vmem:[%s27 + $0xa0] sm:$0xff] %v68
            %v70 = vld [vmem:[%s26 + $0xfc] sm:$0xff]
            %71 = vst [vmem:[%s27 + $0xa8] sm:$0xff] %v70
            %v72 = vld [vmem:[%s26 + $0x108] sm:$0xff]
            %73 = vst [vmem:[%s27 + $0xb0] sm:$0xff] %v72
            %v74 = vld [vmem:[%s26 + $0x114] sm:$0xff]
            %75 = vst [vmem:[%s27 + $0xb8] sm:$0xff] %v74
            %v76 = vld [vmem:[%s26 + $0x120] sm:$0xff]
            %77 = vst [vmem:[%s27 + $0xc0] sm:$0xff] %v76
            %v78 = vld [vmem:[%s26 + $0x12c] sm:$0xff]
            %79 = vst [vmem:[%s27 + $0xc8] sm:$0xff] %v78
            %v80 = vld [vmem:[%s26 + $0x138] sm:$0xff]
            %81 = vst [vmem:[%s27 + $0xd0] sm:$0xff] %v80
            %v82 = vld [vmem:[%s26 + $0x144] sm:$0xff]
            %83 = vst [vmem:[%s27 + $0xd8] sm:$0xff] %v82
            %v84 = vld [vmem:[%s26 + $0x150] sm:$0xff]
            %85 = vst [vmem:[%s27 + $0xe0] sm:$0xff] %v84
            %v86 = vld [vmem:[%s26 + $0x15c] sm:$0xff]
            %87 = vst [vmem:[%s27 + $0xe8] sm:$0xff] %v86
            %v88 = vld [vmem:[%s26 + $0x168] sm:$0xff]
            %89 = vst [vmem:[%s27 + $0xf0] sm:$0xff] %v88
            %v90 = vld [vmem:[%s26 + $0x174] sm:$0xff]
            %91 = vst [vmem:[%s27 + $0xf8] sm:$0xff] %v90
          $region22: #{gnn_encoder_forward.6} parent=16 // loop_footer
            %s25 = sadd.s32 1, %s21
          $region23: #{gnn_encoder_forward.6} parent=16 // loop_footer_branch
            %20 = sbr.rel target = $region19
          $region24: #{gnn_encoder_forward.6} parent=16 // loop_exit
            _
        $region17: #{gnn_encoder_forward.6} parent=8 // pred_fallthru
          _
      $region9: #{gnn_encoder_forward.6} parent=4 // pred_fallthru
        _
      %168 = vnop
    $region5: #{gnn_encoder_forward.6} parent=1 // pred_fallthru
      _
    // Predicated region
    $region40: #{gnn_encoder_forward.6} parent=1 // pred_check
      _
    $region41: #{gnn_encoder_forward.6} parent=1 // pred_check_branch
      %170 = sbr.rel (0) target = $region43
    $region42: #{gnn_encoder_forward.6} parent=1 // pred_region
      _
    $region43: #{gnn_encoder_forward.6} parent=1 // pred_fallthru
      _
    // Predicated region
    $region44: #{gnn_encoder_forward.6} parent=1 // pred_check
      _
    $region45: #{gnn_encoder_forward.6} parent=1 // pred_check_branch
      %172 = sbr.rel (0) target = $region47
    $region46: #{gnn_encoder_forward.6} parent=1 // pred_region
      _
    $region47: #{gnn_encoder_forward.6} parent=1 // pred_fallthru
      _
    // Predicated region
    $region48: #{gnn_encoder_forward.6} parent=1 // pred_check
      _
    $region49: #{gnn_encoder_forward.6} parent=1 // pred_check_branch
      %174 = sbr.rel (0) target = $region51
    $region50: #{gnn_encoder_forward.6} parent=1 // pred_region
      _
    $region51: #{gnn_encoder_forward.6} parent=1 // pred_fallthru
      _
    // Predicated region
    $region52: #{gnn_encoder_forward.6} parent=1 // pred_check
      _
    $region53: #{gnn_encoder_forward.6} parent=1 // pred_check_branch
      %176 = sbr.rel (0) target = $region55
    $region54: #{gnn_encoder_forward.6} parent=1 // pred_region
      _
    $region55: #{gnn_encoder_forward.6} parent=1 // pred_fallthru
      _
    // Predicated region
    $region56: #{gnn_encoder_forward.6} parent=1 // pred_check
      _
    $region57: #{gnn_encoder_forward.6} parent=1 // pred_check_branch
      %178 = sbr.rel (0) target = $region59
    $region58: #{gnn_encoder_forward.6} parent=1 // pred_region
      _
    $region59: #{gnn_encoder_forward.6} parent=1 // pred_fallthru
      _
    // Predicated region
    $region60: #{gnn_encoder_forward.6} parent=1 // pred_check
      _
    $region61: #{gnn_encoder_forward.6} parent=1 // pred_check_branch
      %180 = sbr.rel (0) target = $region63
    $region62: #{gnn_encoder_forward.6} parent=1 // pred_region
      _
    $region63: #{gnn_encoder_forward.6} parent=1 // pred_fallthru
      _
    %p182 = scmp.eq.s32.totalorder 0, 0
    // Predicated region
    $region64: #{gnn_encoder_forward.6} parent=1 // pred_check
      %p183 = pneg %p182
    $region65: #{gnn_encoder_forward.6} parent=1 // pred_check_branch
      %185 = sbr.rel (%p183) target = $region67
    $region66: #{gnn_encoder_forward.6} parent=1 // pred_region
      %186 = vst [vmem:[#allocation2] sm:$0xff] 0.0
      %187 = vst [vmem:[#allocation2 + $0x8] sm:$0xff] 0.0
      %188 = vst [vmem:[#allocation2 + $0x10] sm:$0xff] 0.0
      %189 = vst [vmem:[#allocation2 + $0x18] sm:$0xff] 0.0
      %190 = vst [vmem:[#allocation2 + $0x20] sm:$0xff] 0.0
      %191 = vst [vmem:[#allocation2 + $0x28] sm:$0xff] 0.0
      %192 = vst [vmem:[#allocation2 + $0x30] sm:$0xff] 0.0
      %193 = vst [vmem:[#allocation2 + $0x38] sm:$0xff] 0.0
      %194 = vst [vmem:[#allocation2 + $0x40] sm:$0xff] 0.0
      %195 = vst [vmem:[#allocation2 + $0x48] sm:$0xff] 0.0
      %196 = vst [vmem:[#allocation2 + $0x50] sm:$0xff] 0.0
      %197 = vst [vmem:[#allocation2 + $0x58] sm:$0xff] 0.0
      %198 = vst [vmem:[#allocation2 + $0x60] sm:$0xff] 0.0
      %199 = vst [vmem:[#allocation2 + $0x68] sm:$0xff] 0.0
      %200 = vst [vmem:[#allocation2 + $0x70] sm:$0xff] 0.0
      %201 = vst [vmem:[#allocation2 + $0x78] sm:$0xff] 0.0
      %202 = vst [vmem:[#allocation2 + $0x80] sm:$0xff] 0.0
      %203 = vst [vmem:[#allocation2 + $0x88] sm:$0xff] 0.0
      %204 = vst [vmem:[#allocation2 + $0x90] sm:$0xff] 0.0
      %205 = vst [vmem:[#allocation2 + $0x98] sm:$0xff] 0.0
      %206 = vst [vmem:[#allocation2 + $0xa0] sm:$0xff] 0.0
      %207 = vst [vmem:[#allocation2 + $0xa8] sm:$0xff] 0.0
      %208 = vst [vmem:[#allocation2 + $0xb0] sm:$0xff] 0.0
      %209 = vst [vmem:[#allocation2 + $0xb8] sm:$0xff] 0.0
      %210 = vst [vmem:[#allocation2 + $0xc0] sm:$0xff] 0.0
      %211 = vst [vmem:[#allocation2 + $0xc8] sm:$0xff] 0.0
      %212 = vst [vmem:[#allocation2 + $0xd0] sm:$0xff] 0.0
      %213 = vst [vmem:[#allocation2 + $0xd8] sm:$0xff] 0.0
      %214 = vst [vmem:[#allocation2 + $0xe0] sm:$0xff] 0.0
      %215 = vst [vmem:[#allocation2 + $0xe8] sm:$0xff] 0.0
      %216 = vst [vmem:[#allocation2 + $0xf0] sm:$0xff] 0.0
      %217 = vst [vmem:[#allocation2 + $0xf8] sm:$0xff] 0.0
      %218 = vst [vmem:[#allocation2 + $0x100] sm:$0xff] 0.0
      %219 = vst [vmem:[#allocation2 + $0x108] sm:$0xff] 0.0
      %220 = vst [vmem:[#allocation2 + $0x110] sm:$0xff] 0.0
      %221 = vst [vmem:[#allocation2 + $0x118] sm:$0xff] 0.0
      %222 = vst [vmem:[#allocation2 + $0x120] sm:$0xff] 0.0
      %223 = vst [vmem:[#allocation2 + $0x128] sm:$0xff] 0.0
      %224 = vst [vmem:[#allocation2 + $0x130] sm:$0xff] 0.0
      %225 = vst [vmem:[#allocation2 + $0x138] sm:$0xff] 0.0
      %226 = vst [vmem:[#allocation2 + $0x140] sm:$0xff] 0.0
      %227 = vst [vmem:[#allocation2 + $0x148] sm:$0xff] 0.0
      %228 = vst [vmem:[#allocation2 + $0x150] sm:$0xff] 0.0
      %229 = vst [vmem:[#allocation2 + $0x158] sm:$0xff] 0.0
      %230 = vst [vmem:[#allocation2 + $0x160] sm:$0xff] 0.0
      %231 = vst [vmem:[#allocation2 + $0x168] sm:$0xff] 0.0
      %232 = vst [vmem:[#allocation2 + $0x170] sm:$0xff] 0.0
      %233 = vst [vmem:[#allocation2 + $0x178] sm:$0xff] 0.0
      %234 = vst [vmem:[#allocation2 + $0x180] sm:$0xff] 0.0
      %235 = vst [vmem:[#allocation2 + $0x188] sm:$0xff] 0.0
      %236 = vst [vmem:[#allocation2 + $0x190] sm:$0xff] 0.0
      %237 = vst [vmem:[#allocation2 + $0x198] sm:$0xff] 0.0
      %238 = vst [vmem:[#allocation2 + $0x1a0] sm:$0xff] 0.0
      %239 = vst [vmem:[#allocation2 + $0x1a8] sm:$0xff] 0.0
      %240 = vst [vmem:[#allocation2 + $0x1b0] sm:$0xff] 0.0
      %241 = vst [vmem:[#allocation2 + $0x1b8] sm:$0xff] 0.0
      %242 = vst [vmem:[#allocation2 + $0x1c0] sm:$0xff] 0.0
      %243 = vst [vmem:[#allocation2 + $0x1c8] sm:$0xff] 0.0
      %244 = vst [vmem:[#allocation2 + $0x1d0] sm:$0xff] 0.0
      %245 = vst [vmem:[#allocation2 + $0x1d8] sm:$0xff] 0.0
      %246 = vst [vmem:[#allocation2 + $0x1e0] sm:$0xff] 0.0
      %247 = vst [vmem:[#allocation2 + $0x1e8] sm:$0xff] 0.0
      %248 = vst [vmem:[#allocation2 + $0x1f0] sm:$0xff] 0.0
      %249 = vst [vmem:[#allocation2 + $0x1f8] sm:$0xff] 0.0
    $region67: #{gnn_encoder_forward.6} parent=1 // pred_fallthru
      _
    %v250 = vld [vmem:[#allocation2] sm:$0xff]
    %v251 = vld [vmem:[#allocation2 + $0x8] sm:$0xff]
    %v252 = vld [vmem:[#allocation2 + $0x10] sm:$0xff]
    %v253 = vld [vmem:[#allocation2 + $0x18] sm:$0xff]
    %v254 = vld [vmem:[#allocation2 + $0x20] sm:$0xff]
    %v255 = vld [vmem:[#allocation2 + $0x28] sm:$0xff]
    %v256 = vld [vmem:[#allocation2 + $0x30] sm:$0xff]
    %v257 = vld [vmem:[#allocation2 + $0x38] sm:$0xff]
    %v258 = vld [vmem:[#allocation2 + $0x40] sm:$0xff]
    %v259 = vld [vmem:[#allocation2 + $0x48] sm:$0xff]
    %v260 = vld [vmem:[#allocation2 + $0x50] sm:$0xff]
    %v261 = vld [vmem:[#allocation2 + $0x58] sm:$0xff]
    %v262 = vld [vmem:[#allocation2 + $0x60] sm:$0xff]
    %v263 = vld [vmem:[#allocation2 + $0x68] sm:$0xff]
    %v264 = vld [vmem:[#allocation2 + $0x70] sm:$0xff]
    %v265 = vld [vmem:[#allocation2 + $0x78] sm:$0xff]
    %v266 = vld [vmem:[#allocation2 + $0x80] sm:$0xff]
    %v267 = vld [vmem:[#allocation2 + $0x88] sm:$0xff]
    %v268 = vld [vmem:[#allocation2 + $0x90] sm:$0xff]
    %v269 = vld [vmem:[#allocation2 + $0x98] sm:$0xff]
    %v270 = vld [vmem:[#allocation2 + $0xa0] sm:$0xff]
    %v271 = vld [vmem:[#allocation2 + $0xa8] sm:$0xff]
    %v272 = vld [vmem:[#allocation2 + $0xb0] sm:$0xff]
    %v273 = vld [vmem:[#allocation2 + $0xb8] sm:$0xff]
    %v274 = vld [vmem:[#allocation2 + $0xc0] sm:$0xff]
    %v275 = vld [vmem:[#allocation2 + $0xc8] sm:$0xff]
    %v276 = vld [vmem:[#allocation2 + $0xd0] sm:$0xff]
    %v277 = vld [vmem:[#allocation2 + $0xd8] sm:$0xff]
    %v278 = vld [vmem:[#allocation2 + $0xe0] sm:$0xff]
    %v279 = vld [vmem:[#allocation2 + $0xe8] sm:$0xff]
    %v280 = vld [vmem:[#allocation2 + $0xf0] sm:$0xff]
    %v281 = vld [vmem:[#allocation2 + $0xf8] sm:$0xff]
    %v282 = vld [vmem:[#allocation2 + $0x100] sm:$0xff]
    %v283 = vld [vmem:[#allocation2 + $0x108] sm:$0xff]
    %v284 = vld [vmem:[#allocation2 + $0x110] sm:$0xff]
    %v285 = vld [vmem:[#allocation2 + $0x118] sm:$0xff]
    %v286 = vld [vmem:[#allocation2 + $0x120] sm:$0xff]
    %v287 = vld [vmem:[#allocation2 + $0x128] sm:$0xff]
    %v288 = vld [vmem:[#allocation2 + $0x130] sm:$0xff]
    %v289 = vld [vmem:[#allocation2 + $0x138] sm:$0xff]
    %v290 = vld [vmem:[#allocation2 + $0x140] sm:$0xff]
    %v291 = vld [vmem:[#allocation2 + $0x148] sm:$0xff]
    %v292 = vld [vmem:[#allocation2 + $0x150] sm:$0xff]
    %v293 = vld [vmem:[#allocation2 + $0x158] sm:$0xff]
    %v294 = vld [vmem:[#allocation2 + $0x160] sm:$0xff]
    %v295 = vld [vmem:[#allocation2 + $0x168] sm:$0xff]
    %v296 = vld [vmem:[#allocation2 + $0x170] sm:$0xff]
    %v297 = vld [vmem:[#allocation2 + $0x178] sm:$0xff]
    %v298 = vld [vmem:[#allocation2 + $0x180] sm:$0xff]
    %v299 = vld [vmem:[#allocation2 + $0x188] sm:$0xff]
    %v300 = vld [vmem:[#allocation2 + $0x190] sm:$0xff]
    %v301 = vld [vmem:[#allocation2 + $0x198] sm:$0xff]
    %v302 = vld [vmem:[#allocation2 + $0x1a0] sm:$0xff]
    %v303 = vld [vmem:[#allocation2 + $0x1a8] sm:$0xff]
    %v304 = vld [vmem:[#allocation2 + $0x1b0] sm:$0xff]
    %v305 = vld [vmem:[#allocation2 + $0x1b8] sm:$0xff]
    %v306 = vld [vmem:[#allocation2 + $0x1c0] sm:$0xff]
    %v307 = vld [vmem:[#allocation2 + $0x1c8] sm:$0xff]
    %v308 = vld [vmem:[#allocation2 + $0x1d0] sm:$0xff]
    %v309 = vld [vmem:[#allocation2 + $0x1d8] sm:$0xff]
    %v310 = vld [vmem:[#allocation2 + $0x1e0] sm:$0xff]
    %v311 = vld [vmem:[#allocation2 + $0x1e8] sm:$0xff]
    %v312 = vld [vmem:[#allocation2 + $0x1f0] sm:$0xff]
    %v313 = vld [vmem:[#allocation2 + $0x1f8] sm:$0xff]
    %v314 = vld [vmem:[%s1] sm:$0xff]
    %v315 = vld [vmem:[%s1 + $0x8] sm:$0xff]
    %v316 = vld [vmem:[%s1 + $0x10] sm:$0xff]
    %v317 = vld [vmem:[%s1 + $0x18] sm:$0xff]
    %v318 = vld [vmem:[%s1 + $0x20] sm:$0xff]
    %v319 = vld [vmem:[%s1 + $0x28] sm:$0xff]
    %v320 = vld [vmem:[%s1 + $0x30] sm:$0xff]
    %v321 = vld [vmem:[%s1 + $0x38] sm:$0xff]
    %v322 = vld [vmem:[%s1 + $0x40] sm:$0xff]
    %v323 = vld [vmem:[%s1 + $0x48] sm:$0xff]
    %v324 = vld [vmem:[%s1 + $0x50] sm:$0xff]
    %v325 = vld [vmem:[%s1 + $0x58] sm:$0xff]
    %v326 = vld [vmem:[%s1 + $0x60] sm:$0xff]
    %v327 = vld [vmem:[%s1 + $0x68] sm:$0xff]
    %v328 = vld [vmem:[%s1 + $0x70] sm:$0xff]
    %v329 = vld [vmem:[%s1 + $0x78] sm:$0xff]
    %v330 = vld [vmem:[%s1 + $0x80] sm:$0xff]
    %v331 = vld [vmem:[%s1 + $0x88] sm:$0xff]
    %v332 = vld [vmem:[%s1 + $0x90] sm:$0xff]
    %v333 = vld [vmem:[%s1 + $0x98] sm:$0xff]
    %v334 = vld [vmem:[%s1 + $0xa0] sm:$0xff]
    %v335 = vld [vmem:[%s1 + $0xa8] sm:$0xff]
    %v336 = vld [vmem:[%s1 + $0xb0] sm:$0xff]
    %v337 = vld [vmem:[%s1 + $0xb8] sm:$0xff]
    %v338 = vld [vmem:[%s1 + $0xc0] sm:$0xff]
    %v339 = vld [vmem:[%s1 + $0xc8] sm:$0xff]
    %v340 = vld [vmem:[%s1 + $0xd0] sm:$0xff]
    %v341 = vld [vmem:[%s1 + $0xd8] sm:$0xff]
    %v342 = vld [vmem:[%s1 + $0xe0] sm:$0xff]
    %v343 = vld [vmem:[%s1 + $0xe8] sm:$0xff]
    %v344 = vld [vmem:[%s1 + $0xf0] sm:$0xff]
    %v345 = vld [vmem:[%s1 + $0xf8] sm:$0xff]
    %v346 = vld [vmem:[#allocation3] sm:$0xff]
    %v347 = vld [vmem:[#allocation3 + $0x8] sm:$0xff]
    %v348 = vld [vmem:[#allocation3 + $0x10] sm:$0xff]
    %v349 = vld [vmem:[#allocation3 + $0x18] sm:$0xff]
    %v350 = vld [vmem:[#allocation3 + $0x20] sm:$0xff]
    %v351 = vld [vmem:[#allocation3 + $0x28] sm:$0xff]
    %v352 = vld [vmem:[#allocation3 + $0x30] sm:$0xff]
    %v353 = vld [vmem:[#allocation3 + $0x38] sm:$0xff]
    %v354 = vld [vmem:[#allocation3 + $0x40] sm:$0xff]
    %v355 = vld [vmem:[#allocation3 + $0x48] sm:$0xff]
    %v356 = vld [vmem:[#allocation3 + $0x50] sm:$0xff]
    %v357 = vld [vmem:[#allocation3 + $0x58] sm:$0xff]
    %v358 = vld [vmem:[#allocation3 + $0x60] sm:$0xff]
    %v359 = vld [vmem:[#allocation3 + $0x68] sm:$0xff]
    %v360 = vld [vmem:[#allocation3 + $0x70] sm:$0xff]
    %v361 = vld [vmem:[#allocation3 + $0x78] sm:$0xff]
    %v362 = vld [vmem:[#allocation3 + $0x80] sm:$0xff]
    %v363 = vld [vmem:[#allocation3 + $0x88] sm:$0xff]
    %v364 = vld [vmem:[#allocation3 + $0x90] sm:$0xff]
    %v365 = vld [vmem:[#allocation3 + $0x98] sm:$0xff]
    %v366 = vld [vmem:[#allocation3 + $0xa0] sm:$0xff]
    %v367 = vld [vmem:[#allocation3 + $0xa8] sm:$0xff]
    %v368 = vld [vmem:[#allocation3 + $0xb0] sm:$0xff]
    %v369 = vld [vmem:[#allocation3 + $0xb8] sm:$0xff]
    %v370 = vld [vmem:[#allocation3 + $0xc0] sm:$0xff]
    %v371 = vld [vmem:[#allocation3 + $0xc8] sm:$0xff]
    %v372 = vld [vmem:[#allocation3 + $0xd0] sm:$0xff]
    %v373 = vld [vmem:[#allocation3 + $0xd8] sm:$0xff]
    %v374 = vld [vmem:[#allocation3 + $0xe0] sm:$0xff]
    %v375 = vld [vmem:[#allocation3 + $0xe8] sm:$0xff]
    %v376 = vld [vmem:[#allocation3 + $0xf0] sm:$0xff]
    %v377 = vld [vmem:[#allocation3 + $0xf8] sm:$0xff]
    %v410 = vunpack.c.l.b16 %v314
    %v411 = vunpack.c.h.b16 %v314
    %v412 = vunpack.c.l.b16 %v315
    %v413 = vunpack.c.h.b16 %v315
    %v414 = vunpack.c.l.b16 %v316
    %v415 = vunpack.c.h.b16 %v316
    %v416 = vunpack.c.l.b16 %v317
    %v417 = vunpack.c.h.b16 %v317
    %v418 = vunpack.c.l.b16 %v318
    %v419 = vunpack.c.h.b16 %v318
    %v420 = vunpack.c.l.b16 %v319
    %v421 = vunpack.c.h.b16 %v319
    %v422 = vunpack.c.l.b16 %v320
    %v423 = vunpack.c.h.b16 %v320
    %v424 = vunpack.c.l.b16 %v321
    %v425 = vunpack.c.h.b16 %v321
    %v426 = vunpack.c.l.b16 %v322
    %v427 = vunpack.c.h.b16 %v322
    %v428 = vunpack.c.l.b16 %v323
    %v429 = vunpack.c.h.b16 %v323
    %v430 = vunpack.c.l.b16 %v324
    %v431 = vunpack.c.h.b16 %v324
    %v432 = vunpack.c.l.b16 %v325
    %v433 = vunpack.c.h.b16 %v325
    %v434 = vunpack.c.l.b16 %v326
    %v435 = vunpack.c.h.b16 %v326
    %v436 = vunpack.c.l.b16 %v327
    %v437 = vunpack.c.h.b16 %v327
    %v438 = vunpack.c.l.b16 %v328
    %v439 = vunpack.c.h.b16 %v328
    %v440 = vunpack.c.l.b16 %v329
    %v441 = vunpack.c.h.b16 %v329
    %v442 = vunpack.c.l.b16 %v330
    %v443 = vunpack.c.h.b16 %v330
    %v444 = vunpack.c.l.b16 %v331
    %v445 = vunpack.c.h.b16 %v331
    %v446 = vunpack.c.l.b16 %v332
    %v447 = vunpack.c.h.b16 %v332
    %v448 = vunpack.c.l.b16 %v333
    %v449 = vunpack.c.h.b16 %v333
    %v450 = vunpack.c.l.b16 %v334
    %v451 = vunpack.c.h.b16 %v334
    %v452 = vunpack.c.l.b16 %v335
    %v453 = vunpack.c.h.b16 %v335
    %v454 = vunpack.c.l.b16 %v336
    %v455 = vunpack.c.h.b16 %v336
    %v456 = vunpack.c.l.b16 %v337
    %v457 = vunpack.c.h.b16 %v337
    %v458 = vunpack.c.l.b16 %v338
    %v459 = vunpack.c.h.b16 %v338
    %v460 = vunpack.c.l.b16 %v339
    %v461 = vunpack.c.h.b16 %v339
    %v462 = vunpack.c.l.b16 %v340
    %v463 = vunpack.c.h.b16 %v340
    %v464 = vunpack.c.l.b16 %v341
    %v465 = vunpack.c.h.b16 %v341
    %v466 = vunpack.c.l.b16 %v342
    %v467 = vunpack.c.h.b16 %v342
    %v468 = vunpack.c.l.b16 %v343
    %v469 = vunpack.c.h.b16 %v343
    %v470 = vunpack.c.l.b16 %v344
    %v471 = vunpack.c.h.b16 %v344
    %v472 = vunpack.c.l.b16 %v345
    %v473 = vunpack.c.h.b16 %v345
    %v474 = vpack.c.b16 %v412, %v410
    %v475 = vpack.c.b16 %v413, %v411
    %v476 = vpack.c.b16 %v416, %v414
    %v477 = vpack.c.b16 %v417, %v415
    %v478 = vpack.c.b16 %v420, %v418
    %v479 = vpack.c.b16 %v421, %v419
    %v480 = vpack.c.b16 %v424, %v422
    %v481 = vpack.c.b16 %v425, %v423
    %v482 = vpack.c.b16 %v428, %v426
    %v483 = vpack.c.b16 %v429, %v427
    %v484 = vpack.c.b16 %v432, %v430
    %v485 = vpack.c.b16 %v433, %v431
    %v486 = vpack.c.b16 %v436, %v434
    %v487 = vpack.c.b16 %v437, %v435
    %v488 = vpack.c.b16 %v440, %v438
    %v489 = vpack.c.b16 %v441, %v439
    %v490 = vpack.c.b16 %v444, %v442
    %v491 = vpack.c.b16 %v445, %v443
    %v492 = vpack.c.b16 %v448, %v446
    %v493 = vpack.c.b16 %v449, %v447
    %v494 = vpack.c.b16 %v452, %v450
    %v495 = vpack.c.b16 %v453, %v451
    %v496 = vpack.c.b16 %v456, %v454
    %v497 = vpack.c.b16 %v457, %v455
    %v498 = vpack.c.b16 %v460, %v458
    %v499 = vpack.c.b16 %v461, %v459
    %v500 = vpack.c.b16 %v464, %v462
    %v501 = vpack.c.b16 %v465, %v463
    %v502 = vpack.c.b16 %v468, %v466
    %v503 = vpack.c.b16 %v469, %v467
    %v504 = vpack.c.b16 %v472, %v470
    %v505 = vpack.c.b16 %v473, %v471
    %v570 = vunpack.c.l.b16 %v346
    %v571 = vunpack.c.h.b16 %v346
    %v572 = vunpack.c.l.b16 %v347
    %v573 = vunpack.c.h.b16 %v347
    %v574 = vunpack.c.l.b16 %v348
    %v575 = vunpack.c.h.b16 %v348
    %v576 = vunpack.c.l.b16 %v349
    %v577 = vunpack.c.h.b16 %v349
    %v578 = vunpack.c.l.b16 %v350
    %v579 = vunpack.c.h.b16 %v350
    %v580 = vunpack.c.l.b16 %v351
    %v581 = vunpack.c.h.b16 %v351
    %v582 = vunpack.c.l.b16 %v352
    %v583 = vunpack.c.h.b16 %v352
    %v584 = vunpack.c.l.b16 %v353
    %v585 = vunpack.c.h.b16 %v353
    %v586 = vunpack.c.l.b16 %v354
    %v587 = vunpack.c.h.b16 %v354
    %v588 = vunpack.c.l.b16 %v355
    %v589 = vunpack.c.h.b16 %v355
    %v590 = vunpack.c.l.b16 %v356
    %v591 = vunpack.c.h.b16 %v356
    %v592 = vunpack.c.l.b16 %v357
    %v593 = vunpack.c.h.b16 %v357
    %v594 = vunpack.c.l.b16 %v358
    %v595 = vunpack.c.h.b16 %v358
    %v596 = vunpack.c.l.b16 %v359
    %v597 = vunpack.c.h.b16 %v359
    %v598 = vunpack.c.l.b16 %v360
    %v599 = vunpack.c.h.b16 %v360
    %v600 = vunpack.c.l.b16 %v361
    %v601 = vunpack.c.h.b16 %v361
    %v602 = vunpack.c.l.b16 %v362
    %v603 = vunpack.c.h.b16 %v362
    %v604 = vunpack.c.l.b16 %v363
    %v605 = vunpack.c.h.b16 %v363
    %v606 = vunpack.c.l.b16 %v364
    %v607 = vunpack.c.h.b16 %v364
    %v608 = vunpack.c.l.b16 %v365
    %v609 = vunpack.c.h.b16 %v365
    %v610 = vunpack.c.l.b16 %v366
    %v611 = vunpack.c.h.b16 %v366
    %v612 = vunpack.c.l.b16 %v367
    %v613 = vunpack.c.h.b16 %v367
    %v614 = vunpack.c.l.b16 %v368
    %v615 = vunpack.c.h.b16 %v368
    %v616 = vunpack.c.l.b16 %v369
    %v617 = vunpack.c.h.b16 %v369
    %v618 = vunpack.c.l.b16 %v370
    %v619 = vunpack.c.h.b16 %v370
    %v620 = vunpack.c.l.b16 %v371
    %v621 = vunpack.c.h.b16 %v371
    %v622 = vunpack.c.l.b16 %v372
    %v623 = vunpack.c.h.b16 %v372
    %v624 = vunpack.c.l.b16 %v373
    %v625 = vunpack.c.h.b16 %v373
    %v626 = vunpack.c.l.b16 %v374
    %v627 = vunpack.c.h.b16 %v374
    %v628 = vunpack.c.l.b16 %v375
    %v629 = vunpack.c.h.b16 %v375
    %v630 = vunpack.c.l.b16 %v376
    %v631 = vunpack.c.h.b16 %v376
    %v632 = vunpack.c.l.b16 %v377
    %v633 = vunpack.c.h.b16 %v377
    %v634 = vpack.c.b16 %v572, %v570
    %v635 = vpack.c.b16 %v573, %v571
    %v636 = vpack.c.b16 %v576, %v574
    %v637 = vpack.c.b16 %v577, %v575
    %v638 = vpack.c.b16 %v580, %v578
    %v639 = vpack.c.b16 %v581, %v579
    %v640 = vpack.c.b16 %v584, %v582
    %v641 = vpack.c.b16 %v585, %v583
    %v642 = vpack.c.b16 %v588, %v586
    %v643 = vpack.c.b16 %v589, %v587
    %v644 = vpack.c.b16 %v592, %v590
    %v645 = vpack.c.b16 %v593, %v591
    %v646 = vpack.c.b16 %v596, %v594
    %v647 = vpack.c.b16 %v597, %v595
    %v648 = vpack.c.b16 %v600, %v598
    %v649 = vpack.c.b16 %v601, %v599
    %v650 = vpack.c.b16 %v604, %v602
    %v651 = vpack.c.b16 %v605, %v603
    %v652 = vpack.c.b16 %v608, %v606
    %v653 = vpack.c.b16 %v609, %v607
    %v654 = vpack.c.b16 %v612, %v610
    %v655 = vpack.c.b16 %v613, %v611
    %v656 = vpack.c.b16 %v616, %v614
    %v657 = vpack.c.b16 %v617, %v615
    %v658 = vpack.c.b16 %v620, %v618
    %v659 = vpack.c.b16 %v621, %v619
    %v660 = vpack.c.b16 %v624, %v622
    %v661 = vpack.c.b16 %v625, %v623
    %v662 = vpack.c.b16 %v628, %v626
    %v663 = vpack.c.b16 %v629, %v627
    %v664 = vpack.c.b16 %v632, %v630
    %v665 = vpack.c.b16 %v633, %v631
    %698 = vmatprep.subr.bf16.mxu0 %v635
    %699 = vmatpush1.bf16.msra.mxu0 %v634
    %700 = vmatprep.subr.bf16.mxu0 %v637
    %701 = vmatpush1.bf16.msra.mxu0 %v636
    %702 = vmatprep.subr.bf16.mxu0 %v639
    %703 = vmatpush1.bf16.msra.mxu0 %v638
    %704 = vmatprep.subr.bf16.mxu0 %v641
    %705 = vmatpush1.bf16.msra.mxu0 %v640
    %706 = vmatprep.subr.bf16.mxu0 %v643
    %707 = vmatpush1.bf16.msra.mxu0 %v642
    %708 = vmatprep.subr.bf16.mxu0 %v645
    %709 = vmatpush1.bf16.msra.mxu0 %v644
    %710 = vmatprep.subr.bf16.mxu0 %v647
    %711 = vmatpush1.bf16.msra.mxu0 %v646
    %712 = vmatprep.subr.bf16.mxu0 %v649
    %713 = vmatpush1.bf16.msra.mxu0 %v648
    %714 = vmatprep.subr.bf16.mxu0 %v651
    %715 = vmatpush1.bf16.msra.mxu0 %v650
    %716 = vmatprep.subr.bf16.mxu0 %v653
    %717 = vmatpush1.bf16.msra.mxu0 %v652
    %718 = vmatprep.subr.bf16.mxu0 %v655
    %719 = vmatpush1.bf16.msra.mxu0 %v654
    %720 = vmatprep.subr.bf16.mxu0 %v657
    %721 = vmatpush1.bf16.msra.mxu0 %v656
    %722 = vmatprep.subr.bf16.mxu0 %v659
    %723 = vmatpush1.bf16.msra.mxu0 %v658
    %724 = vmatprep.subr.bf16.mxu0 %v661
    %725 = vmatpush1.bf16.msra.mxu0 %v660
    %726 = vmatprep.subr.bf16.mxu0 %v663
    %727 = vmatpush1.bf16.msra.mxu0 %v662
    %728 = vmatprep.subr.bf16.mxu0 %v665
    %729 = vmatpush1.bf16.msra.mxu0 %v664
    %730 = vmatprep.mubr.bf16.mxu0 %v475
    %731 = vmatmul.mubr.bf16.gmra.mrb[0].mxu0 %v474
    %v732 = vpop.f32.mrb[0].mxu0
    %v733 = vadd.f32 0.0, %v732
    %v734 = vpop.f32.mrb[0].mxu0
    %v735 = vadd.f32 0.0, %v734
    %v736 = vpop.f32.mrb[0].mxu0
    %v737 = vadd.f32 0.0, %v736
    %v738 = vpop.f32.mrb[0].mxu0
    %v739 = vadd.f32 0.0, %v738
    %740 = vmatprep.mubr.bf16.mxu0 %v477
    %741 = vmatmul.mubr.bf16.gmra.mrb[0].mxu0 %v476
    %v742 = vpop.f32.mrb[0].mxu0
    %v743 = vadd.f32 0.0, %v742
    %v744 = vpop.f32.mrb[0].mxu0
    %v745 = vadd.f32 0.0, %v744
    %v746 = vpop.f32.mrb[0].mxu0
    %v747 = vadd.f32 0.0, %v746
    %v748 = vpop.f32.mrb[0].mxu0
    %v749 = vadd.f32 0.0, %v748
    %750 = vmatprep.mubr.bf16.mxu0 %v479
    %751 = vmatmul.mubr.bf16.gmra.mrb[0].mxu0 %v478
    %v752 = vpop.f32.mrb[0].mxu0
    %v753 = vadd.f32 0.0, %v752
    %v754 = vpop.f32.mrb[0].mxu0
    %v755 = vadd.f32 0.0, %v754
    %v756 = vpop.f32.mrb[0].mxu0
    %v757 = vadd.f32 0.0, %v756
    %v758 = vpop.f32.mrb[0].mxu0
    %v759 = vadd.f32 0.0, %v758
    %760 = vmatprep.mubr.bf16.mxu0 %v481
    %761 = vmatmul.mubr.bf16.gmra.mrb[0].mxu0 %v480
    %v762 = vpop.f32.mrb[0].mxu0
    %v763 = vadd.f32 0.0, %v762
    %v764 = vpop.f32.mrb[0].mxu0
    %v765 = vadd.f32 0.0, %v764
    %v766 = vpop.f32.mrb[0].mxu0
    %v767 = vadd.f32 0.0, %v766
    %v768 = vpop.f32.mrb[0].mxu0
    %v769 = vadd.f32 0.0, %v768
    %770 = vmatprep.mubr.bf16.mxu0 %v483
    %771 = vmatmul.mubr.bf16.gmra.mrb[0].mxu0 %v482
    %v772 = vpop.f32.mrb[0].mxu0
    %v773 = vadd.f32 0.0, %v772
    %v774 = vpop.f32.mrb[0].mxu0
    %v775 = vadd.f32 0.0, %v774
    %v776 = vpop.f32.mrb[0].mxu0
    %v777 = vadd.f32 0.0, %v776
    %v778 = vpop.f32.mrb[0].mxu0
    %v779 = vadd.f32 0.0, %v778
    %780 = vmatprep.mubr.bf16.mxu0 %v485
    %781 = vmatmul.mubr.bf16.gmra.mrb[0].mxu0 %v484
    %v782 = vpop.f32.mrb[0].mxu0
    %v783 = vadd.f32 0.0, %v782
    %v784 = vpop.f32.mrb[0].mxu0
    %v785 = vadd.f32 0.0, %v784
    %v786 = vpop.f32.mrb[0].mxu0
    %v787 = vadd.f32 0.0, %v786
    %v788 = vpop.f32.mrb[0].mxu0
    %v789 = vadd.f32 0.0, %v788
    %790 = vmatprep.mubr.bf16.mxu0 %v487
    %791 = vmatmul.mubr.bf16.gmra.mrb[0].mxu0 %v486
    %v792 = vpop.f32.mrb[0].mxu0
    %v793 = vadd.f32 0.0, %v792
    %v794 = vpop.f32.mrb[0].mxu0
    %v795 = vadd.f32 0.0, %v794
    %v796 = vpop.f32.mrb[0].mxu0
    %v797 = vadd.f32 0.0, %v796
    %v798 = vpop.f32.mrb[0].mxu0
    %v799 = vadd.f32 0.0, %v798
    %800 = vmatprep.mubr.bf16.mxu0 %v489
    %801 = vmatmul.mubr.bf16.gmra.mrb[0].mxu0 %v488
    %v802 = vpop.f32.mrb[0].mxu0
    %v803 = vadd.f32 0.0, %v802
    %v804 = vpop.f32.mrb[0].mxu0
    %v805 = vadd.f32 0.0, %v804
    %v806 = vpop.f32.mrb[0].mxu0
    %v807 = vadd.f32 0.0, %v806
    %v808 = vpop.f32.mrb[0].mxu0
    %v809 = vadd.f32 0.0, %v808
    %810 = vmatprep.mubr.bf16.mxu0 %v491
    %811 = vmatmul.mubr.bf16.gmra.mrb[0].mxu0 %v490
    %v812 = vpop.f32.mrb[0].mxu0
    %v813 = vadd.f32 0.0, %v812
    %v814 = vpop.f32.mrb[0].mxu0
    %v815 = vadd.f32 0.0, %v814
    %v816 = vpop.f32.mrb[0].mxu0
    %v817 = vadd.f32 0.0, %v816
    %v818 = vpop.f32.mrb[0].mxu0
    %v819 = vadd.f32 0.0, %v818
    %820 = vmatprep.mubr.bf16.mxu0 %v493
    %821 = vmatmul.mubr.bf16.gmra.mrb[0].mxu0 %v492
    %v822 = vpop.f32.mrb[0].mxu0
    %v823 = vadd.f32 0.0, %v822
    %v824 = vpop.f32.mrb[0].mxu0
    %v825 = vadd.f32 0.0, %v824
    %v826 = vpop.f32.mrb[0].mxu0
    %v827 = vadd.f32 0.0, %v826
    %v828 = vpop.f32.mrb[0].mxu0
    %v829 = vadd.f32 0.0, %v828
    %830 = vmatprep.mubr.bf16.mxu0 %v495
    %831 = vmatmul.mubr.bf16.gmra.mrb[0].mxu0 %v494
    %v832 = vpop.f32.mrb[0].mxu0
    %v833 = vadd.f32 0.0, %v832
    %v834 = vpop.f32.mrb[0].mxu0
    %v835 = vadd.f32 0.0, %v834
    %v836 = vpop.f32.mrb[0].mxu0
    %v837 = vadd.f32 0.0, %v836
    %v838 = vpop.f32.mrb[0].mxu0
    %v839 = vadd.f32 0.0, %v838
    %840 = vmatprep.mubr.bf16.mxu0 %v497
    %841 = vmatmul.mubr.bf16.gmra.mrb[0].mxu0 %v496
    %v842 = vpop.f32.mrb[0].mxu0
    %v843 = vadd.f32 0.0, %v842
    %v844 = vpop.f32.mrb[0].mxu0
    %v845 = vadd.f32 0.0, %v844
    %v846 = vpop.f32.mrb[0].mxu0
    %v847 = vadd.f32 0.0, %v846
    %v848 = vpop.f32.mrb[0].mxu0
    %v849 = vadd.f32 0.0, %v848
    %850 = vmatprep.mubr.bf16.mxu0 %v499
    %851 = vmatmul.mubr.bf16.gmra.mrb[0].mxu0 %v498
    %v852 = vpop.f32.mrb[0].mxu0
    %v853 = vadd.f32 0.0, %v852
    %v854 = vpop.f32.mrb[0].mxu0
    %v855 = vadd.f32 0.0, %v854
    %v856 = vpop.f32.mrb[0].mxu0
    %v857 = vadd.f32 0.0, %v856
    %v858 = vpop.f32.mrb[0].mxu0
    %v859 = vadd.f32 0.0, %v858
    %860 = vmatprep.mubr.bf16.mxu0 %v501
    %861 = vmatmul.mubr.bf16.gmra.mrb[0].mxu0 %v500
    %v862 = vpop.f32.mrb[0].mxu0
    %v863 = vadd.f32 0.0, %v862
    %v864 = vpop.f32.mrb[0].mxu0
    %v865 = vadd.f32 0.0, %v864
    %v866 = vpop.f32.mrb[0].mxu0
    %v867 = vadd.f32 0.0, %v866
    %v868 = vpop.f32.mrb[0].mxu0
    %v869 = vadd.f32 0.0, %v868
    %870 = vmatprep.mubr.bf16.mxu0 %v503
    %871 = vmatmul.mubr.bf16.gmra.mrb[0].mxu0 %v502
    %v872 = vpop.f32.mrb[0].mxu0
    %v873 = vadd.f32 0.0, %v872
    %v874 = vpop.f32.mrb[0].mxu0
    %v875 = vadd.f32 0.0, %v874
    %v876 = vpop.f32.mrb[0].mxu0
    %v877 = vadd.f32 0.0, %v876
    %v878 = vpop.f32.mrb[0].mxu0
    %v879 = vadd.f32 0.0, %v878
    %880 = vmatprep.mubr.bf16.mxu0 %v505
    %881 = vmatmul.mubr.bf16.gmra.mrb[0].mxu0 %v504
    %v882 = vpop.f32.mrb[0].mxu0
    %v883 = vadd.f32 0.0, %v882
    %v884 = vpop.f32.mrb[0].mxu0
    %v885 = vadd.f32 0.0, %v884
    %v886 = vpop.f32.mrb[0].mxu0
    %v887 = vadd.f32 0.0, %v886
    %v888 = vpop.f32.mrb[0].mxu0
    %v889 = vadd.f32 0.0, %v888
    %890 = vdwg.mxu0
    %v891 = vadd.f32 %v250, %v733
    %v892 = vadd.f32 %v251, %v735
    %v893 = vadd.f32 %v252, %v737
    %v894 = vadd.f32 %v253, %v739
    %v895 = vadd.f32 %v254, %v743
    %v896 = vadd.f32 %v255, %v745
    %v897 = vadd.f32 %v256, %v747
    %v898 = vadd.f32 %v257, %v749
    %v899 = vadd.f32 %v258, %v753
    %v900 = vadd.f32 %v259, %v755
    %v901 = vadd.f32 %v260, %v757
    %v902 = vadd.f32 %v261, %v759
    %v903 = vadd.f32 %v262, %v763
    %v904 = vadd.f32 %v263, %v765
    %v905 = vadd.f32 %v264, %v767
    %v906 = vadd.f32 %v265, %v769
    %v907 = vadd.f32 %v266, %v773
    %v908 = vadd.f32 %v267, %v775
    %v909 = vadd.f32 %v268, %v777
    %v910 = vadd.f32 %v269, %v779
    %v911 = vadd.f32 %v270, %v783
    %v912 = vadd.f32 %v271, %v785
    %v913 = vadd.f32 %v272, %v787
    %v914 = vadd.f32 %v273, %v789
    %v915 = vadd.f32 %v274, %v793
    %v916 = vadd.f32 %v275, %v795
    %v917 = vadd.f32 %v276, %v797
    %v918 = vadd.f32 %v277, %v799
    %v919 = vadd.f32 %v278, %v803
    %v920 = vadd.f32 %v279, %v805
    %v921 = vadd.f32 %v280, %v807
    %v922 = vadd.f32 %v281, %v809
    %v923 = vadd.f32 %v282, %v813
    %v924 = vadd.f32 %v283, %v815
    %v925 = vadd.f32 %v284, %v817
    %v926 = vadd.f32 %v285, %v819
    %v927 = vadd.f32 %v286, %v823
    %v928 = vadd.f32 %v287, %v825
    %v929 = vadd.f32 %v288, %v827
    %v930 = vadd.f32 %v289, %v829
    %v931 = vadd.f32 %v290, %v833
    %v932 = vadd.f32 %v291, %v835
    %v933 = vadd.f32 %v292, %v837
    %v934 = vadd.f32 %v293, %v839
    %v935 = vadd.f32 %v294, %v843
    %v936 = vadd.f32 %v295, %v845
    %v937 = vadd.f32 %v296, %v847
    %v938 = vadd.f32 %v297, %v849
    %v939 = vadd.f32 %v298, %v853
    %v940 = vadd.f32 %v299, %v855
    %v941 = vadd.f32 %v300, %v857
    %v942 = vadd.f32 %v301, %v859
    %v943 = vadd.f32 %v302, %v863
    %v944 = vadd.f32 %v303, %v865
    %v945 = vadd.f32 %v304, %v867
    %v946 = vadd.f32 %v305, %v869
    %v947 = vadd.f32 %v306, %v873
    %v948 = vadd.f32 %v307, %v875
    %v949 = vadd.f32 %v308, %v877
    %v950 = vadd.f32 %v309, %v879
    %v951 = vadd.f32 %v310, %v883
    %v952 = vadd.f32 %v311, %v885
    %v953 = vadd.f32 %v312, %v887
    %v954 = vadd.f32 %v313, %v889
    %955 = vst [vmem:[#allocation2] sm:$0xff] %v891
    %956 = vst [vmem:[#allocation2 + $0x8] sm:$0xff] %v892
    %957 = vst [vmem:[#allocation2 + $0x10] sm:$0xff] %v893
    %958 = vst [vmem:[#allocation2 + $0x18] sm:$0xff] %v894
    %959 = vst [vmem:[#allocation2 + $0x20] sm:$0xff] %v895
    %960 = vst [vmem:[#allocation2 + $0x28] sm:$0xff] %v896
    %961 = vst [vmem:[#allocation2 + $0x30] sm:$0xff] %v897
    %962 = vst [vmem:[#allocation2 + $0x38] sm:$0xff] %v898
    %963 = vst [vmem:[#allocation2 + $0x40] sm:$0xff] %v899
    %964 = vst [vmem:[#allocation2 + $0x48] sm:$0xff] %v900
    %965 = vst [vmem:[#allocation2 + $0x50] sm:$0xff] %v901
    %966 = vst [vmem:[#allocation2 + $0x58] sm:$0xff] %v902
    %967 = vst [vmem:[#allocation2 + $0x60] sm:$0xff] %v903
    %968 = vst [vmem:[#allocation2 + $0x68] sm:$0xff] %v904
    %969 = vst [vmem:[#allocation2 + $0x70] sm:$0xff] %v905
    %970 = vst [vmem:[#allocation2 + $0x78] sm:$0xff] %v906
    %971 = vst [vmem:[#allocation2 + $0x80] sm:$0xff] %v907
    %972 = vst [vmem:[#allocation2 + $0x88] sm:$0xff] %v908
    %973 = vst [vmem:[#allocation2 + $0x90] sm:$0xff] %v909
    %974 = vst [vmem:[#allocation2 + $0x98] sm:$0xff] %v910
    %975 = vst [vmem:[#allocation2 + $0xa0] sm:$0xff] %v911
    %976 = vst [vmem:[#allocation2 + $0xa8] sm:$0xff] %v912
    %977 = vst [vmem:[#allocation2 + $0xb0] sm:$0xff] %v913
    %978 = vst [vmem:[#allocation2 + $0xb8] sm:$0xff] %v914
    %979 = vst [vmem:[#allocation2 + $0xc0] sm:$0xff] %v915
    %980 = vst [vmem:[#allocation2 + $0xc8] sm:$0xff] %v916
    %981 = vst [vmem:[#allocation2 + $0xd0] sm:$0xff] %v917
    %982 = vst [vmem:[#allocation2 + $0xd8] sm:$0xff] %v918
    %983 = vst [vmem:[#allocation2 + $0xe0] sm:$0xff] %v919
    %984 = vst [vmem:[#allocation2 + $0xe8] sm:$0xff] %v920
    %985 = vst [vmem:[#allocation2 + $0xf0] sm:$0xff] %v921
    %986 = vst [vmem:[#allocation2 + $0xf8] sm:$0xff] %v922
    %987 = vst [vmem:[#allocation2 + $0x100] sm:$0xff] %v923
    %988 = vst [vmem:[#allocation2 + $0x108] sm:$0xff] %v924
    %989 = vst [vmem:[#allocation2 + $0x110] sm:$0xff] %v925
    %990 = vst [vmem:[#allocation2 + $0x118] sm:$0xff] %v926
    %991 = vst [vmem:[#allocation2 + $0x120] sm:$0xff] %v927
    %992 = vst [vmem:[#allocation2 + $0x128] sm:$0xff] %v928
    %993 = vst [vmem:[#allocation2 + $0x130] sm:$0xff] %v929
    %994 = vst [vmem:[#allocation2 + $0x138] sm:$0xff] %v930
    %995 = vst [vmem:[#allocation2 + $0x140] sm:$0xff] %v931
    %996 = vst [vmem:[#allocation2 + $0x148] sm:$0xff] %v932
    %997 = vst [vmem:[#allocation2 + $0x150] sm:$0xff] %v933
    %998 = vst [vmem:[#allocation2 + $0x158] sm:$0xff] %v934
    %999 = vst [vmem:[#allocation2 + $0x160] sm:$0xff] %v935
    %1000 = vst [vmem:[#allocation2 + $0x168] sm:$0xff] %v936
    %1001 = vst [vmem:[#allocation2 + $0x170] sm:$0xff] %v937
    %1002 = vst [vmem:[#allocation2 + $0x178] sm:$0xff] %v938
    %1003 = vst [vmem:[#allocation2 + $0x180] sm:$0xff] %v939
    %1004 = vst [vmem:[#allocation2 + $0x188] sm:$0xff] %v940
    %1005 = vst [vmem:[#allocation2 + $0x190] sm:$0xff] %v941
    %1006 = vst [vmem:[#allocation2 + $0x198] sm:$0xff] %v942
    %1007 = vst [vmem:[#allocation2 + $0x1a0] sm:$0xff] %v943
    %1008 = vst [vmem:[#allocation2 + $0x1a8] sm:$0xff] %v944
    %1009 = vst [vmem:[#allocation2 + $0x1b0] sm:$0xff] %v945
    %1010 = vst [vmem:[#allocation2 + $0x1b8] sm:$0xff] %v946
    %1011 = vst [vmem:[#allocation2 + $0x1c0] sm:$0xff] %v947
    %1012 = vst [vmem:[#allocation2 + $0x1c8] sm:$0xff] %v948
    %1013 = vst [vmem:[#allocation2 + $0x1d0] sm:$0xff] %v949
    %1014 = vst [vmem:[#allocation2 + $0x1d8] sm:$0xff] %v950
    %1015 = vst [vmem:[#allocation2 + $0x1e0] sm:$0xff] %v951
    %1016 = vst [vmem:[#allocation2 + $0x1e8] sm:$0xff] %v952
    %1017 = vst [vmem:[#allocation2 + $0x1f0] sm:$0xff] %v953
    %1018 = vst [vmem:[#allocation2 + $0x1f8] sm:$0xff] %v954
    // Predicated region
    $region68: #{gnn_encoder_forward.6} parent=1 // pred_check
      %p1019 = pneg %p182
    $region69: #{gnn_encoder_forward.6} parent=1 // pred_check_branch
      %1021 = sbr.rel (%p1019) target = $region71
    $region70: #{gnn_encoder_forward.6} parent=1 // pred_region
      %v1022 = vld [vmem:[#allocation2] sm:$0xff]
      %v1023 = vld [vmem:[#allocation2 + $0x8] sm:$0xff]
      %v1024 = vld [vmem:[#allocation2 + $0x10] sm:$0xff]
      %v1025 = vld [vmem:[#allocation2 + $0x18] sm:$0xff]
      %v1026 = vld [vmem:[#allocation2 + $0x20] sm:$0xff]
      %v1027 = vld [vmem:[#allocation2 + $0x28] sm:$0xff]
      %v1028 = vld [vmem:[#allocation2 + $0x30] sm:$0xff]
      %v1029 = vld [vmem:[#allocation2 + $0x38] sm:$0xff]
      %v1030 = vld [vmem:[#allocation2 + $0x40] sm:$0xff]
      %v1031 = vld [vmem:[#allocation2 + $0x48] sm:$0xff]
      %v1032 = vld [vmem:[#allocation2 + $0x50] sm:$0xff]
      %v1033 = vld [vmem:[#allocation2 + $0x58] sm:$0xff]
      %v1034 = vld [vmem:[#allocation2 + $0x60] sm:$0xff]
      %v1035 = vld [vmem:[#allocation2 + $0x68] sm:$0xff]
      %v1036 = vld [vmem:[#allocation2 + $0x70] sm:$0xff]
      %v1037 = vld [vmem:[#allocation2 + $0x78] sm:$0xff]
      %v1038 = vld [vmem:[#allocation2 + $0x80] sm:$0xff]
      %v1039 = vld [vmem:[#allocation2 + $0x88] sm:$0xff]
      %v1040 = vld [vmem:[#allocation2 + $0x90] sm:$0xff]
      %v1041 = vld [vmem:[#allocation2 + $0x98] sm:$0xff]
      %v1042 = vld [vmem:[#allocation2 + $0xa0] sm:$0xff]
      %v1043 = vld [vmem:[#allocation2 + $0xa8] sm:$0xff]
      %v1044 = vld [vmem:[#allocation2 + $0xb0] sm:$0xff]
      %v1045 = vld [vmem:[#allocation2 + $0xb8] sm:$0xff]
      %v1046 = vld [vmem:[#allocation2 + $0xc0] sm:$0xff]
      %v1047 = vld [vmem:[#allocation2 + $0xc8] sm:$0xff]
      %v1048 = vld [vmem:[#allocation2 + $0xd0] sm:$0xff]
      %v1049 = vld [vmem:[#allocation2 + $0xd8] sm:$0xff]
      %v1050 = vld [vmem:[#allocation2 + $0xe0] sm:$0xff]
      %v1051 = vld [vmem:[#allocation2 + $0xe8] sm:$0xff]
      %v1052 = vld [vmem:[#allocation2 + $0xf0] sm:$0xff]
      %v1053 = vld [vmem:[#allocation2 + $0xf8] sm:$0xff]
      %v1054 = vld [vmem:[#allocation2 + $0x100] sm:$0xff]
      %v1055 = vld [vmem:[#allocation2 + $0x108] sm:$0xff]
      %v1056 = vld [vmem:[#allocation2 + $0x110] sm:$0xff]
      %v1057 = vld [vmem:[#allocation2 + $0x118] sm:$0xff]
      %v1058 = vld [vmem:[#allocation2 + $0x120] sm:$0xff]
      %v1059 = vld [vmem:[#allocation2 + $0x128] sm:$0xff]
      %v1060 = vld [vmem:[#allocation2 + $0x130] sm:$0xff]
      %v1061 = vld [vmem:[#allocation2 + $0x138] sm:$0xff]
      %v1062 = vld [vmem:[#allocation2 + $0x140] sm:$0xff]
      %v1063 = vld [vmem:[#allocation2 + $0x148] sm:$0xff]
      %v1064 = vld [vmem:[#allocation2 + $0x150] sm:$0xff]
      %v1065 = vld [vmem:[#allocation2 + $0x158] sm:$0xff]
      %v1066 = vld [vmem:[#allocation2 + $0x160] sm:$0xff]
      %v1067 = vld [vmem:[#allocation2 + $0x168] sm:$0xff]
      %v1068 = vld [vmem:[#allocation2 + $0x170] sm:$0xff]
      %v1069 = vld [vmem:[#allocation2 + $0x178] sm:$0xff]
      %v1070 = vld [vmem:[#allocation2 + $0x180] sm:$0xff]
      %v1071 = vld [vmem:[#allocation2 + $0x188] sm:$0xff]
      %v1072 = vld [vmem:[#allocation2 + $0x190] sm:$0xff]
      %v1073 = vld [vmem:[#allocation2 + $0x198] sm:$0xff]
      %v1074 = vld [vmem:[#allocation2 + $0x1a0] sm:$0xff]
      %v1075 = vld [vmem:[#allocation2 + $0x1a8] sm:$0xff]
      %v1076 = vld [vmem:[#allocation2 + $0x1b0] sm:$0xff]
      %v1077 = vld [vmem:[#allocation2 + $0x1b8] sm:$0xff]
      %v1078 = vld [vmem:[#allocation2 + $0x1c0] sm:$0xff]
      %v1079 = vld [vmem:[#allocation2 + $0x1c8] sm:$0xff]
      %v1080 = vld [vmem:[#allocation2 + $0x1d0] sm:$0xff]
      %v1081 = vld [vmem:[#allocation2 + $0x1d8] sm:$0xff]
      %v1082 = vld [vmem:[#allocation2 + $0x1e0] sm:$0xff]
      %v1083 = vld [vmem:[#allocation2 + $0x1e8] sm:$0xff]
      %v1084 = vld [vmem:[#allocation2 + $0x1f0] sm:$0xff]
      %v1085 = vld [vmem:[#allocation2 + $0x1f8] sm:$0xff]
      %v1086 = vpack.c.bf16 %v1024, %v1022
      %v1087 = vpack.c.bf16 %v1025, %v1023
      %v1088 = vpack.c.bf16 %v1028, %v1026
      %v1089 = vpack.c.bf16 %v1029, %v1027
      %v1090 = vpack.c.bf16 %v1032, %v1030
      %v1091 = vpack.c.bf16 %v1033, %v1031
      %v1092 = vpack.c.bf16 %v1036, %v1034
      %v1093 = vpack.c.bf16 %v1037, %v1035
      %v1094 = vpack.c.bf16 %v1040, %v1038
      %v1095 = vpack.c.bf16 %v1041, %v1039
      %v1096 = vpack.c.bf16 %v1044, %v1042
      %v1097 = vpack.c.bf16 %v1045, %v1043
      %v1098 = vpack.c.bf16 %v1048, %v1046
      %v1099 = vpack.c.bf16 %v1049, %v1047
      %v1100 = vpack.c.bf16 %v1052, %v1050
      %v1101 = vpack.c.bf16 %v1053, %v1051
      %v1102 = vpack.c.bf16 %v1056, %v1054
      %v1103 = vpack.c.bf16 %v1057, %v1055
      %v1104 = vpack.c.bf16 %v1060, %v1058
      %v1105 = vpack.c.bf16 %v1061, %v1059
      %v1106 = vpack.c.bf16 %v1064, %v1062
      %v1107 = vpack.c.bf16 %v1065, %v1063
      %v1108 = vpack.c.bf16 %v1068, %v1066
      %v1109 = vpack.c.bf16 %v1069, %v1067
      %v1110 = vpack.c.bf16 %v1072, %v1070
      %v1111 = vpack.c.bf16 %v1073, %v1071
      %v1112 = vpack.c.bf16 %v1076, %v1074
      %v1113 = vpack.c.bf16 %v1077, %v1075
      %v1114 = vpack.c.bf16 %v1080, %v1078
      %v1115 = vpack.c.bf16 %v1081, %v1079
      %v1116 = vpack.c.bf16 %v1084, %v1082
      %v1117 = vpack.c.bf16 %v1085, %v1083
      %v1118 = vld [vmem:[%s2] sm:$0xf]
      %v1119 = vld [vmem:[%s2 + $0x4] sm:$0xf]
      %v1120 = vld [vmem:[%s2 + $0x8] sm:$0xf]
      %v1121 = vld [vmem:[%s2 + $0xc] sm:$0xf]
      %v1122 = vld [vmem:[%s2 + $0x10] sm:$0xf]
      %v1123 = vld [vmem:[%s2 + $0x14] sm:$0xf]
      %v1124 = vld [vmem:[%s2 + $0x18] sm:$0xf]
      %v1125 = vld [vmem:[%s2 + $0x1c] sm:$0xf]
      %v1126 = vld [vmem:[%s2 + $0x20] sm:$0xf]
      %v1127 = vld [vmem:[%s2 + $0x24] sm:$0xf]
      %v1128 = vld [vmem:[%s2 + $0x28] sm:$0xf]
      %v1129 = vld [vmem:[%s2 + $0x2c] sm:$0xf]
      %v1130 = vld [vmem:[%s2 + $0x30] sm:$0xf]
      %v1131 = vld [vmem:[%s2 + $0x34] sm:$0xf]
      %v1132 = vld [vmem:[%s2 + $0x38] sm:$0xf]
      %v1133 = vld [vmem:[%s2 + $0x3c] sm:$0xf]
      %v1134 = vld [vmem:[%s2 + $0x40] sm:$0xf]
      %v1135 = vld [vmem:[%s2 + $0x44] sm:$0xf]
      %v1136 = vld [vmem:[%s2 + $0x48] sm:$0xf]
      %v1137 = vld [vmem:[%s2 + $0x4c] sm:$0xf]
      %v1138 = vld [vmem:[%s2 + $0x50] sm:$0xf]
      %v1139 = vld [vmem:[%s2 + $0x54] sm:$0xf]
      %v1140 = vld [vmem:[%s2 + $0x58] sm:$0xf]
      %v1141 = vld [vmem:[%s2 + $0x5c] sm:$0xf]
      %v1142 = vld [vmem:[%s2 + $0x60] sm:$0xf]
      %v1143 = vld [vmem:[%s2 + $0x64] sm:$0xf]
      %v1144 = vld [vmem:[%s2 + $0x68] sm:$0xf]
      %v1145 = vld [vmem:[%s2 + $0x6c] sm:$0xf]
      %v1146 = vld [vmem:[%s2 + $0x70] sm:$0xf]
      %v1147 = vld [vmem:[%s2 + $0x74] sm:$0xf]
      %v1148 = vld [vmem:[%s2 + $0x78] sm:$0xf]
      %v1149 = vld [vmem:[%s2 + $0x7c] sm:$0xf]
      %v1150 = vld [vmem:[%s3] sm:$0x1]
      %v1152 = vlaneseq
      %v1153 = vshrl.u32 %v1152, 7
      %v1154 = vsub.s32 0, %v1153
      %v1155 = vrot.slane %v1150, %v1154
      %v1189 = vunpack.c.l.b16 %v1118
      %v1190 = vunpack.c.l.b16 %v1119
      %v1191 = vunpack.c.l.b16 %v1120
      %v1192 = vunpack.c.l.b16 %v1121
      %v1193 = vunpack.c.l.b16 %v1122
      %v1194 = vunpack.c.l.b16 %v1123
      %v1195 = vunpack.c.l.b16 %v1124
      %v1196 = vunpack.c.l.b16 %v1125
      %v1197 = vunpack.c.l.b16 %v1126
      %v1198 = vunpack.c.l.b16 %v1127
      %v1199 = vunpack.c.l.b16 %v1128
      %v1200 = vunpack.c.l.b16 %v1129
      %v1201 = vunpack.c.l.b16 %v1130
      %v1202 = vunpack.c.l.b16 %v1131
      %v1203 = vunpack.c.l.b16 %v1132
      %v1204 = vunpack.c.l.b16 %v1133
      %v1205 = vunpack.c.l.b16 %v1134
      %v1206 = vunpack.c.l.b16 %v1135
      %v1207 = vunpack.c.l.b16 %v1136
      %v1208 = vunpack.c.l.b16 %v1137
      %v1209 = vunpack.c.l.b16 %v1138
      %v1210 = vunpack.c.l.b16 %v1139
      %v1211 = vunpack.c.l.b16 %v1140
      %v1212 = vunpack.c.l.b16 %v1141
      %v1213 = vunpack.c.l.b16 %v1142
      %v1214 = vunpack.c.l.b16 %v1143
      %v1215 = vunpack.c.l.b16 %v1144
      %v1216 = vunpack.c.l.b16 %v1145
      %v1217 = vunpack.c.l.b16 %v1146
      %v1218 = vunpack.c.l.b16 %v1147
      %v1219 = vunpack.c.l.b16 %v1148
      %v1220 = vunpack.c.l.b16 %v1149
      %v1221 = vpack.c.b16 %v1190, %v1189
      %v1222 = vpack.c.b16 %v1192, %v1191
      %v1223 = vpack.c.b16 %v1194, %v1193
      %v1224 = vpack.c.b16 %v1196, %v1195
      %v1225 = vpack.c.b16 %v1198, %v1197
      %v1226 = vpack.c.b16 %v1200, %v1199
      %v1227 = vpack.c.b16 %v1202, %v1201
      %v1228 = vpack.c.b16 %v1204, %v1203
      %v1229 = vpack.c.b16 %v1206, %v1205
      %v1230 = vpack.c.b16 %v1208, %v1207
      %v1231 = vpack.c.b16 %v1210, %v1209
      %v1232 = vpack.c.b16 %v1212, %v1211
      %v1233 = vpack.c.b16 %v1214, %v1213
      %v1234 = vpack.c.b16 %v1216, %v1215
      %v1235 = vpack.c.b16 %v1218, %v1217
      %v1236 = vpack.c.b16 %v1220, %v1219
      %1253 = vmatprep.subr.bf16.mxu0 0
      %1254 = vmatpush1.bf16.msra.mxu0 %v1221
      %1255 = vmatprep.subr.bf16.mxu0 0
      %1256 = vmatpush1.bf16.msra.mxu0 %v1222
      %1257 = vmatprep.subr.bf16.mxu0 0
      %1258 = vmatpush1.bf16.msra.mxu0 %v1223
      %1259 = vmatprep.subr.bf16.mxu0 0
      %1260 = vmatpush1.bf16.msra.mxu0 %v1224
      %1261 = vmatprep.subr.bf16.mxu0 0
      %1262 = vmatpush1.bf16.msra.mxu0 %v1225
      %1263 = vmatprep.subr.bf16.mxu0 0
      %1264 = vmatpush1.bf16.msra.mxu0 %v1226
      %1265 = vmatprep.subr.bf16.mxu0 0
      %1266 = vmatpush1.bf16.msra.mxu0 %v1227
      %1267 = vmatprep.subr.bf16.mxu0 0
      %1268 = vmatpush1.bf16.msra.mxu0 %v1228
      %1269 = vmatprep.subr.bf16.mxu0 0
      %1270 = vmatpush1.bf16.msra.mxu0 %v1229
      %1271 = vmatprep.subr.bf16.mxu0 0
      %1272 = vmatpush1.bf16.msra.mxu0 %v1230
      %1273 = vmatprep.subr.bf16.mxu0 0
      %1274 = vmatpush1.bf16.msra.mxu0 %v1231
      %1275 = vmatprep.subr.bf16.mxu0 0
      %1276 = vmatpush1.bf16.msra.mxu0 %v1232
      %1277 = vmatprep.subr.bf16.mxu0 0
      %1278 = vmatpush1.bf16.msra.mxu0 %v1233
      %1279 = vmatprep.subr.bf16.mxu0 0
      %1280 = vmatpush1.bf16.msra.mxu0 %v1234
      %1281 = vmatprep.subr.bf16.mxu0 0
      %1282 = vmatpush1.bf16.msra.mxu0 %v1235
      %1283 = vmatprep.subr.bf16.mxu0 0
      %1284 = vmatpush1.bf16.msra.mxu0 %v1236
      %1285 = vmatprep.mubr.bf16.mxu0 %v1087
      %1286 = vmatmul.mubr.bf16.gmra.mrb[0].mxu0 %v1086
      %v1287 = vpop.f32.mrb[0].mxu0
      %v1288 = vadd.f32 %v1155, %v1287
      %v1289 = vpop.f32.mrb[0].mxu0
      %v1290 = vpop.f32.mrb[0].mxu0
      %v1291 = vadd.f32 %v1155, %v1290
      %v1292 = vpop.f32.mrb[0].mxu0
      %1293 = vmatprep.mubr.bf16.mxu0 %v1089
      %1294 = vmatmul.mubr.bf16.gmra.mrb[0].mxu0 %v1088
      %v1295 = vpop.f32.mrb[0].mxu0
      %v1296 = vadd.f32 %v1155, %v1295
      %v1297 = vpop.f32.mrb[0].mxu0
      %v1298 = vpop.f32.mrb[0].mxu0
      %v1299 = vadd.f32 %v1155, %v1298
      %v1300 = vpop.f32.mrb[0].mxu0
      %1301 = vmatprep.mubr.bf16.mxu0 %v1091
      %1302 = vmatmul.mubr.bf16.gmra.mrb[0].mxu0 %v1090
      %v1303 = vpop.f32.mrb[0].mxu0
      %v1304 = vadd.f32 %v1155, %v1303
      %v1305 = vpop.f32.mrb[0].mxu0
      %v1306 = vpop.f32.mrb[0].mxu0
      %v1307 = vadd.f32 %v1155, %v1306
      %v1308 = vpop.f32.mrb[0].mxu0
      %1309 = vmatprep.mubr.bf16.mxu0 %v1093
      %1310 = vmatmul.mubr.bf16.gmra.mrb[0].mxu0 %v1092
      %v1311 = vpop.f32.mrb[0].mxu0
      %v1312 = vadd.f32 %v1155, %v1311
      %v1313 = vpop.f32.mrb[0].mxu0
      %v1314 = vpop.f32.mrb[0].mxu0
      %v1315 = vadd.f32 %v1155, %v1314
      %v1316 = vpop.f32.mrb[0].mxu0
      %1317 = vmatprep.mubr.bf16.mxu0 %v1095
      %1318 = vmatmul.mubr.bf16.gmra.mrb[0].mxu0 %v1094
      %v1319 = vpop.f32.mrb[0].mxu0
      %v1320 = vadd.f32 %v1155, %v1319
      %v1321 = vpop.f32.mrb[0].mxu0
      %v1322 = vpop.f32.mrb[0].mxu0
      %v1323 = vadd.f32 %v1155, %v1322
      %v1324 = vpop.f32.mrb[0].mxu0
      %1325 = vmatprep.mubr.bf16.mxu0 %v1097
      %1326 = vmatmul.mubr.bf16.gmra.mrb[0].mxu0 %v1096
      %v1327 = vpop.f32.mrb[0].mxu0
      %v1328 = vadd.f32 %v1155, %v1327
      %v1329 = vpop.f32.mrb[0].mxu0
      %v1330 = vpop.f32.mrb[0].mxu0
      %v1331 = vadd.f32 %v1155, %v1330
      %v1332 = vpop.f32.mrb[0].mxu0
      %1333 = vmatprep.mubr.bf16.mxu0 %v1099
      %1334 = vmatmul.mubr.bf16.gmra.mrb[0].mxu0 %v1098
      %v1335 = vpop.f32.mrb[0].mxu0
      %v1336 = vadd.f32 %v1155, %v1335
      %v1337 = vpop.f32.mrb[0].mxu0
      %v1338 = vpop.f32.mrb[0].mxu0
      %v1339 = vadd.f32 %v1155, %v1338
      %v1340 = vpop.f32.mrb[0].mxu0
      %1341 = vmatprep.mubr.bf16.mxu0 %v1101
      %1342 = vmatmul.mubr.bf16.gmra.mrb[0].mxu0 %v1100
      %v1343 = vpop.f32.mrb[0].mxu0
      %v1344 = vadd.f32 %v1155, %v1343
      %v1345 = vpop.f32.mrb[0].mxu0
      %v1346 = vpop.f32.mrb[0].mxu0
      %v1347 = vadd.f32 %v1155, %v1346
      %v1348 = vpop.f32.mrb[0].mxu0
      %1349 = vmatprep.mubr.bf16.mxu0 %v1103
      %1350 = vmatmul.mubr.bf16.gmra.mrb[0].mxu0 %v1102
      %v1351 = vpop.f32.mrb[0].mxu0
      %v1352 = vadd.f32 %v1155, %v1351
      %v1353 = vpop.f32.mrb[0].mxu0
      %v1354 = vpop.f32.mrb[0].mxu0
      %v1355 = vadd.f32 %v1155, %v1354
      %v1356 = vpop.f32.mrb[0].mxu0
      %1357 = vmatprep.mubr.bf16.mxu0 %v1105
      %1358 = vmatmul.mubr.bf16.gmra.mrb[0].mxu0 %v1104
      %v1359 = vpop.f32.mrb[0].mxu0
      %v1360 = vadd.f32 %v1155, %v1359
      %v1361 = vpop.f32.mrb[0].mxu0
      %v1362 = vpop.f32.mrb[0].mxu0
      %v1363 = vadd.f32 %v1155, %v1362
      %v1364 = vpop.f32.mrb[0].mxu0
      %1365 = vmatprep.mubr.bf16.mxu0 %v1107
      %1366 = vmatmul.mubr.bf16.gmra.mrb[0].mxu0 %v1106
      %v1367 = vpop.f32.mrb[0].mxu0
      %v1368 = vadd.f32 %v1155, %v1367
      %v1369 = vpop.f32.mrb[0].mxu0
      %v1370 = vpop.f32.mrb[0].mxu0
      %v1371 = vadd.f32 %v1155, %v1370
      %v1372 = vpop.f32.mrb[0].mxu0
      %1373 = vmatprep.mubr.bf16.mxu0 %v1109
      %1374 = vmatmul.mubr.bf16.gmra.mrb[0].mxu0 %v1108
      %v1375 = vpop.f32.mrb[0].mxu0
      %v1376 = vadd.f32 %v1155, %v1375
      %v1377 = vpop.f32.mrb[0].mxu0
      %v1378 = vpop.f32.mrb[0].mxu0
      %v1379 = vadd.f32 %v1155, %v1378
      %v1380 = vpop.f32.mrb[0].mxu0
      %1381 = vmatprep.mubr.bf16.mxu0 %v1111
      %1382 = vmatmul.mubr.bf16.gmra.mrb[0].mxu0 %v1110
      %v1383 = vpop.f32.mrb[0].mxu0
      %v1384 = vadd.f32 %v1155, %v1383
      %v1385 = vpop.f32.mrb[0].mxu0
      %v1386 = vpop.f32.mrb[0].mxu0
      %v1387 = vadd.f32 %v1155, %v1386
      %v1388 = vpop.f32.mrb[0].mxu0
      %1389 = vmatprep.mubr.bf16.mxu0 %v1113
      %1390 = vmatmul.mubr.bf16.gmra.mrb[0].mxu0 %v1112
      %v1391 = vpop.f32.mrb[0].mxu0
      %v1392 = vadd.f32 %v1155, %v1391
      %v1393 = vpop.f32.mrb[0].mxu0
      %v1394 = vpop.f32.mrb[0].mxu0
      %v1395 = vadd.f32 %v1155, %v1394
      %v1396 = vpop.f32.mrb[0].mxu0
      %1397 = vmatprep.mubr.bf16.mxu0 %v1115
      %1398 = vmatmul.mubr.bf16.gmra.mrb[0].mxu0 %v1114
      %v1399 = vpop.f32.mrb[0].mxu0
      %v1400 = vadd.f32 %v1155, %v1399
      %v1401 = vpop.f32.mrb[0].mxu0
      %v1402 = vpop.f32.mrb[0].mxu0
      %v1403 = vadd.f32 %v1155, %v1402
      %v1404 = vpop.f32.mrb[0].mxu0
      %1405 = vmatprep.mubr.bf16.mxu0 %v1117
      %1406 = vmatmul.mubr.bf16.gmra.mrb[0].mxu0 %v1116
      %v1407 = vpop.f32.mrb[0].mxu0
      %v1408 = vadd.f32 %v1155, %v1407
      %v1409 = vpop.f32.mrb[0].mxu0
      %v1410 = vpop.f32.mrb[0].mxu0
      %v1411 = vadd.f32 %v1155, %v1410
      %v1412 = vpop.f32.mrb[0].mxu0
      %1413 = vdwg.mxu0
      %v1414 = vmax.f32 %v1288, 0.0
      %v1415 = vmax.f32 %v1291, 0.0
      %v1416 = vmax.f32 %v1296, 0.0
      %v1417 = vmax.f32 %v1299, 0.0
      %v1418 = vmax.f32 %v1304, 0.0
      %v1419 = vmax.f32 %v1307, 0.0
      %v1420 = vmax.f32 %v1312, 0.0
      %v1421 = vmax.f32 %v1315, 0.0
      %v1422 = vmax.f32 %v1320, 0.0
      %v1423 = vmax.f32 %v1323, 0.0
      %v1424 = vmax.f32 %v1328, 0.0
      %v1425 = vmax.f32 %v1331, 0.0
      %v1426 = vmax.f32 %v1336, 0.0
      %v1427 = vmax.f32 %v1339, 0.0
      %v1428 = vmax.f32 %v1344, 0.0
      %v1429 = vmax.f32 %v1347, 0.0
      %v1430 = vmax.f32 %v1352, 0.0
      %v1431 = vmax.f32 %v1355, 0.0
      %v1432 = vmax.f32 %v1360, 0.0
      %v1433 = vmax.f32 %v1363, 0.0
      %v1434 = vmax.f32 %v1368, 0.0
      %v1435 = vmax.f32 %v1371, 0.0
      %v1436 = vmax.f32 %v1376, 0.0
      %v1437 = vmax.f32 %v1379, 0.0
      %v1438 = vmax.f32 %v1384, 0.0
      %v1439 = vmax.f32 %v1387, 0.0
      %v1440 = vmax.f32 %v1392, 0.0
      %v1441 = vmax.f32 %v1395, 0.0
      %v1442 = vmax.f32 %v1400, 0.0
      %v1443 = vmax.f32 %v1403, 0.0
      %v1444 = vmax.f32 %v1408, 0.0
      %v1445 = vmax.f32 %v1411, 0.0
      %v1446 = vpack.c.bf16 %v1415, %v1414
      %v1447 = vpack.c.bf16 %v1417, %v1416
      %v1448 = vpack.c.bf16 %v1419, %v1418
      %v1449 = vpack.c.bf16 %v1421, %v1420
      %v1450 = vpack.c.bf16 %v1423, %v1422
      %v1451 = vpack.c.bf16 %v1425, %v1424
      %v1452 = vpack.c.bf16 %v1427, %v1426
      %v1453 = vpack.c.bf16 %v1429, %v1428
      %v1454 = vpack.c.bf16 %v1431, %v1430
      %v1455 = vpack.c.bf16 %v1433, %v1432
      %v1456 = vpack.c.bf16 %v1435, %v1434
      %v1457 = vpack.c.bf16 %v1437, %v1436
      %v1458 = vpack.c.bf16 %v1439, %v1438
      %v1459 = vpack.c.bf16 %v1441, %v1440
      %v1460 = vpack.c.bf16 %v1443, %v1442
      %v1461 = vpack.c.bf16 %v1445, %v1444
      %v1462 = vld [vmem:[%s4] sm:$0xf]
      %v1463 = vld [vmem:[%s4 + $0x4] sm:$0xf]
      %v1464 = vld [vmem:[%s4 + $0x8] sm:$0xf]
      %v1465 = vld [vmem:[%s4 + $0xc] sm:$0xf]
      %v1466 = vld [vmem:[%s4 + $0x10] sm:$0xf]
      %v1467 = vld [vmem:[%s4 + $0x14] sm:$0xf]
      %v1468 = vld [vmem:[%s4 + $0x18] sm:$0xf]
      %v1469 = vld [vmem:[%s4 + $0x1c] sm:$0xf]
      %v1470 = vld [vmem:[%s4 + $0x20] sm:$0xf]
      %v1471 = vld [vmem:[%s4 + $0x24] sm:$0xf]
      %v1472 = vld [vmem:[%s4 + $0x28] sm:$0xf]
      %v1473 = vld [vmem:[%s4 + $0x2c] sm:$0xf]
      %v1474 = vld [vmem:[%s4 + $0x30] sm:$0xf]
      %v1475 = vld [vmem:[%s4 + $0x34] sm:$0xf]
      %v1476 = vld [vmem:[%s4 + $0x38] sm:$0xf]
      %v1477 = vld [vmem:[%s4 + $0x3c] sm:$0xf]
      %v1478 = vld [vmem:[%s5] sm:$0x1]
      %v1480 = vlaneseq
      %v1481 = vshrl.u32 %v1480, 7
      %v1482 = vsub.s32 0, %v1481
      %v1483 = vrot.slane %v1478, %v1482
      %v1501 = vunpack.c.l.b16 %v1462
      %v1502 = vunpack.c.l.b16 %v1463
      %v1503 = vunpack.c.l.b16 %v1464
      %v1504 = vunpack.c.l.b16 %v1465
      %v1505 = vunpack.c.l.b16 %v1466
      %v1506 = vunpack.c.l.b16 %v1467
      %v1507 = vunpack.c.l.b16 %v1468
      %v1508 = vunpack.c.l.b16 %v1469
      %v1509 = vunpack.c.l.b16 %v1470
      %v1510 = vunpack.c.l.b16 %v1471
      %v1511 = vunpack.c.l.b16 %v1472
      %v1512 = vunpack.c.l.b16 %v1473
      %v1513 = vunpack.c.l.b16 %v1474
      %v1514 = vunpack.c.l.b16 %v1475
      %v1515 = vunpack.c.l.b16 %v1476
      %v1516 = vunpack.c.l.b16 %v1477
      %v1517 = vpack.c.b16 %v1502, %v1501
      %v1518 = vpack.c.b16 %v1504, %v1503
      %v1519 = vpack.c.b16 %v1506, %v1505
      %v1520 = vpack.c.b16 %v1508, %v1507
      %v1521 = vpack.c.b16 %v1510, %v1509
      %v1522 = vpack.c.b16 %v1512, %v1511
      %v1523 = vpack.c.b16 %v1514, %v1513
      %v1524 = vpack.c.b16 %v1516, %v1515
      %1533 = vmatprep.subr.bf16.mxu0 0
      %1534 = vmatpush1.bf16.msra.mxu0 %v1517
      %1535 = vmatprep.subr.bf16.mxu0 0
      %1536 = vmatpush1.bf16.msra.mxu0 %v1518
      %1537 = vmatprep.subr.bf16.mxu0 0
      %1538 = vmatpush1.bf16.msra.mxu0 %v1519
      %1539 = vmatprep.subr.bf16.mxu0 0
      %1540 = vmatpush1.bf16.msra.mxu0 %v1520
      %1541 = vmatprep.subr.bf16.mxu0 0
      %1542 = vmatpush1.bf16.msra.mxu0 %v1521
      %1543 = vmatprep.subr.bf16.mxu0 0
      %1544 = vmatpush1.bf16.msra.mxu0 %v1522
      %1545 = vmatprep.subr.bf16.mxu0 0
      %1546 = vmatpush1.bf16.msra.mxu0 %v1523
      %1547 = vmatprep.subr.bf16.mxu0 0
      %1548 = vmatpush1.bf16.msra.mxu0 %v1524
      %1549 = vmatprep.subr.bf16.mxu0 0
      %1550 = vmatpush1.bf16.msra.mxu0 0
      %1551 = vmatprep.subr.bf16.mxu0 0
      %1552 = vmatpush1.bf16.msra.mxu0 0
      %1553 = vmatprep.subr.bf16.mxu0 0
      %1554 = vmatpush1.bf16.msra.mxu0 0
      %1555 = vmatprep.subr.bf16.mxu0 0
      %1556 = vmatpush1.bf16.msra.mxu0 0
      %1557 = vmatprep.subr.bf16.mxu0 0
      %1558 = vmatpush1.bf16.msra.mxu0 0
      %1559 = vmatprep.subr.bf16.mxu0 0
      %1560 = vmatpush1.bf16.msra.mxu0 0
      %1561 = vmatprep.subr.bf16.mxu0 0
      %1562 = vmatpush1.bf16.msra.mxu0 0
      %1563 = vmatprep.subr.bf16.mxu0 0
      %1564 = vmatpush1.bf16.msra.mxu0 0
      %1565 = vmatprep.mubr.bf16.mxu0 0
      %1566 = vmatmul.mubr.bf16.gmra.mrb[0].mxu0 %v1446
      %v1567 = vpop.f32.mrb[0].mxu0
      %v1568 = vadd.f32 %v1483, %v1567
      %v1569 = vpop.f32.mrb[0].mxu0
      %v1570 = vpop.f32.mrb[0].mxu0
      %v1571 = vadd.f32 %v1483, %v1570
      %v1572 = vpop.f32.mrb[0].mxu0
      %1573 = vmatprep.mubr.bf16.mxu0 0
      %1574 = vmatmul.mubr.bf16.gmra.mrb[0].mxu0 %v1447
      %v1575 = vpop.f32.mrb[0].mxu0
      %v1576 = vadd.f32 %v1483, %v1575
      %v1577 = vpop.f32.mrb[0].mxu0
      %v1578 = vpop.f32.mrb[0].mxu0
      %v1579 = vadd.f32 %v1483, %v1578
      %v1580 = vpop.f32.mrb[0].mxu0
      %1581 = vmatprep.mubr.bf16.mxu0 0
      %1582 = vmatmul.mubr.bf16.gmra.mrb[0].mxu0 %v1448
      %v1583 = vpop.f32.mrb[0].mxu0
      %v1584 = vadd.f32 %v1483, %v1583
      %v1585 = vpop.f32.mrb[0].mxu0
      %v1586 = vpop.f32.mrb[0].mxu0
      %v1587 = vadd.f32 %v1483, %v1586
      %v1588 = vpop.f32.mrb[0].mxu0
      %1589 = vmatprep.mubr.bf16.mxu0 0
      %1590 = vmatmul.mubr.bf16.gmra.mrb[0].mxu0 %v1449
      %v1591 = vpop.f32.mrb[0].mxu0
      %v1592 = vadd.f32 %v1483, %v1591
      %v1593 = vpop.f32.mrb[0].mxu0
      %v1594 = vpop.f32.mrb[0].mxu0
      %v1595 = vadd.f32 %v1483, %v1594
      %v1596 = vpop.f32.mrb[0].mxu0
      %1597 = vmatprep.mubr.bf16.mxu0 0
      %1598 = vmatmul.mubr.bf16.gmra.mrb[0].mxu0 %v1450
      %v1599 = vpop.f32.mrb[0].mxu0
      %v1600 = vadd.f32 %v1483, %v1599
      %v1601 = vpop.f32.mrb[0].mxu0
      %v1602 = vpop.f32.mrb[0].mxu0
      %v1603 = vadd.f32 %v1483, %v1602
      %v1604 = vpop.f32.mrb[0].mxu0
      %1605 = vmatprep.mubr.bf16.mxu0 0
      %1606 = vmatmul.mubr.bf16.gmra.mrb[0].mxu0 %v1451
      %v1607 = vpop.f32.mrb[0].mxu0
      %v1608 = vadd.f32 %v1483, %v1607
      %v1609 = vpop.f32.mrb[0].mxu0
      %v1610 = vpop.f32.mrb[0].mxu0
      %v1611 = vadd.f32 %v1483, %v1610
      %v1612 = vpop.f32.mrb[0].mxu0
      %1613 = vmatprep.mubr.bf16.mxu0 0
      %1614 = vmatmul.mubr.bf16.gmra.mrb[0].mxu0 %v1452
      %v1615 = vpop.f32.mrb[0].mxu0
      %v1616 = vadd.f32 %v1483, %v1615
      %v1617 = vpop.f32.mrb[0].mxu0
      %v1618 = vpop.f32.mrb[0].mxu0
      %v1619 = vadd.f32 %v1483, %v1618
      %v1620 = vpop.f32.mrb[0].mxu0
      %1621 = vmatprep.mubr.bf16.mxu0 0
      %1622 = vmatmul.mubr.bf16.gmra.mrb[0].mxu0 %v1453
      %v1623 = vpop.f32.mrb[0].mxu0
      %v1624 = vadd.f32 %v1483, %v1623
      %v1625 = vpop.f32.mrb[0].mxu0
      %v1626 = vpop.f32.mrb[0].mxu0
      %v1627 = vadd.f32 %v1483, %v1626
      %v1628 = vpop.f32.mrb[0].mxu0
      %1629 = vmatprep.mubr.bf16.mxu0 0
      %1630 = vmatmul.mubr.bf16.gmra.mrb[0].mxu0 %v1454
      %v1631 = vpop.f32.mrb[0].mxu0
      %v1632 = vadd.f32 %v1483, %v1631
      %v1633 = vpop.f32.mrb[0].mxu0
      %v1634 = vpop.f32.mrb[0].mxu0
      %v1635 = vadd.f32 %v1483, %v1634
      %v1636 = vpop.f32.mrb[0].mxu0
      %1637 = vmatprep.mubr.bf16.mxu0 0
      %1638 = vmatmul.mubr.bf16.gmra.mrb[0].mxu0 %v1455
      %v1639 = vpop.f32.mrb[0].mxu0
      %v1640 = vadd.f32 %v1483, %v1639
      %v1641 = vpop.f32.mrb[0].mxu0
      %v1642 = vpop.f32.mrb[0].mxu0
      %v1643 = vadd.f32 %v1483, %v1642
      %v1644 = vpop.f32.mrb[0].mxu0
      %1645 = vmatprep.mubr.bf16.mxu0 0
      %1646 = vmatmul.mubr.bf16.gmra.mrb[0].mxu0 %v1456
      %v1647 = vpop.f32.mrb[0].mxu0
      %v1648 = vadd.f32 %v1483, %v1647
      %v1649 = vpop.f32.mrb[0].mxu0
      %v1650 = vpop.f32.mrb[0].mxu0
      %v1651 = vadd.f32 %v1483, %v1650
      %v1652 = vpop.f32.mrb[0].mxu0
      %1653 = vmatprep.mubr.bf16.mxu0 0
      %1654 = vmatmul.mubr.bf16.gmra.mrb[0].mxu0 %v1457
      %v1655 = vpop.f32.mrb[0].mxu0
      %v1656 = vadd.f32 %v1483, %v1655
      %v1657 = vpop.f32.mrb[0].mxu0
      %v1658 = vpop.f32.mrb[0].mxu0
      %v1659 = vadd.f32 %v1483, %v1658
      %v1660 = vpop.f32.mrb[0].mxu0
      %1661 = vmatprep.mubr.bf16.mxu0 0
      %1662 = vmatmul.mubr.bf16.gmra.mrb[0].mxu0 %v1458
      %v1663 = vpop.f32.mrb[0].mxu0
      %v1664 = vadd.f32 %v1483, %v1663
      %v1665 = vpop.f32.mrb[0].mxu0
      %v1666 = vpop.f32.mrb[0].mxu0
      %v1667 = vadd.f32 %v1483, %v1666
      %v1668 = vpop.f32.mrb[0].mxu0
      %1669 = vmatprep.mubr.bf16.mxu0 0
      %1670 = vmatmul.mubr.bf16.gmra.mrb[0].mxu0 %v1459
      %v1671 = vpop.f32.mrb[0].mxu0
      %v1672 = vadd.f32 %v1483, %v1671
      %v1673 = vpop.f32.mrb[0].mxu0
      %v1674 = vpop.f32.mrb[0].mxu0
      %v1675 = vadd.f32 %v1483, %v1674
      %v1676 = vpop.f32.mrb[0].mxu0
      %1677 = vmatprep.mubr.bf16.mxu0 0
      %1678 = vmatmul.mubr.bf16.gmra.mrb[0].mxu0 %v1460
      %v1679 = vpop.f32.mrb[0].mxu0
      %v1680 = vadd.f32 %v1483, %v1679
      %v1681 = vpop.f32.mrb[0].mxu0
      %v1682 = vpop.f32.mrb[0].mxu0
      %v1683 = vadd.f32 %v1483, %v1682
      %v1684 = vpop.f32.mrb[0].mxu0
      %1685 = vmatprep.mubr.bf16.mxu0 0
      %1686 = vmatmul.mubr.bf16.gmra.mrb[0].mxu0 %v1461
      %v1687 = vpop.f32.mrb[0].mxu0
      %v1688 = vadd.f32 %v1483, %v1687
      %v1689 = vpop.f32.mrb[0].mxu0
      %v1690 = vpop.f32.mrb[0].mxu0
      %v1691 = vadd.f32 %v1483, %v1690
      %v1692 = vpop.f32.mrb[0].mxu0
      %1693 = vdwg.mxu0
      %v1694 = vmax.f32 %v1568, 0.0
      %v1695 = vmax.f32 %v1571, 0.0
      %v1696 = vmax.f32 %v1576, 0.0
      %v1697 = vmax.f32 %v1579, 0.0
      %v1698 = vmax.f32 %v1584, 0.0
      %v1699 = vmax.f32 %v1587, 0.0
      %v1700 = vmax.f32 %v1592, 0.0
      %v1701 = vmax.f32 %v1595, 0.0
      %v1702 = vmax.f32 %v1600, 0.0
      %v1703 = vmax.f32 %v1603, 0.0
      %v1704 = vmax.f32 %v1608, 0.0
      %v1705 = vmax.f32 %v1611, 0.0
      %v1706 = vmax.f32 %v1616, 0.0
      %v1707 = vmax.f32 %v1619, 0.0
      %v1708 = vmax.f32 %v1624, 0.0
      %v1709 = vmax.f32 %v1627, 0.0
      %v1710 = vmax.f32 %v1632, 0.0
      %v1711 = vmax.f32 %v1635, 0.0
      %v1712 = vmax.f32 %v1640, 0.0
      %v1713 = vmax.f32 %v1643, 0.0
      %v1714 = vmax.f32 %v1648, 0.0
      %v1715 = vmax.f32 %v1651, 0.0
      %v1716 = vmax.f32 %v1656, 0.0
      %v1717 = vmax.f32 %v1659, 0.0
      %v1718 = vmax.f32 %v1664, 0.0
      %v1719 = vmax.f32 %v1667, 0.0
      %v1720 = vmax.f32 %v1672, 0.0
      %v1721 = vmax.f32 %v1675, 0.0
      %v1722 = vmax.f32 %v1680, 0.0
      %v1723 = vmax.f32 %v1683, 0.0
      %v1724 = vmax.f32 %v1688, 0.0
      %v1725 = vmax.f32 %v1691, 0.0
      %v1726 = vpack.c.bf16 %v1695, %v1694
      %v1727 = vpack.c.bf16 %v1697, %v1696
      %v1728 = vpack.c.bf16 %v1699, %v1698
      %v1729 = vpack.c.bf16 %v1701, %v1700
      %v1730 = vpack.c.bf16 %v1703, %v1702
      %v1731 = vpack.c.bf16 %v1705, %v1704
      %v1732 = vpack.c.bf16 %v1707, %v1706
      %v1733 = vpack.c.bf16 %v1709, %v1708
      %v1734 = vpack.c.bf16 %v1711, %v1710
      %v1735 = vpack.c.bf16 %v1713, %v1712
      %v1736 = vpack.c.bf16 %v1715, %v1714
      %v1737 = vpack.c.bf16 %v1717, %v1716
      %v1738 = vpack.c.bf16 %v1719, %v1718
      %v1739 = vpack.c.bf16 %v1721, %v1720
      %v1740 = vpack.c.bf16 %v1723, %v1722
      %v1741 = vpack.c.bf16 %v1725, %v1724
      %v1758 = vunpack.c.l.b16 %v1726
      %v1759 = vunpack.c.h.b16 %v1726
      %v1760 = vunpack.c.l.b16 %v1727
      %v1761 = vunpack.c.h.b16 %v1727
      %v1762 = vunpack.c.l.b16 %v1728
      %v1763 = vunpack.c.h.b16 %v1728
      %v1764 = vunpack.c.l.b16 %v1729
      %v1765 = vunpack.c.h.b16 %v1729
      %v1766 = vunpack.c.l.b16 %v1730
      %v1767 = vunpack.c.h.b16 %v1730
      %v1768 = vunpack.c.l.b16 %v1731
      %v1769 = vunpack.c.h.b16 %v1731
      %v1770 = vunpack.c.l.b16 %v1732
      %v1771 = vunpack.c.h.b16 %v1732
      %v1772 = vunpack.c.l.b16 %v1733
      %v1773 = vunpack.c.h.b16 %v1733
      %v1774 = vunpack.c.l.b16 %v1734
      %v1775 = vunpack.c.h.b16 %v1734
      %v1776 = vunpack.c.l.b16 %v1735
      %v1777 = vunpack.c.h.b16 %v1735
      %v1778 = vunpack.c.l.b16 %v1736
      %v1779 = vunpack.c.h.b16 %v1736
      %v1780 = vunpack.c.l.b16 %v1737
      %v1781 = vunpack.c.h.b16 %v1737
      %v1782 = vunpack.c.l.b16 %v1738
      %v1783 = vunpack.c.h.b16 %v1738
      %v1784 = vunpack.c.l.b16 %v1739
      %v1785 = vunpack.c.h.b16 %v1739
      %v1786 = vunpack.c.l.b16 %v1740
      %v1787 = vunpack.c.h.b16 %v1740
      %v1788 = vunpack.c.l.b16 %v1741
      %v1789 = vunpack.c.h.b16 %v1741
      %v1790 = vpack.c.b16 %v1758, %v1758
      %v1791 = vpack.c.b16 %v1759, %v1759
      %v1792 = vpack.c.b16 %v1760, %v1760
      %v1793 = vpack.c.b16 %v1761, %v1761
      %v1794 = vpack.c.b16 %v1762, %v1762
      %v1795 = vpack.c.b16 %v1763, %v1763
      %v1796 = vpack.c.b16 %v1764, %v1764
      %v1797 = vpack.c.b16 %v1765, %v1765
      %v1798 = vpack.c.b16 %v1766, %v1766
      %v1799 = vpack.c.b16 %v1767, %v1767
      %v1800 = vpack.c.b16 %v1768, %v1768
      %v1801 = vpack.c.b16 %v1769, %v1769
      %v1802 = vpack.c.b16 %v1770, %v1770
      %v1803 = vpack.c.b16 %v1771, %v1771
      %v1804 = vpack.c.b16 %v1772, %v1772
      %v1805 = vpack.c.b16 %v1773, %v1773
      %v1806 = vpack.c.b16 %v1774, %v1774
      %v1807 = vpack.c.b16 %v1775, %v1775
      %v1808 = vpack.c.b16 %v1776, %v1776
      %v1809 = vpack.c.b16 %v1777, %v1777
      %v1810 = vpack.c.b16 %v1778, %v1778
      %v1811 = vpack.c.b16 %v1779, %v1779
      %v1812 = vpack.c.b16 %v1780, %v1780
      %v1813 = vpack.c.b16 %v1781, %v1781
      %v1814 = vpack.c.b16 %v1782, %v1782
      %v1815 = vpack.c.b16 %v1783, %v1783
      %v1816 = vpack.c.b16 %v1784, %v1784
      %v1817 = vpack.c.b16 %v1785, %v1785
      %v1818 = vpack.c.b16 %v1786, %v1786
      %v1819 = vpack.c.b16 %v1787, %v1787
      %v1820 = vpack.c.b16 %v1788, %v1788
      %v1821 = vpack.c.b16 %v1789, %v1789
      %1854 = vst [vmem:[#allocation4] sm:$0xf] %v1790
      %1855 = vst [vmem:[#allocation4 + $0x4] sm:$0xf] %v1791
      %1856 = vst [vmem:[#allocation4 + $0x8] sm:$0xf] %v1792
      %1857 = vst [vmem:[#allocation4 + $0xc] sm:$0xf] %v1793
      %1858 = vst [vmem:[#allocation4 + $0x10] sm:$0xf] %v1794
      %1859 = vst [vmem:[#allocation4 + $0x14] sm:$0xf] %v1795
      %1860 = vst [vmem:[#allocation4 + $0x18] sm:$0xf] %v1796
      %1861 = vst [vmem:[#allocation4 + $0x1c] sm:$0xf] %v1797
      %1862 = vst [vmem:[#allocation4 + $0x20] sm:$0xf] %v1798
      %1863 = vst [vmem:[#allocation4 + $0x24] sm:$0xf] %v1799
      %1864 = vst [vmem:[#allocation4 + $0x28] sm:$0xf] %v1800
      %1865 = vst [vmem:[#allocation4 + $0x2c] sm:$0xf] %v1801
      %1866 = vst [vmem:[#allocation4 + $0x30] sm:$0xf] %v1802
      %1867 = vst [vmem:[#allocation4 + $0x34] sm:$0xf] %v1803
      %1868 = vst [vmem:[#allocation4 + $0x38] sm:$0xf] %v1804
      %1869 = vst [vmem:[#allocation4 + $0x3c] sm:$0xf] %v1805
      %1870 = vst [vmem:[#allocation4 + $0x40] sm:$0xf] %v1806
      %1871 = vst [vmem:[#allocation4 + $0x44] sm:$0xf] %v1807
      %1872 = vst [vmem:[#allocation4 + $0x48] sm:$0xf] %v1808
      %1873 = vst [vmem:[#allocation4 + $0x4c] sm:$0xf] %v1809
      %1874 = vst [vmem:[#allocation4 + $0x50] sm:$0xf] %v1810
      %1875 = vst [vmem:[#allocation4 + $0x54] sm:$0xf] %v1811
      %1876 = vst [vmem:[#allocation4 + $0x58] sm:$0xf] %v1812
      %1877 = vst [vmem:[#allocation4 + $0x5c] sm:$0xf] %v1813
      %1878 = vst [vmem:[#allocation4 + $0x60] sm:$0xf] %v1814
      %1879 = vst [vmem:[#allocation4 + $0x64] sm:$0xf] %v1815
      %1880 = vst [vmem:[#allocation4 + $0x68] sm:$0xf] %v1816
      %1881 = vst [vmem:[#allocation4 + $0x6c] sm:$0xf] %v1817
      %1882 = vst [vmem:[#allocation4 + $0x70] sm:$0xf] %v1818
      %1883 = vst [vmem:[#allocation4 + $0x74] sm:$0xf] %v1819
      %1884 = vst [vmem:[#allocation4 + $0x78] sm:$0xf] %v1820
      %1885 = vst [vmem:[#allocation4 + $0x7c] sm:$0xf] %v1821
    $region71: #{gnn_encoder_forward.6} parent=1 // pred_fallthru
      _
    // Predicated region
    $region72: #{gnn_encoder_forward.6} parent=1 // pred_check
      _
    $region73: #{gnn_encoder_forward.6} parent=1 // pred_check_branch
      %1887 = sbr.rel (0) target = $region75
    $region74: #{gnn_encoder_forward.6} parent=1 // pred_region
      %s1888 = scalar_lea.vmem %s6, 8
      // Predicated region
      $region76: #{gnn_encoder_forward.6} parent=74 // pred_check
        _
      $region77: #{gnn_encoder_forward.6} parent=74 // pred_check_branch
        %1890 = sbr.rel (0) target = $region79
      $region78: #{gnn_encoder_forward.6} parent=74 // pred_region
        // Predicated region
        $region80: #{gnn_encoder_forward.6} parent=78 // pred_check
          _
        $region81: #{gnn_encoder_forward.6} parent=78 // pred_check_branch
          %1892 = sbr.rel target = $region83
        $region82: #{gnn_encoder_forward.6} parent=78 // pred_region
          // Predicated region
          $region95: #{gnn_encoder_forward.6} parent=82 // pred_check
            _
          $region96: #{gnn_encoder_forward.6} parent=82 // pred_check_branch
            %1969 = sbr.rel (0) target = $region98
          $region97: #{gnn_encoder_forward.6} parent=82 // pred_region
            loop: start=0, step=1, limit=1
            $region99: #{gnn_encoder_forward.6} parent=97 // loop_pre_header
              _
            $region100: #{gnn_encoder_forward.6} parent=97 // loop_header
              %s1971 = sphi 0, %s1975
              %p1972 = scmp.ge.s32.totalorder %s1971, 1
              %s1976 = sphi [#allocation4], [#allocation4]
              %s1977 = sphi %s1888, %s1888
            $region101: #{gnn_encoder_forward.6} parent=97 // loop_header_branch
              %1974 = sbr.rel (%p1972) target = $region105
            $region102: #{gnn_encoder_forward.6} parent=97 // loop_body
              _
            $region103: #{gnn_encoder_forward.6} parent=97 // loop_footer
              %s1975 = sadd.s32 1, %s1971
            $region104: #{gnn_encoder_forward.6} parent=97 // loop_footer_branch
              %1970 = sbr.rel target = $region100
            $region105: #{gnn_encoder_forward.6} parent=97 // loop_exit
              _
            loop: start=0, step=1, limit=1
            $region106: #{gnn_encoder_forward.6} parent=97 // loop_pre_header
              _
            $region107: #{gnn_encoder_forward.6} parent=97 // loop_header
              %s1980 = sphi 0, %s1984
              %p1981 = scmp.ge.s32.totalorder %s1980, 1
              %s1985 = sphi [#allocation4], [#allocation4]
              %s1986 = sphi %s1888, %s1888
            $region108: #{gnn_encoder_forward.6} parent=97 // loop_header_branch
              %1983 = sbr.rel (%p1981) target = $region112
            $region109: #{gnn_encoder_forward.6} parent=97 // loop_body
              %v1987 = vld [vmem:[%s1985] sm:$0xf]
              %1988 = vst [vmem:[%s1986] sm:$0xf] %v1987
              %v1989 = vld [vmem:[%s1985 + $0x4] sm:$0xf]
              %1990 = vst [vmem:[%s1986 + $0xc] sm:$0xf] %v1989
              %v1991 = vld [vmem:[%s1985 + $0x8] sm:$0xf]
              %1992 = vst [vmem:[%s1986 + $0x18] sm:$0xf] %v1991
              %v1993 = vld [vmem:[%s1985 + $0xc] sm:$0xf]
              %1994 = vst [vmem:[%s1986 + $0x24] sm:$0xf] %v1993
              %v1995 = vld [vmem:[%s1985 + $0x10] sm:$0xf]
              %1996 = vst [vmem:[%s1986 + $0x30] sm:$0xf] %v1995
              %v1997 = vld [vmem:[%s1985 + $0x14] sm:$0xf]
              %1998 = vst [vmem:[%s1986 + $0x3c] sm:$0xf] %v1997
              %v1999 = vld [vmem:[%s1985 + $0x18] sm:$0xf]
              %2000 = vst [vmem:[%s1986 + $0x48] sm:$0xf] %v1999
              %v2001 = vld [vmem:[%s1985 + $0x1c] sm:$0xf]
              %2002 = vst [vmem:[%s1986 + $0x54] sm:$0xf] %v2001
              %v2003 = vld [vmem:[%s1985 + $0x20] sm:$0xf]
              %2004 = vst [vmem:[%s1986 + $0x60] sm:$0xf] %v2003
              %v2005 = vld [vmem:[%s1985 + $0x24] sm:$0xf]
              %2006 = vst [vmem:[%s1986 + $0x6c] sm:$0xf] %v2005
              %v2007 = vld [vmem:[%s1985 + $0x28] sm:$0xf]
              %2008 = vst [vmem:[%s1986 + $0x78] sm:$0xf] %v2007
              %v2009 = vld [vmem:[%s1985 + $0x2c] sm:$0xf]
              %2010 = vst [vmem:[%s1986 + $0x84] sm:$0xf] %v2009
              %v2011 = vld [vmem:[%s1985 + $0x30] sm:$0xf]
              %2012 = vst [vmem:[%s1986 + $0x90] sm:$0xf] %v2011
              %v2013 = vld [vmem:[%s1985 + $0x34] sm:$0xf]
              %2014 = vst [vmem:[%s1986 + $0x9c] sm:$0xf] %v2013
              %v2015 = vld [vmem:[%s1985 + $0x38] sm:$0xf]
              %2016 = vst [vmem:[%s1986 + $0xa8] sm:$0xf] %v2015
              %v2017 = vld [vmem:[%s1985 + $0x3c] sm:$0xf]
              %2018 = vst [vmem:[%s1986 + $0xb4] sm:$0xf] %v2017
              %v2019 = vld [vmem:[%s1985 + $0x40] sm:$0xf]
              %2020 = vst [vmem:[%s1986 + $0xc0] sm:$0xf] %v2019
              %v2021 = vld [vmem:[%s1985 + $0x44] sm:$0xf]
              %2022 = vst [vmem:[%s1986 + $0xcc] sm:$0xf] %v2021
              %v2023 = vld [vmem:[%s1985 + $0x48] sm:$0xf]
              %2024 = vst [vmem:[%s1986 + $0xd8] sm:$0xf] %v2023
              %v2025 = vld [vmem:[%s1985 + $0x4c] sm:$0xf]
              %2026 = vst [vmem:[%s1986 + $0xe4] sm:$0xf] %v2025
              %v2027 = vld [vmem:[%s1985 + $0x50] sm:$0xf]
              %2028 = vst [vmem:[%s1986 + $0xf0] sm:$0xf] %v2027
              %v2029 = vld [vmem:[%s1985 + $0x54] sm:$0xf]
              %2030 = vst [vmem:[%s1986 + $0xfc] sm:$0xf] %v2029
              %v2031 = vld [vmem:[%s1985 + $0x58] sm:$0xf]
              %2032 = vst [vmem:[%s1986 + $0x108] sm:$0xf] %v2031
              %v2033 = vld [vmem:[%s1985 + $0x5c] sm:$0xf]
              %2034 = vst [vmem:[%s1986 + $0x114] sm:$0xf] %v2033
              %v2035 = vld [vmem:[%s1985 + $0x60] sm:$0xf]
              %2036 = vst [vmem:[%s1986 + $0x120] sm:$0xf] %v2035
              %v2037 = vld [vmem:[%s1985 + $0x64] sm:$0xf]
              %2038 = vst [vmem:[%s1986 + $0x12c] sm:$0xf] %v2037
              %v2039 = vld [vmem:[%s1985 + $0x68] sm:$0xf]
              %2040 = vst [vmem:[%s1986 + $0x138] sm:$0xf] %v2039
              %v2041 = vld [vmem:[%s1985 + $0x6c] sm:$0xf]
              %2042 = vst [vmem:[%s1986 + $0x144] sm:$0xf] %v2041
              %v2043 = vld [vmem:[%s1985 + $0x70] sm:$0xf]
              %2044 = vst [vmem:[%s1986 + $0x150] sm:$0xf] %v2043
              %v2045 = vld [vmem:[%s1985 + $0x74] sm:$0xf]
              %2046 = vst [vmem:[%s1986 + $0x15c] sm:$0xf] %v2045
              %v2047 = vld [vmem:[%s1985 + $0x78] sm:$0xf]
              %2048 = vst [vmem:[%s1986 + $0x168] sm:$0xf] %v2047
              %v2049 = vld [vmem:[%s1985 + $0x7c] sm:$0xf]
              %2050 = vst [vmem:[%s1986 + $0x174] sm:$0xf] %v2049
            $region110: #{gnn_encoder_forward.6} parent=97 // loop_footer
              %s1984 = sadd.s32 1, %s1980
            $region111: #{gnn_encoder_forward.6} parent=97 // loop_footer_branch
              %1979 = sbr.rel target = $region107
            $region112: #{gnn_encoder_forward.6} parent=97 // loop_exit
              _
          $region98: #{gnn_encoder_forward.6} parent=82 // pred_fallthru
            _
        $region83: #{gnn_encoder_forward.6} parent=78 // pred_fallthru
          _
        // Predicated region
        $region84: #{gnn_encoder_forward.6} parent=78 // pred_check
          _
        $region85: #{gnn_encoder_forward.6} parent=78 // pred_check_branch
          %1894 = sbr.rel (0) target = $region87
        $region86: #{gnn_encoder_forward.6} parent=78 // pred_region
          loop: start=0, step=1, limit=1
          $region88: #{gnn_encoder_forward.6} parent=86 // loop_pre_header
            _
          $region89: #{gnn_encoder_forward.6} parent=86 // loop_header
            %s1897 = sphi 0, %s1901
            %p1898 = scmp.ge.s32.totalorder %s1897, 1
            %s1902 = sphi [#allocation4], [#allocation4]
            %s1903 = sphi %s1888, %s1888
          $region90: #{gnn_encoder_forward.6} parent=86 // loop_header_branch
            %1900 = sbr.rel (%p1898) target = $region94
          $region91: #{gnn_encoder_forward.6} parent=86 // loop_body
            %v1904 = vld [vmem:[%s1902] sm:$0xf]
            %1905 = vst [vmem:[%s1903] sm:$0xf] %v1904
            %v1906 = vld [vmem:[%s1902 + $0x4] sm:$0xf]
            %1907 = vst [vmem:[%s1903 + $0xc] sm:$0xf] %v1906
            %v1908 = vld [vmem:[%s1902 + $0x8] sm:$0xf]
            %1909 = vst [vmem:[%s1903 + $0x18] sm:$0xf] %v1908
            %v1910 = vld [vmem:[%s1902 + $0xc] sm:$0xf]
            %1911 = vst [vmem:[%s1903 + $0x24] sm:$0xf] %v1910
            %v1912 = vld [vmem:[%s1902 + $0x10] sm:$0xf]
            %1913 = vst [vmem:[%s1903 + $0x30] sm:$0xf] %v1912
            %v1914 = vld [vmem:[%s1902 + $0x14] sm:$0xf]
            %1915 = vst [vmem:[%s1903 + $0x3c] sm:$0xf] %v1914
            %v1916 = vld [vmem:[%s1902 + $0x18] sm:$0xf]
            %1917 = vst [vmem:[%s1903 + $0x48] sm:$0xf] %v1916
            %v1918 = vld [vmem:[%s1902 + $0x1c] sm:$0xf]
            %1919 = vst [vmem:[%s1903 + $0x54] sm:$0xf] %v1918
            %v1920 = vld [vmem:[%s1902 + $0x20] sm:$0xf]
            %1921 = vst [vmem:[%s1903 + $0x60] sm:$0xf] %v1920
            %v1922 = vld [vmem:[%s1902 + $0x24] sm:$0xf]
            %1923 = vst [vmem:[%s1903 + $0x6c] sm:$0xf] %v1922
            %v1924 = vld [vmem:[%s1902 + $0x28] sm:$0xf]
            %1925 = vst [vmem:[%s1903 + $0x78] sm:$0xf] %v1924
            %v1926 = vld [vmem:[%s1902 + $0x2c] sm:$0xf]
            %1927 = vst [vmem:[%s1903 + $0x84] sm:$0xf] %v1926
            %v1928 = vld [vmem:[%s1902 + $0x30] sm:$0xf]
            %1929 = vst [vmem:[%s1903 + $0x90] sm:$0xf] %v1928
            %v1930 = vld [vmem:[%s1902 + $0x34] sm:$0xf]
            %1931 = vst [vmem:[%s1903 + $0x9c] sm:$0xf] %v1930
            %v1932 = vld [vmem:[%s1902 + $0x38] sm:$0xf]
            %1933 = vst [vmem:[%s1903 + $0xa8] sm:$0xf] %v1932
            %v1934 = vld [vmem:[%s1902 + $0x3c] sm:$0xf]
            %1935 = vst [vmem:[%s1903 + $0xb4] sm:$0xf] %v1934
            %v1936 = vld [vmem:[%s1902 + $0x40] sm:$0xf]
            %1937 = vst [vmem:[%s1903 + $0xc0] sm:$0xf] %v1936
            %v1938 = vld [vmem:[%s1902 + $0x44] sm:$0xf]
            %1939 = vst [vmem:[%s1903 + $0xcc] sm:$0xf] %v1938
            %v1940 = vld [vmem:[%s1902 + $0x48] sm:$0xf]
            %1941 = vst [vmem:[%s1903 + $0xd8] sm:$0xf] %v1940
            %v1942 = vld [vmem:[%s1902 + $0x4c] sm:$0xf]
            %1943 = vst [vmem:[%s1903 + $0xe4] sm:$0xf] %v1942
            %v1944 = vld [vmem:[%s1902 + $0x50] sm:$0xf]
            %1945 = vst [vmem:[%s1903 + $0xf0] sm:$0xf] %v1944
            %v1946 = vld [vmem:[%s1902 + $0x54] sm:$0xf]
            %1947 = vst [vmem:[%s1903 + $0xfc] sm:$0xf] %v1946
            %v1948 = vld [vmem:[%s1902 + $0x58] sm:$0xf]
            %1949 = vst [vmem:[%s1903 + $0x108] sm:$0xf] %v1948
            %v1950 = vld [vmem:[%s1902 + $0x5c] sm:$0xf]
            %1951 = vst [vmem:[%s1903 + $0x114] sm:$0xf] %v1950
            %v1952 = vld [vmem:[%s1902 + $0x60] sm:$0xf]
            %1953 = vst [vmem:[%s1903 + $0x120] sm:$0xf] %v1952
            %v1954 = vld [vmem:[%s1902 + $0x64] sm:$0xf]
            %1955 = vst [vmem:[%s1903 + $0x12c] sm:$0xf] %v1954
            %v1956 = vld [vmem:[%s1902 + $0x68] sm:$0xf]
            %1957 = vst [vmem:[%s1903 + $0x138] sm:$0xf] %v1956
            %v1958 = vld [vmem:[%s1902 + $0x6c] sm:$0xf]
            %1959 = vst [vmem:[%s1903 + $0x144] sm:$0xf] %v1958
            %v1960 = vld [vmem:[%s1902 + $0x70] sm:$0xf]
            %1961 = vst [vmem:[%s1903 + $0x150] sm:$0xf] %v1960
            %v1962 = vld [vmem:[%s1902 + $0x74] sm:$0xf]
            %1963 = vst [vmem:[%s1903 + $0x15c] sm:$0xf] %v1962
            %v1964 = vld [vmem:[%s1902 + $0x78] sm:$0xf]
            %1965 = vst [vmem:[%s1903 + $0x168] sm:$0xf] %v1964
            %v1966 = vld [vmem:[%s1902 + $0x7c] sm:$0xf]
            %1967 = vst [vmem:[%s1903 + $0x174] sm:$0xf] %v1966
          $region92: #{gnn_encoder_forward.6} parent=86 // loop_footer
            %s1901 = sadd.s32 1, %s1897
          $region93: #{gnn_encoder_forward.6} parent=86 // loop_footer_branch
            %1896 = sbr.rel target = $region89
          $region94: #{gnn_encoder_forward.6} parent=86 // loop_exit
            _
        $region87: #{gnn_encoder_forward.6} parent=78 // pred_fallthru
          _
      $region79: #{gnn_encoder_forward.6} parent=74 // pred_fallthru
        _
      %2051 = vnop
    $region75: #{gnn_encoder_forward.6} parent=1 // pred_fallthru
      _
    // Predicated region
    $region113: #{gnn_encoder_forward.6} parent=1 // pred_check
      _
    $region114: #{gnn_encoder_forward.6} parent=1 // pred_check_branch
      %2053 = sbr.rel (0) target = $region116
    $region115: #{gnn_encoder_forward.6} parent=1 // pred_region
      _
    $region116: #{gnn_encoder_forward.6} parent=1 // pred_fallthru
      _

// kernel: gnn_encoder_forward.7
$region0: #{gnn_encoder_forward.7}
  #allocation0 [shape = 'u32[]', space=smem, size = 0x4, offset = 0x4, fixed_abs, tag = 'smem constant byte address 0x4 - core index']
  #allocation1 [shape = 'u32[144,128]{1,0:T(1,128)}', space=vmem, size = 0x12000, scoped, tag = 'internal scratch']
  #allocation2 [shape = 'f32[8,384]{1,0:T(8,128)}', space=vmem, size = 0x3000, scoped, tag = 'scratch operand']
  %s0 = inlined_call_operand.vmem [shape: bf16[8,256], index: 0, kind: input, shape index: {}]
  %s1 = inlined_call_operand.vmem [shape: bf16[256,384], index: 1, kind: input, shape index: {}]
  %s2 = inlined_call_operand.vmem [shape: bf16[384,128], index: 2, kind: input, shape index: {}]
  %s3 = inlined_call_operand.vmem [shape: f32[1,128], index: 3, kind: input, shape index: {}]
  %s4 = inlined_call_operand.vmem [shape: bf16[128,128], index: 4, kind: input, shape index: {}]
  %s5 = inlined_call_operand.vmem [shape: f32[1,128], index: 5, kind: input, shape index: {}]
  %s6 = inlined_call_operand.vmem [shape: bf16[128,256], index: 6, kind: input, shape index: {}]
  %s7 = inlined_call_operand.vmem [shape: f32[1,256], index: 7, kind: input, shape index: {}]
  %s8 = inlined_call_operand.vmem [shape: bf16[256,128], index: 8, kind: input, shape index: {}]
  %s9 = inlined_call_operand.vmem [shape: f32[1,128], index: 9, kind: input, shape index: {}]
  %s10 = inlined_call_operand.vmem [shape: f32[8,128], index: 10, kind: output, shape index: {}]
  %s11 = sld [smem:[#allocation0]]
  $region58: #{gnn_encoder_forward.7} parent=0
    _
  %s13 = ssub.s32 1, %s11
  %s14 = scalar_select 0, %s13, %s11
  // Predicated region
  $region2: #{gnn_encoder_forward.7} parent=0 // pred_check
    _
  $region3: #{gnn_encoder_forward.7} parent=0 // pred_check_branch
    %16 = sbr.rel (0) target = $region5
  $region4: #{gnn_encoder_forward.7} parent=0 // pred_region
    _
  $region5: #{gnn_encoder_forward.7} parent=0 // pred_fallthru
    _
  // Predicated region
  $region6: #{gnn_encoder_forward.7} parent=0 // pred_check
    _
  $region7: #{gnn_encoder_forward.7} parent=0 // pred_check_branch
    %18 = sbr.rel (0) target = $region9
  $region8: #{gnn_encoder_forward.7} parent=0 // pred_region
    _
  $region9: #{gnn_encoder_forward.7} parent=0 // pred_fallthru
    _
  // Predicated region
  $region10: #{gnn_encoder_forward.7} parent=0 // pred_check
    _
  $region11: #{gnn_encoder_forward.7} parent=0 // pred_check_branch
    %20 = sbr.rel (0) target = $region13
  $region12: #{gnn_encoder_forward.7} parent=0 // pred_region
    _
  $region13: #{gnn_encoder_forward.7} parent=0 // pred_fallthru
    _
  // Predicated region
  $region14: #{gnn_encoder_forward.7} parent=0 // pred_check
    _
  $region15: #{gnn_encoder_forward.7} parent=0 // pred_check_branch
    %22 = sbr.rel (0) target = $region17
  $region16: #{gnn_encoder_forward.7} parent=0 // pred_region
    _
  $region17: #{gnn_encoder_forward.7} parent=0 // pred_fallthru
    _
  // Predicated region
  $region18: #{gnn_encoder_forward.7} parent=0 // pred_check
    _
  $region19: #{gnn_encoder_forward.7} parent=0 // pred_check_branch
    %24 = sbr.rel (0) target = $region21
  $region20: #{gnn_encoder_forward.7} parent=0 // pred_region
    _
  $region21: #{gnn_encoder_forward.7} parent=0 // pred_fallthru
    _
  // Predicated region
  $region22: #{gnn_encoder_forward.7} parent=0 // pred_check
    _
  $region23: #{gnn_encoder_forward.7} parent=0 // pred_check_branch
    %26 = sbr.rel (0) target = $region25
  $region24: #{gnn_encoder_forward.7} parent=0 // pred_region
    _
  $region25: #{gnn_encoder_forward.7} parent=0 // pred_fallthru
    _
  // Predicated region
  $region26: #{gnn_encoder_forward.7} parent=0 // pred_check
    _
  $region27: #{gnn_encoder_forward.7} parent=0 // pred_check_branch
    %28 = sbr.rel (0) target = $region29
  $region28: #{gnn_encoder_forward.7} parent=0 // pred_region
    _
  $region29: #{gnn_encoder_forward.7} parent=0 // pred_fallthru
    _
  // Predicated region
  $region30: #{gnn_encoder_forward.7} parent=0 // pred_check
    _
  $region31: #{gnn_encoder_forward.7} parent=0 // pred_check_branch
    %30 = sbr.rel (0) target = $region33
  $region32: #{gnn_encoder_forward.7} parent=0 // pred_region
    _
  $region33: #{gnn_encoder_forward.7} parent=0 // pred_fallthru
    _
  // Predicated region
  $region34: #{gnn_encoder_forward.7} parent=0 // pred_check
    _
  $region35: #{gnn_encoder_forward.7} parent=0 // pred_check_branch
    %32 = sbr.rel (0) target = $region37
  $region36: #{gnn_encoder_forward.7} parent=0 // pred_region
    _
  $region37: #{gnn_encoder_forward.7} parent=0 // pred_fallthru
    _
  // Predicated region
  $region38: #{gnn_encoder_forward.7} parent=0 // pred_check
    _
  $region39: #{gnn_encoder_forward.7} parent=0 // pred_check_branch
    %34 = sbr.rel (0) target = $region41
  $region40: #{gnn_encoder_forward.7} parent=0 // pred_region
    _
  $region41: #{gnn_encoder_forward.7} parent=0 // pred_fallthru
    _
  %p36 = scmp.eq.s32.totalorder 0, 0
  // Predicated region
  $region42: #{gnn_encoder_forward.7} parent=0 // pred_check
    %p37 = pneg %p36
  $region43: #{gnn_encoder_forward.7} parent=0 // pred_check_branch
    %39 = sbr.rel (%p37) target = $region45
  $region44: #{gnn_encoder_forward.7} parent=0 // pred_region
    %40 = vst [vmem:[#allocation2] sm:$0xff] 0.0
    %41 = vst [vmem:[#allocation2 + $0x8] sm:$0xff] 0.0
    %42 = vst [vmem:[#allocation2 + $0x10] sm:$0xff] 0.0
  $region45: #{gnn_encoder_forward.7} parent=0 // pred_fallthru
    _
  %v43 = vld [vmem:[#allocation2] sm:$0xff]
  %v44 = vld [vmem:[#allocation2 + $0x8] sm:$0xff]
  %v45 = vld [vmem:[#allocation2 + $0x10] sm:$0xff]
  %v46 = vld [vmem:[%s0] sm:$0xff]
  %v47 = vld [vmem:[%s1] sm:$0xff]
  %v48 = vld [vmem:[%s1 + $0x8] sm:$0xf]
  %v49 = vld [vmem:[%s1 + $0xc] sm:$0xff]
  %v50 = vld [vmem:[%s1 + $0x14] sm:$0xf]
  %v51 = vld [vmem:[%s1 + $0x18] sm:$0xff]
  %v52 = vld [vmem:[%s1 + $0x20] sm:$0xf]
  %v53 = vld [vmem:[%s1 + $0x24] sm:$0xff]
  %v54 = vld [vmem:[%s1 + $0x2c] sm:$0xf]
  %v55 = vld [vmem:[%s1 + $0x30] sm:$0xff]
  %v56 = vld [vmem:[%s1 + $0x38] sm:$0xf]
  %v57 = vld [vmem:[%s1 + $0x3c] sm:$0xff]
  %v58 = vld [vmem:[%s1 + $0x44] sm:$0xf]
  %v59 = vld [vmem:[%s1 + $0x48] sm:$0xff]
  %v60 = vld [vmem:[%s1 + $0x50] sm:$0xf]
  %v61 = vld [vmem:[%s1 + $0x54] sm:$0xff]
  %v62 = vld [vmem:[%s1 + $0x5c] sm:$0xf]
  %v63 = vld [vmem:[%s1 + $0x60] sm:$0xff]
  %v64 = vld [vmem:[%s1 + $0x68] sm:$0xf]
  %v65 = vld [vmem:[%s1 + $0x6c] sm:$0xff]
  %v66 = vld [vmem:[%s1 + $0x74] sm:$0xf]
  %v67 = vld [vmem:[%s1 + $0x78] sm:$0xff]
  %v68 = vld [vmem:[%s1 + $0x80] sm:$0xf]
  %v69 = vld [vmem:[%s1 + $0x84] sm:$0xff]
  %v70 = vld [vmem:[%s1 + $0x8c] sm:$0xf]
  %v71 = vld [vmem:[%s1 + $0x90] sm:$0xff]
  %v72 = vld [vmem:[%s1 + $0x98] sm:$0xf]
  %v73 = vld [vmem:[%s1 + $0x9c] sm:$0xff]
  %v74 = vld [vmem:[%s1 + $0xa4] sm:$0xf]
  %v75 = vld [vmem:[%s1 + $0xa8] sm:$0xff]
  %v76 = vld [vmem:[%s1 + $0xb0] sm:$0xf]
  %v77 = vld [vmem:[%s1 + $0xb4] sm:$0xff]
  %v78 = vld [vmem:[%s1 + $0xbc] sm:$0xf]
  %v79 = vld [vmem:[%s1 + $0xc0] sm:$0xff]
  %v80 = vld [vmem:[%s1 + $0xc8] sm:$0xf]
  %v81 = vld [vmem:[%s1 + $0xcc] sm:$0xff]
  %v82 = vld [vmem:[%s1 + $0xd4] sm:$0xf]
  %v83 = vld [vmem:[%s1 + $0xd8] sm:$0xff]
  %v84 = vld [vmem:[%s1 + $0xe0] sm:$0xf]
  %v85 = vld [vmem:[%s1 + $0xe4] sm:$0xff]
  %v86 = vld [vmem:[%s1 + $0xec] sm:$0xf]
  %v87 = vld [vmem:[%s1 + $0xf0] sm:$0xff]
  %v88 = vld [vmem:[%s1 + $0xf8] sm:$0xf]
  %v89 = vld [vmem:[%s1 + $0xfc] sm:$0xff]
  %v90 = vld [vmem:[%s1 + $0x104] sm:$0xf]
  %v91 = vld [vmem:[%s1 + $0x108] sm:$0xff]
  %v92 = vld [vmem:[%s1 + $0x110] sm:$0xf]
  %v93 = vld [vmem:[%s1 + $0x114] sm:$0xff]
  %v94 = vld [vmem:[%s1 + $0x11c] sm:$0xf]
  %v95 = vld [vmem:[%s1 + $0x120] sm:$0xff]
  %v96 = vld [vmem:[%s1 + $0x128] sm:$0xf]
  %v97 = vld [vmem:[%s1 + $0x12c] sm:$0xff]
  %v98 = vld [vmem:[%s1 + $0x134] sm:$0xf]
  %v99 = vld [vmem:[%s1 + $0x138] sm:$0xff]
  %v100 = vld [vmem:[%s1 + $0x140] sm:$0xf]
  %v101 = vld [vmem:[%s1 + $0x144] sm:$0xff]
  %v102 = vld [vmem:[%s1 + $0x14c] sm:$0xf]
  %v103 = vld [vmem:[%s1 + $0x150] sm:$0xff]
  %v104 = vld [vmem:[%s1 + $0x158] sm:$0xf]
  %v105 = vld [vmem:[%s1 + $0x15c] sm:$0xff]
  %v106 = vld [vmem:[%s1 + $0x164] sm:$0xf]
  %v107 = vld [vmem:[%s1 + $0x168] sm:$0xff]
  %v108 = vld [vmem:[%s1 + $0x170] sm:$0xf]
  %v109 = vld [vmem:[%s1 + $0x174] sm:$0xff]
  %v110 = vld [vmem:[%s1 + $0x17c] sm:$0xf]
  %v112 = vunpack.c.l.b16 %v46
  %v113 = vunpack.c.h.b16 %v46
  %v114 = vpack.c.b16 %v112, %v112
  %v115 = vpack.c.b16 %v113, %v113
  %v182 = vunpack.c.l.b16 %v47
  %v183 = vunpack.c.h.b16 %v47
  %v184 = vunpack.c.l.b16 %v48
  %v185 = vunpack.c.l.b16 %v49
  %v186 = vunpack.c.h.b16 %v49
  %v187 = vunpack.c.l.b16 %v50
  %v188 = vunpack.c.l.b16 %v51
  %v189 = vunpack.c.h.b16 %v51
  %v190 = vunpack.c.l.b16 %v52
  %v191 = vunpack.c.l.b16 %v53
  %v192 = vunpack.c.h.b16 %v53
  %v193 = vunpack.c.l.b16 %v54
  %v194 = vunpack.c.l.b16 %v55
  %v195 = vunpack.c.h.b16 %v55
  %v196 = vunpack.c.l.b16 %v56
  %v197 = vunpack.c.l.b16 %v57
  %v198 = vunpack.c.h.b16 %v57
  %v199 = vunpack.c.l.b16 %v58
  %v200 = vunpack.c.l.b16 %v59
  %v201 = vunpack.c.h.b16 %v59
  %v202 = vunpack.c.l.b16 %v60
  %v203 = vunpack.c.l.b16 %v61
  %v204 = vunpack.c.h.b16 %v61
  %v205 = vunpack.c.l.b16 %v62
  %v206 = vunpack.c.l.b16 %v63
  %v207 = vunpack.c.h.b16 %v63
  %v208 = vunpack.c.l.b16 %v64
  %v209 = vunpack.c.l.b16 %v65
  %v210 = vunpack.c.h.b16 %v65
  %v211 = vunpack.c.l.b16 %v66
  %v212 = vunpack.c.l.b16 %v67
  %v213 = vunpack.c.h.b16 %v67
  %v214 = vunpack.c.l.b16 %v68
  %v215 = vunpack.c.l.b16 %v69
  %v216 = vunpack.c.h.b16 %v69
  %v217 = vunpack.c.l.b16 %v70
  %v218 = vunpack.c.l.b16 %v71
  %v219 = vunpack.c.h.b16 %v71
  %v220 = vunpack.c.l.b16 %v72
  %v221 = vunpack.c.l.b16 %v73
  %v222 = vunpack.c.h.b16 %v73
  %v223 = vunpack.c.l.b16 %v74
  %v224 = vunpack.c.l.b16 %v75
  %v225 = vunpack.c.h.b16 %v75
  %v226 = vunpack.c.l.b16 %v76
  %v227 = vunpack.c.l.b16 %v77
  %v228 = vunpack.c.h.b16 %v77
  %v229 = vunpack.c.l.b16 %v78
  %v230 = vunpack.c.l.b16 %v79
  %v231 = vunpack.c.h.b16 %v79
  %v232 = vunpack.c.l.b16 %v80
  %v233 = vunpack.c.l.b16 %v81
  %v234 = vunpack.c.h.b16 %v81
  %v235 = vunpack.c.l.b16 %v82
  %v236 = vunpack.c.l.b16 %v83
  %v237 = vunpack.c.h.b16 %v83
  %v238 = vunpack.c.l.b16 %v84
  %v239 = vunpack.c.l.b16 %v85
  %v240 = vunpack.c.h.b16 %v85
  %v241 = vunpack.c.l.b16 %v86
  %v242 = vunpack.c.l.b16 %v87
  %v243 = vunpack.c.h.b16 %v87
  %v244 = vunpack.c.l.b16 %v88
  %v245 = vunpack.c.l.b16 %v89
  %v246 = vunpack.c.h.b16 %v89
  %v247 = vunpack.c.l.b16 %v90
  %v248 = vunpack.c.l.b16 %v91
  %v249 = vunpack.c.h.b16 %v91
  %v250 = vunpack.c.l.b16 %v92
  %v251 = vunpack.c.l.b16 %v93
  %v252 = vunpack.c.h.b16 %v93
  %v253 = vunpack.c.l.b16 %v94
  %v254 = vunpack.c.l.b16 %v95
  %v255 = vunpack.c.h.b16 %v95
  %v256 = vunpack.c.l.b16 %v96
  %v257 = vunpack.c.l.b16 %v97
  %v258 = vunpack.c.h.b16 %v97
  %v259 = vunpack.c.l.b16 %v98
  %v260 = vunpack.c.l.b16 %v99
  %v261 = vunpack.c.h.b16 %v99
  %v262 = vunpack.c.l.b16 %v100
  %v263 = vunpack.c.l.b16 %v101
  %v264 = vunpack.c.h.b16 %v101
  %v265 = vunpack.c.l.b16 %v102
  %v266 = vunpack.c.l.b16 %v103
  %v267 = vunpack.c.h.b16 %v103
  %v268 = vunpack.c.l.b16 %v104
  %v269 = vunpack.c.l.b16 %v105
  %v270 = vunpack.c.h.b16 %v105
  %v271 = vunpack.c.l.b16 %v106
  %v272 = vunpack.c.l.b16 %v107
  %v273 = vunpack.c.h.b16 %v107
  %v274 = vunpack.c.l.b16 %v108
  %v275 = vunpack.c.l.b16 %v109
  %v276 = vunpack.c.h.b16 %v109
  %v277 = vunpack.c.l.b16 %v110
  %v278 = vpack.c.b16 %v185, %v182
  %v279 = vpack.c.b16 %v186, %v183
  %v280 = vpack.c.b16 %v187, %v184
  %v281 = vpack.c.b16 %v191, %v188
  %v282 = vpack.c.b16 %v192, %v189
  %v283 = vpack.c.b16 %v193, %v190
  %v284 = vpack.c.b16 %v197, %v194
  %v285 = vpack.c.b16 %v198, %v195
  %v286 = vpack.c.b16 %v199, %v196
  %v287 = vpack.c.b16 %v203, %v200
  %v288 = vpack.c.b16 %v204, %v201
  %v289 = vpack.c.b16 %v205, %v202
  %v290 = vpack.c.b16 %v209, %v206
  %v291 = vpack.c.b16 %v210, %v207
  %v292 = vpack.c.b16 %v211, %v208
  %v293 = vpack.c.b16 %v215, %v212
  %v294 = vpack.c.b16 %v216, %v213
  %v295 = vpack.c.b16 %v217, %v214
  %v296 = vpack.c.b16 %v221, %v218
  %v297 = vpack.c.b16 %v222, %v219
  %v298 = vpack.c.b16 %v223, %v220
  %v299 = vpack.c.b16 %v227, %v224
  %v300 = vpack.c.b16 %v228, %v225
  %v301 = vpack.c.b16 %v229, %v226
  %v302 = vpack.c.b16 %v233, %v230
  %v303 = vpack.c.b16 %v234, %v231
  %v304 = vpack.c.b16 %v235, %v232
  %v305 = vpack.c.b16 %v239, %v236
  %v306 = vpack.c.b16 %v240, %v237
  %v307 = vpack.c.b16 %v241, %v238
  %v308 = vpack.c.b16 %v245, %v242
  %v309 = vpack.c.b16 %v246, %v243
  %v310 = vpack.c.b16 %v247, %v244
  %v311 = vpack.c.b16 %v251, %v248
  %v312 = vpack.c.b16 %v252, %v249
  %v313 = vpack.c.b16 %v253, %v250
  %v314 = vpack.c.b16 %v257, %v254
  %v315 = vpack.c.b16 %v258, %v255
  %v316 = vpack.c.b16 %v259, %v256
  %v317 = vpack.c.b16 %v263, %v260
  %v318 = vpack.c.b16 %v264, %v261
  %v319 = vpack.c.b16 %v265, %v262
  %v320 = vpack.c.b16 %v269, %v266
  %v321 = vpack.c.b16 %v270, %v267
  %v322 = vpack.c.b16 %v271, %v268
  %v323 = vpack.c.b16 %v275, %v272
  %v324 = vpack.c.b16 %v276, %v273
  %v325 = vpack.c.b16 %v277, %v274
  %374 = vmatprep.subr.bf16.mxu0 %v279
  %375 = vmatpush1.bf16.msra.mxu0 %v278
  %376 = vmatprep.subr.bf16.mxu0 %v282
  %377 = vmatpush1.bf16.msra.mxu0 %v281
  %378 = vmatprep.subr.bf16.mxu0 %v285
  %379 = vmatpush1.bf16.msra.mxu0 %v284
  %380 = vmatprep.subr.bf16.mxu0 %v288
  %381 = vmatpush1.bf16.msra.mxu0 %v287
  %382 = vmatprep.subr.bf16.mxu0 %v291
  %383 = vmatpush1.bf16.msra.mxu0 %v290
  %384 = vmatprep.subr.bf16.mxu0 %v294
  %385 = vmatpush1.bf16.msra.mxu0 %v293
  %386 = vmatprep.subr.bf16.mxu0 %v297
  %387 = vmatpush1.bf16.msra.mxu0 %v296
  %388 = vmatprep.subr.bf16.mxu0 %v300
  %389 = vmatpush1.bf16.msra.mxu0 %v299
  %390 = vmatprep.subr.bf16.mxu0 %v303
  %391 = vmatpush1.bf16.msra.mxu0 %v302
  %392 = vmatprep.subr.bf16.mxu0 %v306
  %393 = vmatpush1.bf16.msra.mxu0 %v305
  %394 = vmatprep.subr.bf16.mxu0 %v309
  %395 = vmatpush1.bf16.msra.mxu0 %v308
  %396 = vmatprep.subr.bf16.mxu0 %v312
  %397 = vmatpush1.bf16.msra.mxu0 %v311
  %398 = vmatprep.subr.bf16.mxu0 %v315
  %399 = vmatpush1.bf16.msra.mxu0 %v314
  %400 = vmatprep.subr.bf16.mxu0 %v318
  %401 = vmatpush1.bf16.msra.mxu0 %v317
  %402 = vmatprep.subr.bf16.mxu0 %v321
  %403 = vmatpush1.bf16.msra.mxu0 %v320
  %404 = vmatprep.subr.bf16.mxu0 %v324
  %405 = vmatpush1.bf16.msra.mxu0 %v323
  %406 = vmatprep.mubr.bf16.mxu0 %v115
  %407 = vmatmul.mubr.bf16.gmra.mrb[0].mxu0 %v114
  %v408 = vpop.f32.mrb[0].mxu0
  %v409 = vadd.f32 0.0, %v408
  %v410 = vpop.f32.mrb[0].mxu0
  %v411 = vadd.f32 0.0, %v410
  %v412 = vpop.f32.mrb[0].mxu0
  %v413 = vpop.f32.mrb[0].mxu0
  %414 = vdwg.mxu0
  %415 = vmatprep.subr.bf16.mxu0 0
  %416 = vmatpush1.bf16.msra.mxu0 %v280
  %417 = vmatprep.subr.bf16.mxu0 0
  %418 = vmatpush1.bf16.msra.mxu0 %v283
  %419 = vmatprep.subr.bf16.mxu0 0
  %420 = vmatpush1.bf16.msra.mxu0 %v286
  %421 = vmatprep.subr.bf16.mxu0 0
  %422 = vmatpush1.bf16.msra.mxu0 %v289
  %423 = vmatprep.subr.bf16.mxu0 0
  %424 = vmatpush1.bf16.msra.mxu0 %v292
  %425 = vmatprep.subr.bf16.mxu0 0
  %426 = vmatpush1.bf16.msra.mxu0 %v295
  %427 = vmatprep.subr.bf16.mxu0 0
  %428 = vmatpush1.bf16.msra.mxu0 %v298
  %429 = vmatprep.subr.bf16.mxu0 0
  %430 = vmatpush1.bf16.msra.mxu0 %v301
  %431 = vmatprep.subr.bf16.mxu0 0
  %432 = vmatpush1.bf16.msra.mxu0 %v304
  %433 = vmatprep.subr.bf16.mxu0 0
  %434 = vmatpush1.bf16.msra.mxu0 %v307
  %435 = vmatprep.subr.bf16.mxu0 0
  %436 = vmatpush1.bf16.msra.mxu0 %v310
  %437 = vmatprep.subr.bf16.mxu0 0
  %438 = vmatpush1.bf16.msra.mxu0 %v313
  %439 = vmatprep.subr.bf16.mxu0 0
  %440 = vmatpush1.bf16.msra.mxu0 %v316
  %441 = vmatprep.subr.bf16.mxu0 0
  %442 = vmatpush1.bf16.msra.mxu0 %v319
  %443 = vmatprep.subr.bf16.mxu0 0
  %444 = vmatpush1.bf16.msra.mxu0 %v322
  %445 = vmatprep.subr.bf16.mxu0 0
  %446 = vmatpush1.bf16.msra.mxu0 %v325
  %447 = vmatprep.mubr.bf16.mxu0 %v115
  %448 = vmatmul.mubr.bf16.gmra.mrb[0].mxu0 %v114
  %v449 = vpop.f32.mrb[0].mxu0
  %v450 = vadd.f32 0.0, %v449
  %v451 = vpop.f32.mrb[0].mxu0
  %v452 = vpop.f32.mrb[0].mxu0
  %v453 = vpop.f32.mrb[0].mxu0
  %454 = vdwg.mxu0
  %v455 = vadd.f32 %v43, %v409
  %v456 = vadd.f32 %v44, %v411
  %v457 = vadd.f32 %v45, %v450
  %458 = vst [vmem:[#allocation2] sm:$0xff] %v455
  %459 = vst [vmem:[#allocation2 + $0x8] sm:$0xff] %v456
  %460 = vst [vmem:[#allocation2 + $0x10] sm:$0xff] %v457
  // Predicated region
  $region46: #{gnn_encoder_forward.7} parent=0 // pred_check
    %p461 = pneg %p36
  $region47: #{gnn_encoder_forward.7} parent=0 // pred_check_branch
    %463 = sbr.rel (%p461) target = $region49
  $region48: #{gnn_encoder_forward.7} parent=0 // pred_region
    %v464 = vld [vmem:[#allocation2] sm:$0xff]
    %v465 = vld [vmem:[#allocation2 + $0x8] sm:$0xff]
    %v466 = vld [vmem:[#allocation2 + $0x10] sm:$0xff]
    %v467 = vpack.c.bf16 %v464, %v464
    %v468 = vpack.c.bf16 %v465, %v465
    %v469 = vpack.c.bf16 %v466, %v466
    %v470 = vld [vmem:[%s2] sm:$0xf]
    %v471 = vld [vmem:[%s2 + $0x4] sm:$0xf]
    %v472 = vld [vmem:[%s2 + $0x8] sm:$0xf]
    %v473 = vld [vmem:[%s2 + $0xc] sm:$0xf]
    %v474 = vld [vmem:[%s2 + $0x10] sm:$0xf]
    %v475 = vld [vmem:[%s2 + $0x14] sm:$0xf]
    %v476 = vld [vmem:[%s2 + $0x18] sm:$0xf]
    %v477 = vld [vmem:[%s2 + $0x1c] sm:$0xf]
    %v478 = vld [vmem:[%s2 + $0x20] sm:$0xf]
    %v479 = vld [vmem:[%s2 + $0x24] sm:$0xf]
    %v480 = vld [vmem:[%s2 + $0x28] sm:$0xf]
    %v481 = vld [vmem:[%s2 + $0x2c] sm:$0xf]
    %v482 = vld [vmem:[%s2 + $0x30] sm:$0xf]
    %v483 = vld [vmem:[%s2 + $0x34] sm:$0xf]
    %v484 = vld [vmem:[%s2 + $0x38] sm:$0xf]
    %v485 = vld [vmem:[%s2 + $0x3c] sm:$0xf]
    %v486 = vld [vmem:[%s2 + $0x40] sm:$0xf]
    %v487 = vld [vmem:[%s2 + $0x44] sm:$0xf]
    %v488 = vld [vmem:[%s2 + $0x48] sm:$0xf]
    %v489 = vld [vmem:[%s2 + $0x4c] sm:$0xf]
    %v490 = vld [vmem:[%s2 + $0x50] sm:$0xf]
    %v491 = vld [vmem:[%s2 + $0x54] sm:$0xf]
    %v492 = vld [vmem:[%s2 + $0x58] sm:$0xf]
    %v493 = vld [vmem:[%s2 + $0x5c] sm:$0xf]
    %v494 = vld [vmem:[%s2 + $0x60] sm:$0xf]
    %v495 = vld [vmem:[%s2 + $0x64] sm:$0xf]
    %v496 = vld [vmem:[%s2 + $0x68] sm:$0xf]
    %v497 = vld [vmem:[%s2 + $0x6c] sm:$0xf]
    %v498 = vld [vmem:[%s2 + $0x70] sm:$0xf]
    %v499 = vld [vmem:[%s2 + $0x74] sm:$0xf]
    %v500 = vld [vmem:[%s2 + $0x78] sm:$0xf]
    %v501 = vld [vmem:[%s2 + $0x7c] sm:$0xf]
    %v502 = vld [vmem:[%s2 + $0x80] sm:$0xf]
    %v503 = vld [vmem:[%s2 + $0x84] sm:$0xf]
    %v504 = vld [vmem:[%s2 + $0x88] sm:$0xf]
    %v505 = vld [vmem:[%s2 + $0x8c] sm:$0xf]
    %v506 = vld [vmem:[%s2 + $0x90] sm:$0xf]
    %v507 = vld [vmem:[%s2 + $0x94] sm:$0xf]
    %v508 = vld [vmem:[%s2 + $0x98] sm:$0xf]
    %v509 = vld [vmem:[%s2 + $0x9c] sm:$0xf]
    %v510 = vld [vmem:[%s2 + $0xa0] sm:$0xf]
    %v511 = vld [vmem:[%s2 + $0xa4] sm:$0xf]
    %v512 = vld [vmem:[%s2 + $0xa8] sm:$0xf]
    %v513 = vld [vmem:[%s2 + $0xac] sm:$0xf]
    %v514 = vld [vmem:[%s2 + $0xb0] sm:$0xf]
    %v515 = vld [vmem:[%s2 + $0xb4] sm:$0xf]
    %v516 = vld [vmem:[%s2 + $0xb8] sm:$0xf]
    %v517 = vld [vmem:[%s2 + $0xbc] sm:$0xf]
    %v518 = vld [vmem:[%s3] sm:$0x1]
    %v520 = vlaneseq
    %v521 = vshrl.u32 %v520, 7
    %v522 = vsub.s32 0, %v521
    %v523 = vrot.slane %v518, %v522
    %v573 = vunpack.c.l.b16 %v470
    %v574 = vunpack.c.l.b16 %v471
    %v575 = vunpack.c.l.b16 %v472
    %v576 = vunpack.c.l.b16 %v473
    %v577 = vunpack.c.l.b16 %v474
    %v578 = vunpack.c.l.b16 %v475
    %v579 = vunpack.c.l.b16 %v476
    %v580 = vunpack.c.l.b16 %v477
    %v581 = vunpack.c.l.b16 %v478
    %v582 = vunpack.c.l.b16 %v479
    %v583 = vunpack.c.l.b16 %v480
    %v584 = vunpack.c.l.b16 %v481
    %v585 = vunpack.c.l.b16 %v482
    %v586 = vunpack.c.l.b16 %v483
    %v587 = vunpack.c.l.b16 %v484
    %v588 = vunpack.c.l.b16 %v485
    %v589 = vunpack.c.l.b16 %v486
    %v590 = vunpack.c.l.b16 %v487
    %v591 = vunpack.c.l.b16 %v488
    %v592 = vunpack.c.l.b16 %v489
    %v593 = vunpack.c.l.b16 %v490
    %v594 = vunpack.c.l.b16 %v491
    %v595 = vunpack.c.l.b16 %v492
    %v596 = vunpack.c.l.b16 %v493
    %v597 = vunpack.c.l.b16 %v494
    %v598 = vunpack.c.l.b16 %v495
    %v599 = vunpack.c.l.b16 %v496
    %v600 = vunpack.c.l.b16 %v497
    %v601 = vunpack.c.l.b16 %v498
    %v602 = vunpack.c.l.b16 %v499
    %v603 = vunpack.c.l.b16 %v500
    %v604 = vunpack.c.l.b16 %v501
    %v605 = vunpack.c.l.b16 %v502
    %v606 = vunpack.c.l.b16 %v503
    %v607 = vunpack.c.l.b16 %v504
    %v608 = vunpack.c.l.b16 %v505
    %v609 = vunpack.c.l.b16 %v506
    %v610 = vunpack.c.l.b16 %v507
    %v611 = vunpack.c.l.b16 %v508
    %v612 = vunpack.c.l.b16 %v509
    %v613 = vunpack.c.l.b16 %v510
    %v614 = vunpack.c.l.b16 %v511
    %v615 = vunpack.c.l.b16 %v512
    %v616 = vunpack.c.l.b16 %v513
    %v617 = vunpack.c.l.b16 %v514
    %v618 = vunpack.c.l.b16 %v515
    %v619 = vunpack.c.l.b16 %v516
    %v620 = vunpack.c.l.b16 %v517
    %v621 = vpack.c.b16 %v574, %v573
    %v622 = vpack.c.b16 %v576, %v575
    %v623 = vpack.c.b16 %v578, %v577
    %v624 = vpack.c.b16 %v580, %v579
    %v625 = vpack.c.b16 %v582, %v581
    %v626 = vpack.c.b16 %v584, %v583
    %v627 = vpack.c.b16 %v586, %v585
    %v628 = vpack.c.b16 %v588, %v587
    %v629 = vpack.c.b16 %v590, %v589
    %v630 = vpack.c.b16 %v592, %v591
    %v631 = vpack.c.b16 %v594, %v593
    %v632 = vpack.c.b16 %v596, %v595
    %v633 = vpack.c.b16 %v598, %v597
    %v634 = vpack.c.b16 %v600, %v599
    %v635 = vpack.c.b16 %v602, %v601
    %v636 = vpack.c.b16 %v604, %v603
    %v637 = vpack.c.b16 %v606, %v605
    %v638 = vpack.c.b16 %v608, %v607
    %v639 = vpack.c.b16 %v610, %v609
    %v640 = vpack.c.b16 %v612, %v611
    %v641 = vpack.c.b16 %v614, %v613
    %v642 = vpack.c.b16 %v616, %v615
    %v643 = vpack.c.b16 %v618, %v617
    %v644 = vpack.c.b16 %v620, %v619
    %669 = vmatprep.subr.bf16.mxu0 0
    %670 = vmatpush1.bf16.msra.mxu0 %v621
    %671 = vmatprep.subr.bf16.mxu0 0
    %672 = vmatpush1.bf16.msra.mxu0 %v622
    %673 = vmatprep.subr.bf16.mxu0 0
    %674 = vmatpush1.bf16.msra.mxu0 %v623
    %675 = vmatprep.subr.bf16.mxu0 0
    %676 = vmatpush1.bf16.msra.mxu0 %v624
    %677 = vmatprep.subr.bf16.mxu0 0
    %678 = vmatpush1.bf16.msra.mxu0 %v625
    %679 = vmatprep.subr.bf16.mxu0 0
    %680 = vmatpush1.bf16.msra.mxu0 %v626
    %681 = vmatprep.subr.bf16.mxu0 0
    %682 = vmatpush1.bf16.msra.mxu0 %v627
    %683 = vmatprep.subr.bf16.mxu0 0
    %684 = vmatpush1.bf16.msra.mxu0 %v628
    %685 = vmatprep.subr.bf16.mxu0 0
    %686 = vmatpush1.bf16.msra.mxu0 %v629
    %687 = vmatprep.subr.bf16.mxu0 0
    %688 = vmatpush1.bf16.msra.mxu0 %v630
    %689 = vmatprep.subr.bf16.mxu0 0
    %690 = vmatpush1.bf16.msra.mxu0 %v631
    %691 = vmatprep.subr.bf16.mxu0 0
    %692 = vmatpush1.bf16.msra.mxu0 %v632
    %693 = vmatprep.subr.bf16.mxu0 0
    %694 = vmatpush1.bf16.msra.mxu0 %v633
    %695 = vmatprep.subr.bf16.mxu0 0
    %696 = vmatpush1.bf16.msra.mxu0 %v634
    %697 = vmatprep.subr.bf16.mxu0 0
    %698 = vmatpush1.bf16.msra.mxu0 %v635
    %699 = vmatprep.subr.bf16.mxu0 0
    %700 = vmatpush1.bf16.msra.mxu0 %v636
    %701 = vmatprep.mubr.bf16.mxu0 %v468
    %702 = vmatmul.mubr.bf16.gmra.mrb[0].mxu0 %v467
    %v703 = vpop.f32.mrb[0].mxu0
    %v704 = vadd.f32 %v523, %v703
    %v705 = vpop.f32.mrb[0].mxu0
    %v706 = vpop.f32.mrb[0].mxu0
    %v707 = vpop.f32.mrb[0].mxu0
    %708 = vdwg.mxu0
    %709 = vmatprep.subr.bf16.mxu0 0
    %710 = vmatpush1.bf16.msra.mxu0 %v637
    %711 = vmatprep.subr.bf16.mxu0 0
    %712 = vmatpush1.bf16.msra.mxu0 %v638
    %713 = vmatprep.subr.bf16.mxu0 0
    %714 = vmatpush1.bf16.msra.mxu0 %v639
    %715 = vmatprep.subr.bf16.mxu0 0
    %716 = vmatpush1.bf16.msra.mxu0 %v640
    %717 = vmatprep.subr.bf16.mxu0 0
    %718 = vmatpush1.bf16.msra.mxu0 %v641
    %719 = vmatprep.subr.bf16.mxu0 0
    %720 = vmatpush1.bf16.msra.mxu0 %v642
    %721 = vmatprep.subr.bf16.mxu0 0
    %722 = vmatpush1.bf16.msra.mxu0 %v643
    %723 = vmatprep.subr.bf16.mxu0 0
    %724 = vmatpush1.bf16.msra.mxu0 %v644
    %725 = vmatprep.subr.bf16.mxu0 0
    %726 = vmatpush1.bf16.msra.mxu0 0
    %727 = vmatprep.subr.bf16.mxu0 0
    %728 = vmatpush1.bf16.msra.mxu0 0
    %729 = vmatprep.subr.bf16.mxu0 0
    %730 = vmatpush1.bf16.msra.mxu0 0
    %731 = vmatprep.subr.bf16.mxu0 0
    %732 = vmatpush1.bf16.msra.mxu0 0
    %733 = vmatprep.subr.bf16.mxu0 0
    %734 = vmatpush1.bf16.msra.mxu0 0
    %735 = vmatprep.subr.bf16.mxu0 0
    %736 = vmatpush1.bf16.msra.mxu0 0
    %737 = vmatprep.subr.bf16.mxu0 0
    %738 = vmatpush1.bf16.msra.mxu0 0
    %739 = vmatprep.subr.bf16.mxu0 0
    %740 = vmatpush1.bf16.msra.mxu0 0
    %741 = vmatprep.mubr.bf16.mxu0 0
    %742 = vmatmul.mubr.bf16.gmra.mrb[0].mxu0 %v469
    %v743 = vpop.f32.mrb[0].mxu0
    %v744 = vadd.f32 %v704, %v743
    %v745 = vpop.f32.mrb[0].mxu0
    %v746 = vpop.f32.mrb[0].mxu0
    %v747 = vpop.f32.mrb[0].mxu0
    %748 = vdwg.mxu0
    %vm749 = vcmp.gt.f32.partialorder %v744, 0.0
    %v750 = vmul.f32 %v744, 0.1
    %v751 = vsel %vm749, %v744, %v750
    %v752 = vpack.c.bf16 %v751, %v751
    %v753 = vld [vmem:[%s4] sm:$0xf]
    %v754 = vld [vmem:[%s4 + $0x4] sm:$0xf]
    %v755 = vld [vmem:[%s4 + $0x8] sm:$0xf]
    %v756 = vld [vmem:[%s4 + $0xc] sm:$0xf]
    %v757 = vld [vmem:[%s4 + $0x10] sm:$0xf]
    %v758 = vld [vmem:[%s4 + $0x14] sm:$0xf]
    %v759 = vld [vmem:[%s4 + $0x18] sm:$0xf]
    %v760 = vld [vmem:[%s4 + $0x1c] sm:$0xf]
    %v761 = vld [vmem:[%s4 + $0x20] sm:$0xf]
    %v762 = vld [vmem:[%s4 + $0x24] sm:$0xf]
    %v763 = vld [vmem:[%s4 + $0x28] sm:$0xf]
    %v764 = vld [vmem:[%s4 + $0x2c] sm:$0xf]
    %v765 = vld [vmem:[%s4 + $0x30] sm:$0xf]
    %v766 = vld [vmem:[%s4 + $0x34] sm:$0xf]
    %v767 = vld [vmem:[%s4 + $0x38] sm:$0xf]
    %v768 = vld [vmem:[%s4 + $0x3c] sm:$0xf]
    %v769 = vld [vmem:[%s5] sm:$0x1]
    %v771 = vlaneseq
    %v772 = vshrl.u32 %v771, 7
    %v773 = vsub.s32 0, %v772
    %v774 = vrot.slane %v769, %v773
    %v792 = vunpack.c.l.b16 %v753
    %v793 = vunpack.c.l.b16 %v754
    %v794 = vunpack.c.l.b16 %v755
    %v795 = vunpack.c.l.b16 %v756
    %v796 = vunpack.c.l.b16 %v757
    %v797 = vunpack.c.l.b16 %v758
    %v798 = vunpack.c.l.b16 %v759
    %v799 = vunpack.c.l.b16 %v760
    %v800 = vunpack.c.l.b16 %v761
    %v801 = vunpack.c.l.b16 %v762
    %v802 = vunpack.c.l.b16 %v763
    %v803 = vunpack.c.l.b16 %v764
    %v804 = vunpack.c.l.b16 %v765
    %v805 = vunpack.c.l.b16 %v766
    %v806 = vunpack.c.l.b16 %v767
    %v807 = vunpack.c.l.b16 %v768
    %v808 = vpack.c.b16 %v793, %v792
    %v809 = vpack.c.b16 %v795, %v794
    %v810 = vpack.c.b16 %v797, %v796
    %v811 = vpack.c.b16 %v799, %v798
    %v812 = vpack.c.b16 %v801, %v800
    %v813 = vpack.c.b16 %v803, %v802
    %v814 = vpack.c.b16 %v805, %v804
    %v815 = vpack.c.b16 %v807, %v806
    %824 = vmatprep.subr.bf16.mxu0 0
    %825 = vmatpush1.bf16.msra.mxu0 %v808
    %826 = vmatprep.subr.bf16.mxu0 0
    %827 = vmatpush1.bf16.msra.mxu0 %v809
    %828 = vmatprep.subr.bf16.mxu0 0
    %829 = vmatpush1.bf16.msra.mxu0 %v810
    %830 = vmatprep.subr.bf16.mxu0 0
    %831 = vmatpush1.bf16.msra.mxu0 %v811
    %832 = vmatprep.subr.bf16.mxu0 0
    %833 = vmatpush1.bf16.msra.mxu0 %v812
    %834 = vmatprep.subr.bf16.mxu0 0
    %835 = vmatpush1.bf16.msra.mxu0 %v813
    %836 = vmatprep.subr.bf16.mxu0 0
    %837 = vmatpush1.bf16.msra.mxu0 %v814
    %838 = vmatprep.subr.bf16.mxu0 0
    %839 = vmatpush1.bf16.msra.mxu0 %v815
    %840 = vmatprep.subr.bf16.mxu0 0
    %841 = vmatpush1.bf16.msra.mxu0 0
    %842 = vmatprep.subr.bf16.mxu0 0
    %843 = vmatpush1.bf16.msra.mxu0 0
    %844 = vmatprep.subr.bf16.mxu0 0
    %845 = vmatpush1.bf16.msra.mxu0 0
    %846 = vmatprep.subr.bf16.mxu0 0
    %847 = vmatpush1.bf16.msra.mxu0 0
    %848 = vmatprep.subr.bf16.mxu0 0
    %849 = vmatpush1.bf16.msra.mxu0 0
    %850 = vmatprep.subr.bf16.mxu0 0
    %851 = vmatpush1.bf16.msra.mxu0 0
    %852 = vmatprep.subr.bf16.mxu0 0
    %853 = vmatpush1.bf16.msra.mxu0 0
    %854 = vmatprep.subr.bf16.mxu0 0
    %855 = vmatpush1.bf16.msra.mxu0 0
    %856 = vmatprep.mubr.bf16.mxu0 0
    %857 = vmatmul.mubr.bf16.gmra.mrb[0].mxu0 %v752
    %v858 = vpop.f32.mrb[0].mxu0
    %v859 = vadd.f32 %v774, %v858
    %v860 = vpop.f32.mrb[0].mxu0
    %v861 = vpop.f32.mrb[0].mxu0
    %v862 = vpop.f32.mrb[0].mxu0
    %863 = vdwg.mxu0
    %v864 = vmax.f32 %v859, 0.0
    %v865 = vpack.c.bf16 %v864, %v864
    %v866 = vld [vmem:[%s6] sm:$0xff]
    %v867 = vld [vmem:[%s6 + $0x8] sm:$0xff]
    %v868 = vld [vmem:[%s6 + $0x10] sm:$0xff]
    %v869 = vld [vmem:[%s6 + $0x18] sm:$0xff]
    %v870 = vld [vmem:[%s6 + $0x20] sm:$0xff]
    %v871 = vld [vmem:[%s6 + $0x28] sm:$0xff]
    %v872 = vld [vmem:[%s6 + $0x30] sm:$0xff]
    %v873 = vld [vmem:[%s6 + $0x38] sm:$0xff]
    %v874 = vld [vmem:[%s6 + $0x40] sm:$0xff]
    %v875 = vld [vmem:[%s6 + $0x48] sm:$0xff]
    %v876 = vld [vmem:[%s6 + $0x50] sm:$0xff]
    %v877 = vld [vmem:[%s6 + $0x58] sm:$0xff]
    %v878 = vld [vmem:[%s6 + $0x60] sm:$0xff]
    %v879 = vld [vmem:[%s6 + $0x68] sm:$0xff]
    %v880 = vld [vmem:[%s6 + $0x70] sm:$0xff]
    %v881 = vld [vmem:[%s6 + $0x78] sm:$0xff]
    %v882 = vld [vmem:[%s7] sm:$0x3]
    %v884 = vlaneseq
    %v885 = vshrl.u32 %v884, 7
    %v886 = vsub.s32 0, %v885
    %v887 = vrot.slane %v882, %v886
    %v888 = vlaneseq
    %v889 = vshrl.u32 %v888, 7
    %v890 = vsub.s32 1, %v889
    %v891 = vrot.slane %v882, %v890
    %v910 = vunpack.c.l.b16 %v866
    %v911 = vunpack.c.h.b16 %v866
    %v912 = vunpack.c.l.b16 %v867
    %v913 = vunpack.c.h.b16 %v867
    %v914 = vunpack.c.l.b16 %v868
    %v915 = vunpack.c.h.b16 %v868
    %v916 = vunpack.c.l.b16 %v869
    %v917 = vunpack.c.h.b16 %v869
    %v918 = vunpack.c.l.b16 %v870
    %v919 = vunpack.c.h.b16 %v870
    %v920 = vunpack.c.l.b16 %v871
    %v921 = vunpack.c.h.b16 %v871
    %v922 = vunpack.c.l.b16 %v872
    %v923 = vunpack.c.h.b16 %v872
    %v924 = vunpack.c.l.b16 %v873
    %v925 = vunpack.c.h.b16 %v873
    %v926 = vunpack.c.l.b16 %v874
    %v927 = vunpack.c.h.b16 %v874
    %v928 = vunpack.c.l.b16 %v875
    %v929 = vunpack.c.h.b16 %v875
    %v930 = vunpack.c.l.b16 %v876
    %v931 = vunpack.c.h.b16 %v876
    %v932 = vunpack.c.l.b16 %v877
    %v933 = vunpack.c.h.b16 %v877
    %v934 = vunpack.c.l.b16 %v878
    %v935 = vunpack.c.h.b16 %v878
    %v936 = vunpack.c.l.b16 %v879
    %v937 = vunpack.c.h.b16 %v879
    %v938 = vunpack.c.l.b16 %v880
    %v939 = vunpack.c.h.b16 %v880
    %v940 = vunpack.c.l.b16 %v881
    %v941 = vunpack.c.h.b16 %v881
    %v942 = vpack.c.b16 %v912, %v910
    %v943 = vpack.c.b16 %v913, %v911
    %v944 = vpack.c.b16 %v916, %v914
    %v945 = vpack.c.b16 %v917, %v915
    %v946 = vpack.c.b16 %v920, %v918
    %v947 = vpack.c.b16 %v921, %v919
    %v948 = vpack.c.b16 %v924, %v922
    %v949 = vpack.c.b16 %v925, %v923
    %v950 = vpack.c.b16 %v928, %v926
    %v951 = vpack.c.b16 %v929, %v927
    %v952 = vpack.c.b16 %v932, %v930
    %v953 = vpack.c.b16 %v933, %v931
    %v954 = vpack.c.b16 %v936, %v934
    %v955 = vpack.c.b16 %v937, %v935
    %v956 = vpack.c.b16 %v940, %v938
    %v957 = vpack.c.b16 %v941, %v939
    %974 = vmatprep.subr.bf16.mxu0 %v943
    %975 = vmatpush1.bf16.msra.mxu0 %v942
    %976 = vmatprep.subr.bf16.mxu0 %v945
    %977 = vmatpush1.bf16.msra.mxu0 %v944
    %978 = vmatprep.subr.bf16.mxu0 %v947
    %979 = vmatpush1.bf16.msra.mxu0 %v946
    %980 = vmatprep.subr.bf16.mxu0 %v949
    %981 = vmatpush1.bf16.msra.mxu0 %v948
    %982 = vmatprep.subr.bf16.mxu0 %v951
    %983 = vmatpush1.bf16.msra.mxu0 %v950
    %984 = vmatprep.subr.bf16.mxu0 %v953
    %985 = vmatpush1.bf16.msra.mxu0 %v952
    %986 = vmatprep.subr.bf16.mxu0 %v955
    %987 = vmatpush1.bf16.msra.mxu0 %v954
    %988 = vmatprep.subr.bf16.mxu0 %v957
    %989 = vmatpush1.bf16.msra.mxu0 %v956
    %990 = vmatprep.subr.bf16.mxu0 0
    %991 = vmatpush1.bf16.msra.mxu0 0
    %992 = vmatprep.subr.bf16.mxu0 0
    %993 = vmatpush1.bf16.msra.mxu0 0
    %994 = vmatprep.subr.bf16.mxu0 0
    %995 = vmatpush1.bf16.msra.mxu0 0
    %996 = vmatprep.subr.bf16.mxu0 0
    %997 = vmatpush1.bf16.msra.mxu0 0
    %998 = vmatprep.subr.bf16.mxu0 0
    %999 = vmatpush1.bf16.msra.mxu0 0
    %1000 = vmatprep.subr.bf16.mxu0 0
    %1001 = vmatpush1.bf16.msra.mxu0 0
    %1002 = vmatprep.subr.bf16.mxu0 0
    %1003 = vmatpush1.bf16.msra.mxu0 0
    %1004 = vmatprep.subr.bf16.mxu0 0
    %1005 = vmatpush1.bf16.msra.mxu0 0
    %1006 = vmatprep.mubr.bf16.mxu0 0
    %1007 = vmatmul.mubr.bf16.gmra.mrb[0].mxu0 %v865
    %v1008 = vpop.f32.mrb[0].mxu0
    %v1009 = vadd.f32 %v887, %v1008
    %v1010 = vpop.f32.mrb[0].mxu0
    %v1011 = vadd.f32 %v891, %v1010
    %v1012 = vpop.f32.mrb[0].mxu0
    %v1013 = vpop.f32.mrb[0].mxu0
    %1014 = vdwg.mxu0
    %v1015 = vmax.f32 %v1009, 0.0
    %v1016 = vmax.f32 %v1011, 0.0
    %v1017 = vpack.c.bf16 %v1015, %v1015
    %v1018 = vpack.c.bf16 %v1016, %v1016
    %v1019 = vld [vmem:[%s8] sm:$0xf]
    %v1020 = vld [vmem:[%s8 + $0x4] sm:$0xf]
    %v1021 = vld [vmem:[%s8 + $0x8] sm:$0xf]
    %v1022 = vld [vmem:[%s8 + $0xc] sm:$0xf]
    %v1023 = vld [vmem:[%s8 + $0x10] sm:$0xf]
    %v1024 = vld [vmem:[%s8 + $0x14] sm:$0xf]
    %v1025 = vld [vmem:[%s8 + $0x18] sm:$0xf]
    %v1026 = vld [vmem:[%s8 + $0x1c] sm:$0xf]
    %v1027 = vld [vmem:[%s8 + $0x20] sm:$0xf]
    %v1028 = vld [vmem:[%s8 + $0x24] sm:$0xf]
    %v1029 = vld [vmem:[%s8 + $0x28] sm:$0xf]
    %v1030 = vld [vmem:[%s8 + $0x2c] sm:$0xf]
    %v1031 = vld [vmem:[%s8 + $0x30] sm:$0xf]
    %v1032 = vld [vmem:[%s8 + $0x34] sm:$0xf]
    %v1033 = vld [vmem:[%s8 + $0x38] sm:$0xf]
    %v1034 = vld [vmem:[%s8 + $0x3c] sm:$0xf]
    %v1035 = vld [vmem:[%s8 + $0x40] sm:$0xf]
    %v1036 = vld [vmem:[%s8 + $0x44] sm:$0xf]
    %v1037 = vld [vmem:[%s8 + $0x48] sm:$0xf]
    %v1038 = vld [vmem:[%s8 + $0x4c] sm:$0xf]
    %v1039 = vld [vmem:[%s8 + $0x50] sm:$0xf]
    %v1040 = vld [vmem:[%s8 + $0x54] sm:$0xf]
    %v1041 = vld [vmem:[%s8 + $0x58] sm:$0xf]
    %v1042 = vld [vmem:[%s8 + $0x5c] sm:$0xf]
    %v1043 = vld [vmem:[%s8 + $0x60] sm:$0xf]
    %v1044 = vld [vmem:[%s8 + $0x64] sm:$0xf]
    %v1045 = vld [vmem:[%s8 + $0x68] sm:$0xf]
    %v1046 = vld [vmem:[%s8 + $0x6c] sm:$0xf]
    %v1047 = vld [vmem:[%s8 + $0x70] sm:$0xf]
    %v1048 = vld [vmem:[%s8 + $0x74] sm:$0xf]
    %v1049 = vld [vmem:[%s8 + $0x78] sm:$0xf]
    %v1050 = vld [vmem:[%s8 + $0x7c] sm:$0xf]
    %v1051 = vld [vmem:[%s9] sm:$0x1]
    %v1053 = vlaneseq
    %v1054 = vshrl.u32 %v1053, 7
    %v1055 = vsub.s32 0, %v1054
    %v1056 = vrot.slane %v1051, %v1055
    %v1090 = vunpack.c.l.b16 %v1019
    %v1091 = vunpack.c.l.b16 %v1020
    %v1092 = vunpack.c.l.b16 %v1021
    %v1093 = vunpack.c.l.b16 %v1022
    %v1094 = vunpack.c.l.b16 %v1023
    %v1095 = vunpack.c.l.b16 %v1024
    %v1096 = vunpack.c.l.b16 %v1025
    %v1097 = vunpack.c.l.b16 %v1026
    %v1098 = vunpack.c.l.b16 %v1027
    %v1099 = vunpack.c.l.b16 %v1028
    %v1100 = vunpack.c.l.b16 %v1029
    %v1101 = vunpack.c.l.b16 %v1030
    %v1102 = vunpack.c.l.b16 %v1031
    %v1103 = vunpack.c.l.b16 %v1032
    %v1104 = vunpack.c.l.b16 %v1033
    %v1105 = vunpack.c.l.b16 %v1034
    %v1106 = vunpack.c.l.b16 %v1035
    %v1107 = vunpack.c.l.b16 %v1036
    %v1108 = vunpack.c.l.b16 %v1037
    %v1109 = vunpack.c.l.b16 %v1038
    %v1110 = vunpack.c.l.b16 %v1039
    %v1111 = vunpack.c.l.b16 %v1040
    %v1112 = vunpack.c.l.b16 %v1041
    %v1113 = vunpack.c.l.b16 %v1042
    %v1114 = vunpack.c.l.b16 %v1043
    %v1115 = vunpack.c.l.b16 %v1044
    %v1116 = vunpack.c.l.b16 %v1045
    %v1117 = vunpack.c.l.b16 %v1046
    %v1118 = vunpack.c.l.b16 %v1047
    %v1119 = vunpack.c.l.b16 %v1048
    %v1120 = vunpack.c.l.b16 %v1049
    %v1121 = vunpack.c.l.b16 %v1050
    %v1122 = vpack.c.b16 %v1091, %v1090
    %v1123 = vpack.c.b16 %v1093, %v1092
    %v1124 = vpack.c.b16 %v1095, %v1094
    %v1125 = vpack.c.b16 %v1097, %v1096
    %v1126 = vpack.c.b16 %v1099, %v1098
    %v1127 = vpack.c.b16 %v1101, %v1100
    %v1128 = vpack.c.b16 %v1103, %v1102
    %v1129 = vpack.c.b16 %v1105, %v1104
    %v1130 = vpack.c.b16 %v1107, %v1106
    %v1131 = vpack.c.b16 %v1109, %v1108
    %v1132 = vpack.c.b16 %v1111, %v1110
    %v1133 = vpack.c.b16 %v1113, %v1112
    %v1134 = vpack.c.b16 %v1115, %v1114
    %v1135 = vpack.c.b16 %v1117, %v1116
    %v1136 = vpack.c.b16 %v1119, %v1118
    %v1137 = vpack.c.b16 %v1121, %v1120
    %1154 = vmatprep.subr.bf16.mxu0 0
    %1155 = vmatpush1.bf16.msra.mxu0 %v1122
    %1156 = vmatprep.subr.bf16.mxu0 0
    %1157 = vmatpush1.bf16.msra.mxu0 %v1123
    %1158 = vmatprep.subr.bf16.mxu0 0
    %1159 = vmatpush1.bf16.msra.mxu0 %v1124
    %1160 = vmatprep.subr.bf16.mxu0 0
    %1161 = vmatpush1.bf16.msra.mxu0 %v1125
    %1162 = vmatprep.subr.bf16.mxu0 0
    %1163 = vmatpush1.bf16.msra.mxu0 %v1126
    %1164 = vmatprep.subr.bf16.mxu0 0
    %1165 = vmatpush1.bf16.msra.mxu0 %v1127
    %1166 = vmatprep.subr.bf16.mxu0 0
    %1167 = vmatpush1.bf16.msra.mxu0 %v1128
    %1168 = vmatprep.subr.bf16.mxu0 0
    %1169 = vmatpush1.bf16.msra.mxu0 %v1129
    %1170 = vmatprep.subr.bf16.mxu0 0
    %1171 = vmatpush1.bf16.msra.mxu0 %v1130
    %1172 = vmatprep.subr.bf16.mxu0 0
    %1173 = vmatpush1.bf16.msra.mxu0 %v1131
    %1174 = vmatprep.subr.bf16.mxu0 0
    %1175 = vmatpush1.bf16.msra.mxu0 %v1132
    %1176 = vmatprep.subr.bf16.mxu0 0
    %1177 = vmatpush1.bf16.msra.mxu0 %v1133
    %1178 = vmatprep.subr.bf16.mxu0 0
    %1179 = vmatpush1.bf16.msra.mxu0 %v1134
    %1180 = vmatprep.subr.bf16.mxu0 0
    %1181 = vmatpush1.bf16.msra.mxu0 %v1135
    %1182 = vmatprep.subr.bf16.mxu0 0
    %1183 = vmatpush1.bf16.msra.mxu0 %v1136
    %1184 = vmatprep.subr.bf16.mxu0 0
    %1185 = vmatpush1.bf16.msra.mxu0 %v1137
    %1186 = vmatprep.mubr.bf16.mxu0 %v1018
    %1187 = vmatmul.mubr.bf16.gmra.mrb[0].mxu0 %v1017
    %v1188 = vpop.f32.mrb[0].mxu0
    %v1189 = vadd.f32 %v1056, %v1188
    %v1190 = vpop.f32.mrb[0].mxu0
    %v1191 = vpop.f32.mrb[0].mxu0
    %v1192 = vpop.f32.mrb[0].mxu0
    %1193 = vdwg.mxu0
    %1194 = vst [vmem:[%s10] sm:$0xff] %v1189
  $region49: #{gnn_encoder_forward.7} parent=0 // pred_fallthru
    _
  // Predicated region
  $region50: #{gnn_encoder_forward.7} parent=0 // pred_check
    _
  $region51: #{gnn_encoder_forward.7} parent=0 // pred_check_branch
    %1196 = sbr.rel (0) target = $region53
  $region52: #{gnn_encoder_forward.7} parent=0 // pred_region
    _
  $region53: #{gnn_encoder_forward.7} parent=0 // pred_fallthru
    _
  // Predicated region
  $region54: #{gnn_encoder_forward.7} parent=0 // pred_check
    _
  $region55: #{gnn_encoder_forward.7} parent=0 // pred_check_branch
    %1198 = sbr.rel (0) target = $region57
  $region56: #{gnn_encoder_forward.7} parent=0 // pred_region
    _
  $region57: #{gnn_encoder_forward.7} parent=0 // pred_fallthru
    _

</llo_original>
